<compile_context>
chip_gen: v7x
topology: tpu7x:2x2x1
jax: 0.10.0
libtpu: 0.0.40
codegen_flags: <defaults>
</compile_context>

<pallas_src>
import jax
import jax.numpy as jnp
from jax import lax
from jax.experimental import pallas as pl
from jax.experimental.pallas import tpu as pltpu

# ------------------------- configuration (small) -------------------------
VOCAB_SIZE = 64
EMBED_DIM = 16
HIDDEN_DIM = 32
GENRE_SIZE = 4
NUM_LAYERS = 2          # kernel below is specialized to 2 layers
DROPOUT = 0.0           # eval-mode forward; dropout is a no-op
BATCH = 2
SEQ_LEN = 8

_VMEM_SPEC = pl.BlockSpec(memory_space=pltpu.MemorySpace.VMEM)


# --------------------------- fused forward kernel --------------------------
def _fused_forward_kernel(seq_ref,                      # SMEM (B, T) int32 (scalar prefetch)
                          emb_ref,                      # VMEM (V, E)
                          w_ih0_ref, w_hh0_ref, b0_ref,  # (E,4H), (H,4H), (1,4H)
                          w_ih1_ref, w_hh1_ref, b1_ref,  # (H,4H), (H,4H), (1,4H)
                          genre_ref,                    # (B, G)
                          wg_ref, bg_ref,               # (G,H), (1,H)
                          wfc_ref, bfc_ref,             # (2H,V), (1,V)
                          out_ref,                      # (B, V)
                          h0_sc):                       # VMEM (T*B, H) scratch
    f32 = jnp.float32
    V, _ = emb_ref.shape
    H = w_hh0_ref.shape[0]
    B, T = seq_ref.shape
    TB = T * B

    # ---- embedding gather: one-hot MXU matmul, ids read as SMEM scalars ----
    row_iota = lax.broadcasted_iota(jnp.int32, (TB, 1), 0)
    ids = jnp.zeros((TB, 1), jnp.int32)
    for t in range(T):                       # time-major row order: r = t*B + b
        for b in range(B):
            r = t * B + b
            ids = jnp.where(row_iota == r, seq_ref[b, t], ids)
    onehot = (ids == lax.broadcasted_iota(jnp.int32, (TB, V), 1)).astype(f32)
    x = jnp.dot(onehot, emb_ref[...], preferred_element_type=f32)      # (TB, E)

    def run_lstm(xw, w_hh):
        # xw: (TB, 4H) precomputed input projection (+ bias), time-major rows.
        h = jnp.zeros((B, H), f32)
        c = jnp.zeros((B, H), f32)
        outs = []
        for t in range(T):                   # fully unrolled recurrence
            g = xw[t * B:(t + 1) * B, :] + jnp.dot(h, w_hh,
                                                   preferred_element_type=f32)
            sg = jax.nn.sigmoid(g)           # full-vreg EUP op
            tg = jnp.tanh(g)                 # full-vreg EUP op
            i_g = sg[:, 0 * H:1 * H]
            f_g = sg[:, 1 * H:2 * H]
            g_g = tg[:, 2 * H:3 * H]
            o_g = sg[:, 3 * H:4 * H]
            c = f_g * c + i_g * g_g
            h = o_g * jnp.tanh(c)
            outs.append(h)
        return outs

    # ---- LSTM layer 0 (hoisted input projection) ----
    xw0 = jnp.dot(x, w_ih0_ref[...], preferred_element_type=f32) + b0_ref[...]
    outs0 = run_lstm(xw0, w_hh0_ref[...])
    for t in range(T):                       # stage layer-0 outputs as (TB, H)
        h0_sc[t * B:(t + 1) * B, :] = outs0[t]

    # ---- LSTM layer 1 (hoisted input projection over all timesteps) ----
    xw1 = jnp.dot(h0_sc[...], w_ih1_ref[...], preferred_element_type=f32) + b1_ref[...]
    outs1 = run_lstm(xw1, w_hh1_ref[...])

    # ---- head: genre query -> attention over T steps -> fc ----
    q = jnp.dot(genre_ref[...], wg_ref[...], preferred_element_type=f32) + bg_ref[...]
    scale = 1.0 / (H ** 0.5)                 # SDPA default scale = 1/sqrt(H)

    score = [jnp.sum(q * outs1[t], axis=-1, keepdims=True) * scale for t in range(T)]
    m = score[0]
    for t in range(1, T):
        m = jnp.maximum(m, score[t])
    e = [jnp.exp(score[t] - m) for t in range(T)]
    denom = e[0]
    for t in range(1, T):
        denom = denom + e[t]
    inv = 1.0 / denom                        # (B, 1)

    attn = jnp.zeros((B, H), f32)
    for t in range(T):
        attn = attn + (e[t] * inv) * outs1[t]
    last = outs1[-1]                         # (B, H)

    combined = jnp.concatenate([last, attn], axis=1)          # (B, 2H)
    out_ref[...] = (jnp.dot(combined, wfc_ref[...], preferred_element_type=f32)
                    + bfc_ref[...])


# ------------------------------ wrapper -----------------------------------
def pack_params(params):
    """One-time layout packing: transpose weights, fuse/reshape biases, cast f32."""
    H, V = HIDDEN_DIM, VOCAB_SIZE
    return {
        "emb": params["emb"].astype(jnp.float32),
        "w_ih0": params["w_ih_0"].T.astype(jnp.float32),
        "w_hh0": params["w_hh_0"].T.astype(jnp.float32),
        "b0": (params["b_ih_0"] + params["b_hh_0"]).reshape(1, 4 * H).astype(jnp.float32),
        "w_ih1": params["w_ih_1"].T.astype(jnp.float32),
        "w_hh1": params["w_hh_1"].T.astype(jnp.float32),
        "b1": (params["b_ih_1"] + params["b_hh_1"]).reshape(1, 4 * H).astype(jnp.float32),
        "w_g": params["w_g"].T.astype(jnp.float32),
        "b_g": params["b_g"].reshape(1, H).astype(jnp.float32),
        "w_fc": params["w_fc"].T.astype(jnp.float32),
        "b_fc": params["b_fc"].reshape(1, V).astype(jnp.float32),
    }


@jax.jit
def forward(seq, genre, packed):
    B, T = seq.shape
    return pl.pallas_call(
        _fused_forward_kernel,
        out_shape=jax.ShapeDtypeStruct((B, VOCAB_SIZE), jnp.float32),
        grid_spec=pltpu.PrefetchScalarGridSpec(
            num_scalar_prefetch=1,           # seq -> SMEM
            grid=(),
            in_specs=[_VMEM_SPEC] * 12,
            out_specs=_VMEM_SPEC,
            scratch_shapes=[pltpu.VMEM((T * B, HIDDEN_DIM), jnp.float32)],
        ),
    )(seq.astype(jnp.int32),
      packed["emb"],
      packed["w_ih0"], packed["w_hh0"], packed["b0"],
      packed["w_ih1"], packed["w_hh1"], packed["b1"],
      genre.astype(jnp.float32),
      packed["w_g"], packed["b_g"],
      packed["w_fc"], packed["b_fc"])


# --------------------------- pure-JAX reference ---------------------------
def _ref_lstm_layer(x_bte, w_ih, w_hh, b_ih, b_hh):
    B, T, _ = x_bte.shape
    H = w_hh.shape[1]

    def step(carry, x_t):
        h, c = carry
        gates = x_t @ w_ih.T + h @ w_hh.T + b_ih + b_hh
        i = jax.nn.sigmoid(gates[:, :H])
        f = jax.nn.sigmoid(gates[:, H:2 * H])
        g = jnp.tanh(gates[:, 2 * H:3 * H])
        o = jax.nn.sigmoid(gates[:, 3 * H:])
        c = f * c + i * g
        h = o * jnp.tanh(c)
        return (h, c), h

    init = (jnp.zeros((B, H), jnp.float32), jnp.zeros((B, H), jnp.float32))
    _, ys = lax.scan(step, init, jnp.swapaxes(x_bte, 0, 1))
    return jnp.swapaxes(ys, 0, 1)


def reference_forward(seq, genre, params):
    x = params["emb"][seq].astype(jnp.float32)
    for layer in range(NUM_LAYERS):
        x = _ref_lstm_layer(x,
                            params[f"w_ih_{layer}"], params[f"w_hh_{layer}"],
                            params[f"b_ih_{layer}"], params[f"b_hh_{layer}"])
    lstm_out = x                                                       # (B, T, H)
    q = genre.astype(jnp.float32) @ params["w_g"].T + params["b_g"]    # (B, H)
    scores = jnp.einsum("bh,bth->bt", q, lstm_out) / (HIDDEN_DIM ** 0.5)
    p = jax.nn.softmax(scores, axis=-1)
    attn = jnp.einsum("bt,bth->bh", p, lstm_out)
    combined = jnp.concatenate([lstm_out[:, -1, :], attn], axis=1)
    return combined @ params["w_fc"].T + params["b_fc"]


# --------------------------------- main -----------------------------------
def make_params(key):
    params = {}
    n_keys = 4 + 4 * NUM_LAYERS + 1
    keys = jax.random.split(key, n_keys)
    k = iter(keys)
    params["emb"] = 0.1 * jax.random.normal(next(k), (VOCAB_SIZE, EMBED_DIM), jnp.float32)
    for layer in range(NUM_LAYERS):
        in_dim = EMBED_DIM if layer == 0 else HIDDEN_DIM
        params[f"w_ih_{layer}"] = 0.1 * jax.random.normal(next(k), (4 * HIDDEN_DIM, in_dim), jnp.float32)
        params[f"w_hh_{layer}"] = 0.1 * jax.random.normal(next(k), (4 * HIDDEN_DIM, HIDDEN_DIM), jnp.float32)
        params[f"b_ih_{layer}"] = 0.1 * jax.random.normal(next(k), (4 * HIDDEN_DIM,), jnp.float32)
        params[f"b_hh_{layer}"] = 0.1 * jax.random.normal(next(k), (4 * HIDDEN_DIM,), jnp.float32)
    params["w_g"] = 0.1 * jax.random.normal(next(k), (HIDDEN_DIM, GENRE_SIZE), jnp.float32)
    params["b_g"] = 0.1 * jax.random.normal(next(k), (HIDDEN_DIM,), jnp.float32)
    params["w_fc"] = 0.1 * jax.random.normal(next(k), (VOCAB_SIZE, 2 * HIDDEN_DIM), jnp.float32)
    params["b_fc"] = 0.1 * jax.random.normal(next(k), (VOCAB_SIZE,), jnp.float32)
    return params


if __name__ == "__main__":
    root = jax.random.PRNGKey(0)
    k_params, k_seq, k_genre = jax.random.split(root, 3)

    params = make_params(k_params)
    packed = pack_params(params)                       # one-time layout packing
    seq = jax.random.randint(k_seq, (BATCH, SEQ_LEN), 0, VOCAB_SIZE, dtype=jnp.int32)
    genre = jax.random.normal(k_genre, (BATCH, GENRE_SIZE), jnp.float32)

    out = jax.block_until_ready(forward(seq, genre, packed))

    ref = jax.block_until_ready(reference_forward(seq, genre, params))
    assert out.shape == (BATCH, VOCAB_SIZE)
    assert jnp.allclose(out, ref, atol=2e-3, rtol=2e-3), "Pallas output mismatch vs reference"

    print("KERNEL_OK")
</pallas_src>

<mosaic_0001>
module attributes {stable_mosaic.version = 11 : i64} {
  func.func @_fused_forward_kernel(%arg0: memref<2x8xi32, #tpu.memory_space<smem>>, %arg1: memref<64x16xf32, #tpu.memory_space<vmem>>, %arg2: memref<16x128xf32, #tpu.memory_space<vmem>>, %arg3: memref<32x128xf32, #tpu.memory_space<vmem>>, %arg4: memref<1x128xf32, #tpu.memory_space<vmem>>, %arg5: memref<32x128xf32, #tpu.memory_space<vmem>>, %arg6: memref<32x128xf32, #tpu.memory_space<vmem>>, %arg7: memref<1x128xf32, #tpu.memory_space<vmem>>, %arg8: memref<2x4xf32, #tpu.memory_space<vmem>>, %arg9: memref<4x32xf32, #tpu.memory_space<vmem>>, %arg10: memref<1x32xf32, #tpu.memory_space<vmem>>, %arg11: memref<64x64xf32, #tpu.memory_space<vmem>>, %arg12: memref<1x64xf32, #tpu.memory_space<vmem>>, %arg13: memref<2x64xf32, #tpu.memory_space<vmem>>, %arg14: memref<16x32xf32, #tpu.memory_space<vmem>>) attributes {dimension_semantics = [], scalar_prefetch = 1 : i64, scratch_operands = 1 : i64, tpu.core_type = #tpu.core_type<tc>} {
    %0 = tpu.iota {dimensions = array<i32: 0>} : vector<16x1xi32>
    %c0_i32 = arith.constant 0 : i32
    %1 = vector.broadcast %c0_i32 : i32 to vector<16x1xi32>
    %c0_i32_0 = arith.constant 0 : i32
    %2 = vector.broadcast %c0_i32_0 : i32 to vector<16x1xi32>
    %3 = arith.cmpi eq, %0, %2 : vector<16x1xi32>
    %c0 = arith.constant 0 : index
    %c0_1 = arith.constant 0 : index
    %4 = memref.load %arg0[%c0, %c0_1] : memref<2x8xi32, #tpu.memory_space<smem>>
    %5 = vector.broadcast %4 : i32 to vector<16x1xi32>
    %6 = arith.select %3, %5, %1 : vector<16x1xi1>, vector<16x1xi32>
    %c1_i32 = arith.constant 1 : i32
    %7 = vector.broadcast %c1_i32 : i32 to vector<16x1xi32>
    %8 = arith.cmpi eq, %0, %7 : vector<16x1xi32>
    %c1 = arith.constant 1 : index
    %c0_2 = arith.constant 0 : index
    %9 = memref.load %arg0[%c1, %c0_2] : memref<2x8xi32, #tpu.memory_space<smem>>
    %10 = vector.broadcast %9 : i32 to vector<16x1xi32>
    %11 = arith.select %8, %10, %6 : vector<16x1xi1>, vector<16x1xi32>
    %c2_i32 = arith.constant 2 : i32
    %12 = vector.broadcast %c2_i32 : i32 to vector<16x1xi32>
    %13 = arith.cmpi eq, %0, %12 : vector<16x1xi32>
    %c0_3 = arith.constant 0 : index
    %c1_4 = arith.constant 1 : index
    %14 = memref.load %arg0[%c0_3, %c1_4] : memref<2x8xi32, #tpu.memory_space<smem>>
    %15 = vector.broadcast %14 : i32 to vector<16x1xi32>
    %16 = arith.select %13, %15, %11 : vector<16x1xi1>, vector<16x1xi32>
    %c3_i32 = arith.constant 3 : i32
    %17 = vector.broadcast %c3_i32 : i32 to vector<16x1xi32>
    %18 = arith.cmpi eq, %0, %17 : vector<16x1xi32>
    %c1_5 = arith.constant 1 : index
    %c1_6 = arith.constant 1 : index
    %19 = memref.load %arg0[%c1_5, %c1_6] : memref<2x8xi32, #tpu.memory_space<smem>>
    %20 = vector.broadcast %19 : i32 to vector<16x1xi32>
    %21 = arith.select %18, %20, %16 : vector<16x1xi1>, vector<16x1xi32>
    %c4_i32 = arith.constant 4 : i32
    %22 = vector.broadcast %c4_i32 : i32 to vector<16x1xi32>
    %23 = arith.cmpi eq, %0, %22 : vector<16x1xi32>
    %c0_7 = arith.constant 0 : index
    %c2 = arith.constant 2 : index
    %24 = memref.load %arg0[%c0_7, %c2] : memref<2x8xi32, #tpu.memory_space<smem>>
    %25 = vector.broadcast %24 : i32 to vector<16x1xi32>
    %26 = arith.select %23, %25, %21 : vector<16x1xi1>, vector<16x1xi32>
    %c5_i32 = arith.constant 5 : i32
    %27 = vector.broadcast %c5_i32 : i32 to vector<16x1xi32>
    %28 = arith.cmpi eq, %0, %27 : vector<16x1xi32>
    %c1_8 = arith.constant 1 : index
    %c2_9 = arith.constant 2 : index
    %29 = memref.load %arg0[%c1_8, %c2_9] : memref<2x8xi32, #tpu.memory_space<smem>>
    %30 = vector.broadcast %29 : i32 to vector<16x1xi32>
    %31 = arith.select %28, %30, %26 : vector<16x1xi1>, vector<16x1xi32>
    %c6_i32 = arith.constant 6 : i32
    %32 = vector.broadcast %c6_i32 : i32 to vector<16x1xi32>
    %33 = arith.cmpi eq, %0, %32 : vector<16x1xi32>
    %c0_10 = arith.constant 0 : index
    %c3 = arith.constant 3 : index
    %34 = memref.load %arg0[%c0_10, %c3] : memref<2x8xi32, #tpu.memory_space<smem>>
    %35 = vector.broadcast %34 : i32 to vector<16x1xi32>
    %36 = arith.select %33, %35, %31 : vector<16x1xi1>, vector<16x1xi32>
    %c7_i32 = arith.constant 7 : i32
    %37 = vector.broadcast %c7_i32 : i32 to vector<16x1xi32>
    %38 = arith.cmpi eq, %0, %37 : vector<16x1xi32>
    %c1_11 = arith.constant 1 : index
    %c3_12 = arith.constant 3 : index
    %39 = memref.load %arg0[%c1_11, %c3_12] : memref<2x8xi32, #tpu.memory_space<smem>>
    %40 = vector.broadcast %39 : i32 to vector<16x1xi32>
    %41 = arith.select %38, %40, %36 : vector<16x1xi1>, vector<16x1xi32>
    %c8_i32 = arith.constant 8 : i32
    %42 = vector.broadcast %c8_i32 : i32 to vector<16x1xi32>
    %43 = arith.cmpi eq, %0, %42 : vector<16x1xi32>
    %c0_13 = arith.constant 0 : index
    %c4 = arith.constant 4 : index
    %44 = memref.load %arg0[%c0_13, %c4] : memref<2x8xi32, #tpu.memory_space<smem>>
    %45 = vector.broadcast %44 : i32 to vector<16x1xi32>
    %46 = arith.select %43, %45, %41 : vector<16x1xi1>, vector<16x1xi32>
    %c9_i32 = arith.constant 9 : i32
    %47 = vector.broadcast %c9_i32 : i32 to vector<16x1xi32>
    %48 = arith.cmpi eq, %0, %47 : vector<16x1xi32>
    %c1_14 = arith.constant 1 : index
    %c4_15 = arith.constant 4 : index
    %49 = memref.load %arg0[%c1_14, %c4_15] : memref<2x8xi32, #tpu.memory_space<smem>>
    %50 = vector.broadcast %49 : i32 to vector<16x1xi32>
    %51 = arith.select %48, %50, %46 : vector<16x1xi1>, vector<16x1xi32>
    %c10_i32 = arith.constant 10 : i32
    %52 = vector.broadcast %c10_i32 : i32 to vector<16x1xi32>
    %53 = arith.cmpi eq, %0, %52 : vector<16x1xi32>
    %c0_16 = arith.constant 0 : index
    %c5 = arith.constant 5 : index
    %54 = memref.load %arg0[%c0_16, %c5] : memref<2x8xi32, #tpu.memory_space<smem>>
    %55 = vector.broadcast %54 : i32 to vector<16x1xi32>
    %56 = arith.select %53, %55, %51 : vector<16x1xi1>, vector<16x1xi32>
    %c11_i32 = arith.constant 11 : i32
    %57 = vector.broadcast %c11_i32 : i32 to vector<16x1xi32>
    %58 = arith.cmpi eq, %0, %57 : vector<16x1xi32>
    %c1_17 = arith.constant 1 : index
    %c5_18 = arith.constant 5 : index
    %59 = memref.load %arg0[%c1_17, %c5_18] : memref<2x8xi32, #tpu.memory_space<smem>>
    %60 = vector.broadcast %59 : i32 to vector<16x1xi32>
    %61 = arith.select %58, %60, %56 : vector<16x1xi1>, vector<16x1xi32>
    %c12_i32 = arith.constant 12 : i32
    %62 = vector.broadcast %c12_i32 : i32 to vector<16x1xi32>
    %63 = arith.cmpi eq, %0, %62 : vector<16x1xi32>
    %c0_19 = arith.constant 0 : index
    %c6 = arith.constant 6 : index
    %64 = memref.load %arg0[%c0_19, %c6] : memref<2x8xi32, #tpu.memory_space<smem>>
    %65 = vector.broadcast %64 : i32 to vector<16x1xi32>
    %66 = arith.select %63, %65, %61 : vector<16x1xi1>, vector<16x1xi32>
    %c13_i32 = arith.constant 13 : i32
    %67 = vector.broadcast %c13_i32 : i32 to vector<16x1xi32>
    %68 = arith.cmpi eq, %0, %67 : vector<16x1xi32>
    %c1_20 = arith.constant 1 : index
    %c6_21 = arith.constant 6 : index
    %69 = memref.load %arg0[%c1_20, %c6_21] : memref<2x8xi32, #tpu.memory_space<smem>>
    %70 = vector.broadcast %69 : i32 to vector<16x1xi32>
    %71 = arith.select %68, %70, %66 : vector<16x1xi1>, vector<16x1xi32>
    %c14_i32 = arith.constant 14 : i32
    %72 = vector.broadcast %c14_i32 : i32 to vector<16x1xi32>
    %73 = arith.cmpi eq, %0, %72 : vector<16x1xi32>
    %c0_22 = arith.constant 0 : index
    %c7 = arith.constant 7 : index
    %74 = memref.load %arg0[%c0_22, %c7] : memref<2x8xi32, #tpu.memory_space<smem>>
    %75 = vector.broadcast %74 : i32 to vector<16x1xi32>
    %76 = arith.select %73, %75, %71 : vector<16x1xi1>, vector<16x1xi32>
    %c15_i32 = arith.constant 15 : i32
    %77 = vector.broadcast %c15_i32 : i32 to vector<16x1xi32>
    %78 = arith.cmpi eq, %0, %77 : vector<16x1xi32>
    %c1_23 = arith.constant 1 : index
    %c7_24 = arith.constant 7 : index
    %79 = memref.load %arg0[%c1_23, %c7_24] : memref<2x8xi32, #tpu.memory_space<smem>>
    %80 = vector.broadcast %79 : i32 to vector<16x1xi32>
    %81 = arith.select %78, %80, %76 : vector<16x1xi1>, vector<16x1xi32>
    %82 = tpu.iota {dimensions = array<i32: 1>} : vector<16x64xi32>
    %83 = vector.broadcast %81 : vector<16x1xi32> to vector<16x64xi32>
    %84 = arith.cmpi eq, %83, %82 : vector<16x64xi32>
    %85 = arith.extui %84 : vector<16x64xi1> to vector<16x64xi32>
    %86 = arith.sitofp %85 : vector<16x64xi32> to vector<16x64xf32>
    %c0_25 = arith.constant 0 : index
    %c0_26 = arith.constant 0 : index
    %87 = vector.load %arg1[%c0_25, %c0_26] : memref<64x16xf32, #tpu.memory_space<vmem>>, vector<64x16xf32>
    %cst = arith.constant dense<0.000000e+00> : vector<16x16xf32>
    %88 = tpu.matmul %86, %87, %cst {dimension_numbers = #tpu.dot_dimension_numbers<[1], [0], [0], [1], [0, 0, 1, 1], [], []>} : vector<16x64xf32>, vector<64x16xf32>, vector<16x16xf32> -> vector<16x16xf32>
    %c0_27 = arith.constant 0 : index
    %c0_28 = arith.constant 0 : index
    %89 = vector.load %arg2[%c0_27, %c0_28] : memref<16x128xf32, #tpu.memory_space<vmem>>, vector<16x128xf32>
    %cst_29 = arith.constant dense<0.000000e+00> : vector<16x128xf32>
    %90 = tpu.matmul %88, %89, %cst_29 {dimension_numbers = #tpu.dot_dimension_numbers<[1], [0], [0], [1], [0, 0, 1, 1], [], []>} : vector<16x16xf32>, vector<16x128xf32>, vector<16x128xf32> -> vector<16x128xf32>
    %c0_30 = arith.constant 0 : index
    %c0_31 = arith.constant 0 : index
    %91 = vector.load %arg4[%c0_30, %c0_31] : memref<1x128xf32, #tpu.memory_space<vmem>>, vector<1x128xf32>
    %92 = vector.broadcast %91 : vector<1x128xf32> to vector<16x128xf32>
    %93 = arith.addf %90, %92 : vector<16x128xf32>
    %c0_32 = arith.constant 0 : index
    %c0_33 = arith.constant 0 : index
    %94 = vector.load %arg3[%c0_32, %c0_33] : memref<32x128xf32, #tpu.memory_space<vmem>>, vector<32x128xf32>
    %cst_34 = arith.constant 0.000000e+00 : f32
    %95 = vector.broadcast %cst_34 : f32 to vector<2x32xf32>
    %cst_35 = arith.constant 0.000000e+00 : f32
    %96 = vector.broadcast %cst_35 : f32 to vector<2x32xf32>
    %97 = vector.extract_strided_slice %93 {offsets = [0, 0], sizes = [2, 128], strides = [1, 1]} : vector<16x128xf32> to vector<2x128xf32>
    %cst_36 = arith.constant dense<0.000000e+00> : vector<2x128xf32>
    %98 = tpu.matmul %95, %94, %cst_36 {dimension_numbers = #tpu.dot_dimension_numbers<[1], [0], [0], [1], [0, 0, 1, 1], [], []>} : vector<2x32xf32>, vector<32x128xf32>, vector<2x128xf32> -> vector<2x128xf32>
    %99 = arith.addf %97, %98 : vector<2x128xf32>
    %100 = arith.negf %99 : vector<2x128xf32>
    %101 = math.exp %100 : vector<2x128xf32>
    %cst_37 = arith.constant 1.000000e+00 : f32
    %102 = vector.broadcast %cst_37 : f32 to vector<2x128xf32>
    %103 = arith.addf %102, %101 : vector<2x128xf32>
    %104 = arith.divf %102, %103 : vector<2x128xf32>
    %105 = math.tanh %99 : vector<2x128xf32>
    %106 = vector.extract_strided_slice %104 {offsets = [0, 0], sizes = [2, 32], strides = [1, 1]} : vector<2x128xf32> to vector<2x32xf32>
    %107 = vector.extract_strided_slice %104 {offsets = [0, 32], sizes = [2, 32], strides = [1, 1]} : vector<2x128xf32> to vector<2x32xf32>
    %108 = vector.extract_strided_slice %105 {offsets = [0, 64], sizes = [2, 32], strides = [1, 1]} : vector<2x128xf32> to vector<2x32xf32>
    %109 = vector.extract_strided_slice %104 {offsets = [0, 96], sizes = [2, 32], strides = [1, 1]} : vector<2x128xf32> to vector<2x32xf32>
    %110 = arith.mulf %107, %96 : vector<2x32xf32>
    %111 = arith.mulf %106, %108 : vector<2x32xf32>
    %112 = arith.addf %110, %111 : vector<2x32xf32>
    %113 = math.tanh %112 : vector<2x32xf32>
    %114 = arith.mulf %109, %113 : vector<2x32xf32>
    %115 = vector.extract_strided_slice %93 {offsets = [2, 0], sizes = [2, 128], strides = [1, 1]} : vector<16x128xf32> to vector<2x128xf32>
    %cst_38 = arith.constant dense<0.000000e+00> : vector<2x128xf32>
    %116 = tpu.matmul %114, %94, %cst_38 {dimension_numbers = #tpu.dot_dimension_numbers<[1], [0], [0], [1], [0, 0, 1, 1], [], []>} : vector<2x32xf32>, vector<32x128xf32>, vector<2x128xf32> -> vector<2x128xf32>
    %117 = arith.addf %115, %116 : vector<2x128xf32>
    %118 = arith.negf %117 : vector<2x128xf32>
    %119 = math.exp %118 : vector<2x128xf32>
    %cst_39 = arith.constant 1.000000e+00 : f32
    %120 = vector.broadcast %cst_39 : f32 to vector<2x128xf32>
    %121 = arith.addf %120, %119 : vector<2x128xf32>
    %122 = arith.divf %120, %121 : vector<2x128xf32>
    %123 = math.tanh %117 : vector<2x128xf32>
    %124 = vector.extract_strided_slice %122 {offsets = [0, 0], sizes = [2, 32], strides = [1, 1]} : vector<2x128xf32> to vector<2x32xf32>
    %125 = vector.extract_strided_slice %122 {offsets = [0, 32], sizes = [2, 32], strides = [1, 1]} : vector<2x128xf32> to vector<2x32xf32>
    %126 = vector.extract_strided_slice %123 {offsets = [0, 64], sizes = [2, 32], strides = [1, 1]} : vector<2x128xf32> to vector<2x32xf32>
    %127 = vector.extract_strided_slice %122 {offsets = [0, 96], sizes = [2, 32], strides = [1, 1]} : vector<2x128xf32> to vector<2x32xf32>
    %128 = arith.mulf %125, %112 : vector<2x32xf32>
    %129 = arith.mulf %124, %126 : vector<2x32xf32>
    %130 = arith.addf %128, %129 : vector<2x32xf32>
    %131 = math.tanh %130 : vector<2x32xf32>
    %132 = arith.mulf %127, %131 : vector<2x32xf32>
    %133 = vector.extract_strided_slice %93 {offsets = [4, 0], sizes = [2, 128], strides = [1, 1]} : vector<16x128xf32> to vector<2x128xf32>
    %cst_40 = arith.constant dense<0.000000e+00> : vector<2x128xf32>
    %134 = tpu.matmul %132, %94, %cst_40 {dimension_numbers = #tpu.dot_dimension_numbers<[1], [0], [0], [1], [0, 0, 1, 1], [], []>} : vector<2x32xf32>, vector<32x128xf32>, vector<2x128xf32> -> vector<2x128xf32>
    %135 = arith.addf %133, %134 : vector<2x128xf32>
    %136 = arith.negf %135 : vector<2x128xf32>
    %137 = math.exp %136 : vector<2x128xf32>
    %cst_41 = arith.constant 1.000000e+00 : f32
    %138 = vector.broadcast %cst_41 : f32 to vector<2x128xf32>
    %139 = arith.addf %138, %137 : vector<2x128xf32>
    %140 = arith.divf %138, %139 : vector<2x128xf32>
    %141 = math.tanh %135 : vector<2x128xf32>
    %142 = vector.extract_strided_slice %140 {offsets = [0, 0], sizes = [2, 32], strides = [1, 1]} : vector<2x128xf32> to vector<2x32xf32>
    %143 = vector.extract_strided_slice %140 {offsets = [0, 32], sizes = [2, 32], strides = [1, 1]} : vector<2x128xf32> to vector<2x32xf32>
    %144 = vector.extract_strided_slice %141 {offsets = [0, 64], sizes = [2, 32], strides = [1, 1]} : vector<2x128xf32> to vector<2x32xf32>
    %145 = vector.extract_strided_slice %140 {offsets = [0, 96], sizes = [2, 32], strides = [1, 1]} : vector<2x128xf32> to vector<2x32xf32>
    %146 = arith.mulf %143, %130 : vector<2x32xf32>
    %147 = arith.mulf %142, %144 : vector<2x32xf32>
    %148 = arith.addf %146, %147 : vector<2x32xf32>
    %149 = math.tanh %148 : vector<2x32xf32>
    %150 = arith.mulf %145, %149 : vector<2x32xf32>
    %151 = vector.extract_strided_slice %93 {offsets = [6, 0], sizes = [2, 128], strides = [1, 1]} : vector<16x128xf32> to vector<2x128xf32>
    %cst_42 = arith.constant dense<0.000000e+00> : vector<2x128xf32>
    %152 = tpu.matmul %150, %94, %cst_42 {dimension_numbers = #tpu.dot_dimension_numbers<[1], [0], [0], [1], [0, 0, 1, 1], [], []>} : vector<2x32xf32>, vector<32x128xf32>, vector<2x128xf32> -> vector<2x128xf32>
    %153 = arith.addf %151, %152 : vector<2x128xf32>
    %154 = arith.negf %153 : vector<2x128xf32>
    %155 = math.exp %154 : vector<2x128xf32>
    %cst_43 = arith.constant 1.000000e+00 : f32
    %156 = vector.broadcast %cst_43 : f32 to vector<2x128xf32>
    %157 = arith.addf %156, %155 : vector<2x128xf32>
    %158 = arith.divf %156, %157 : vector<2x128xf32>
    %159 = math.tanh %153 : vector<2x128xf32>
    %160 = vector.extract_strided_slice %158 {offsets = [0, 0], sizes = [2, 32], strides = [1, 1]} : vector<2x128xf32> to vector<2x32xf32>
    %161 = vector.extract_strided_slice %158 {offsets = [0, 32], sizes = [2, 32], strides = [1, 1]} : vector<2x128xf32> to vector<2x32xf32>
    %162 = vector.extract_strided_slice %159 {offsets = [0, 64], sizes = [2, 32], strides = [1, 1]} : vector<2x128xf32> to vector<2x32xf32>
    %163 = vector.extract_strided_slice %158 {offsets = [0, 96], sizes = [2, 32], strides = [1, 1]} : vector<2x128xf32> to vector<2x32xf32>
    %164 = arith.mulf %161, %148 : vector<2x32xf32>
    %165 = arith.mulf %160, %162 : vector<2x32xf32>
    %166 = arith.addf %164, %165 : vector<2x32xf32>
    %167 = math.tanh %166 : vector<2x32xf32>
    %168 = arith.mulf %163, %167 : vector<2x32xf32>
    %169 = vector.extract_strided_slice %93 {offsets = [8, 0], sizes = [2, 128], strides = [1, 1]} : vector<16x128xf32> to vector<2x128xf32>
    %cst_44 = arith.constant dense<0.000000e+00> : vector<2x128xf32>
    %170 = tpu.matmul %168, %94, %cst_44 {dimension_numbers = #tpu.dot_dimension_numbers<[1], [0], [0], [1], [0, 0, 1, 1], [], []>} : vector<2x32xf32>, vector<32x128xf32>, vector<2x128xf32> -> vector<2x128xf32>
    %171 = arith.addf %169, %170 : vector<2x128xf32>
    %172 = arith.negf %171 : vector<2x128xf32>
    %173 = math.exp %172 : vector<2x128xf32>
    %cst_45 = arith.constant 1.000000e+00 : f32
    %174 = vector.broadcast %cst_45 : f32 to vector<2x128xf32>
    %175 = arith.addf %174, %173 : vector<2x128xf32>
    %176 = arith.divf %174, %175 : vector<2x128xf32>
    %177 = math.tanh %171 : vector<2x128xf32>
    %178 = vector.extract_strided_slice %176 {offsets = [0, 0], sizes = [2, 32], strides = [1, 1]} : vector<2x128xf32> to vector<2x32xf32>
    %179 = vector.extract_strided_slice %176 {offsets = [0, 32], sizes = [2, 32], strides = [1, 1]} : vector<2x128xf32> to vector<2x32xf32>
    %180 = vector.extract_strided_slice %177 {offsets = [0, 64], sizes = [2, 32], strides = [1, 1]} : vector<2x128xf32> to vector<2x32xf32>
    %181 = vector.extract_strided_slice %176 {offsets = [0, 96], sizes = [2, 32], strides = [1, 1]} : vector<2x128xf32> to vector<2x32xf32>
    %182 = arith.mulf %179, %166 : vector<2x32xf32>
    %183 = arith.mulf %178, %180 : vector<2x32xf32>
    %184 = arith.addf %182, %183 : vector<2x32xf32>
    %185 = math.tanh %184 : vector<2x32xf32>
    %186 = arith.mulf %181, %185 : vector<2x32xf32>
    %187 = vector.extract_strided_slice %93 {offsets = [10, 0], sizes = [2, 128], strides = [1, 1]} : vector<16x128xf32> to vector<2x128xf32>
    %cst_46 = arith.constant dense<0.000000e+00> : vector<2x128xf32>
    %188 = tpu.matmul %186, %94, %cst_46 {dimension_numbers = #tpu.dot_dimension_numbers<[1], [0], [0], [1], [0, 0, 1, 1], [], []>} : vector<2x32xf32>, vector<32x128xf32>, vector<2x128xf32> -> vector<2x128xf32>
    %189 = arith.addf %187, %188 : vector<2x128xf32>
    %190 = arith.negf %189 : vector<2x128xf32>
    %191 = math.exp %190 : vector<2x128xf32>
    %cst_47 = arith.constant 1.000000e+00 : f32
    %192 = vector.broadcast %cst_47 : f32 to vector<2x128xf32>
    %193 = arith.addf %192, %191 : vector<2x128xf32>
    %194 = arith.divf %192, %193 : vector<2x128xf32>
    %195 = math.tanh %189 : vector<2x128xf32>
    %196 = vector.extract_strided_slice %194 {offsets = [0, 0], sizes = [2, 32], strides = [1, 1]} : vector<2x128xf32> to vector<2x32xf32>
    %197 = vector.extract_strided_slice %194 {offsets = [0, 32], sizes = [2, 32], strides = [1, 1]} : vector<2x128xf32> to vector<2x32xf32>
    %198 = vector.extract_strided_slice %195 {offsets = [0, 64], sizes = [2, 32], strides = [1, 1]} : vector<2x128xf32> to vector<2x32xf32>
    %199 = vector.extract_strided_slice %194 {offsets = [0, 96], sizes = [2, 32], strides = [1, 1]} : vector<2x128xf32> to vector<2x32xf32>
    %200 = arith.mulf %197, %184 : vector<2x32xf32>
    %201 = arith.mulf %196, %198 : vector<2x32xf32>
    %202 = arith.addf %200, %201 : vector<2x32xf32>
    %203 = math.tanh %202 : vector<2x32xf32>
    %204 = arith.mulf %199, %203 : vector<2x32xf32>
    %205 = vector.extract_strided_slice %93 {offsets = [12, 0], sizes = [2, 128], strides = [1, 1]} : vector<16x128xf32> to vector<2x128xf32>
    %cst_48 = arith.constant dense<0.000000e+00> : vector<2x128xf32>
    %206 = tpu.matmul %204, %94, %cst_48 {dimension_numbers = #tpu.dot_dimension_numbers<[1], [0], [0], [1], [0, 0, 1, 1], [], []>} : vector<2x32xf32>, vector<32x128xf32>, vector<2x128xf32> -> vector<2x128xf32>
    %207 = arith.addf %205, %206 : vector<2x128xf32>
    %208 = arith.negf %207 : vector<2x128xf32>
    %209 = math.exp %208 : vector<2x128xf32>
    %cst_49 = arith.constant 1.000000e+00 : f32
    %210 = vector.broadcast %cst_49 : f32 to vector<2x128xf32>
    %211 = arith.addf %210, %209 : vector<2x128xf32>
    %212 = arith.divf %210, %211 : vector<2x128xf32>
    %213 = math.tanh %207 : vector<2x128xf32>
    %214 = vector.extract_strided_slice %212 {offsets = [0, 0], sizes = [2, 32], strides = [1, 1]} : vector<2x128xf32> to vector<2x32xf32>
    %215 = vector.extract_strided_slice %212 {offsets = [0, 32], sizes = [2, 32], strides = [1, 1]} : vector<2x128xf32> to vector<2x32xf32>
    %216 = vector.extract_strided_slice %213 {offsets = [0, 64], sizes = [2, 32], strides = [1, 1]} : vector<2x128xf32> to vector<2x32xf32>
    %217 = vector.extract_strided_slice %212 {offsets = [0, 96], sizes = [2, 32], strides = [1, 1]} : vector<2x128xf32> to vector<2x32xf32>
    %218 = arith.mulf %215, %202 : vector<2x32xf32>
    %219 = arith.mulf %214, %216 : vector<2x32xf32>
    %220 = arith.addf %218, %219 : vector<2x32xf32>
    %221 = math.tanh %220 : vector<2x32xf32>
    %222 = arith.mulf %217, %221 : vector<2x32xf32>
    %223 = vector.extract_strided_slice %93 {offsets = [14, 0], sizes = [2, 128], strides = [1, 1]} : vector<16x128xf32> to vector<2x128xf32>
    %cst_50 = arith.constant dense<0.000000e+00> : vector<2x128xf32>
    %224 = tpu.matmul %222, %94, %cst_50 {dimension_numbers = #tpu.dot_dimension_numbers<[1], [0], [0], [1], [0, 0, 1, 1], [], []>} : vector<2x32xf32>, vector<32x128xf32>, vector<2x128xf32> -> vector<2x128xf32>
    %225 = arith.addf %223, %224 : vector<2x128xf32>
    %226 = arith.negf %225 : vector<2x128xf32>
    %227 = math.exp %226 : vector<2x128xf32>
    %cst_51 = arith.constant 1.000000e+00 : f32
    %228 = vector.broadcast %cst_51 : f32 to vector<2x128xf32>
    %229 = arith.addf %228, %227 : vector<2x128xf32>
    %230 = arith.divf %228, %229 : vector<2x128xf32>
    %231 = math.tanh %225 : vector<2x128xf32>
    %232 = vector.extract_strided_slice %230 {offsets = [0, 0], sizes = [2, 32], strides = [1, 1]} : vector<2x128xf32> to vector<2x32xf32>
    %233 = vector.extract_strided_slice %230 {offsets = [0, 32], sizes = [2, 32], strides = [1, 1]} : vector<2x128xf32> to vector<2x32xf32>
    %234 = vector.extract_strided_slice %231 {offsets = [0, 64], sizes = [2, 32], strides = [1, 1]} : vector<2x128xf32> to vector<2x32xf32>
    %235 = vector.extract_strided_slice %230 {offsets = [0, 96], sizes = [2, 32], strides = [1, 1]} : vector<2x128xf32> to vector<2x32xf32>
    %236 = arith.mulf %233, %220 : vector<2x32xf32>
    %237 = arith.mulf %232, %234 : vector<2x32xf32>
    %238 = arith.addf %236, %237 : vector<2x32xf32>
    %239 = math.tanh %238 : vector<2x32xf32>
    %240 = arith.mulf %235, %239 : vector<2x32xf32>
    %c0_52 = arith.constant 0 : index
    %c0_53 = arith.constant 0 : index
    %241 = vector.load %arg14[%c0_52, %c0_53] : memref<16x32xf32, #tpu.memory_space<vmem>>, vector<2x32xf32>
    tpu.vector_store %arg14[%c0_52, %c0_53], %114 {strides = array<i32>} : memref<16x32xf32, #tpu.memory_space<vmem>>, vector<2x32xf32>,
    %c2_54 = arith.constant 2 : index
    %c0_55 = arith.constant 0 : index
    %242 = vector.load %arg14[%c2_54, %c0_55] : memref<16x32xf32, #tpu.memory_space<vmem>>, vector<2x32xf32>
    tpu.vector_store %arg14[%c2_54, %c0_55], %132 {strides = array<i32>} : memref<16x32xf32, #tpu.memory_space<vmem>>, vector<2x32xf32>,
    %c4_56 = arith.constant 4 : index
    %c0_57 = arith.constant 0 : index
    %243 = vector.load %arg14[%c4_56, %c0_57] : memref<16x32xf32, #tpu.memory_space<vmem>>, vector<2x32xf32>
    tpu.vector_store %arg14[%c4_56, %c0_57], %150 {strides = array<i32>} : memref<16x32xf32, #tpu.memory_space<vmem>>, vector<2x32xf32>,
    %c6_58 = arith.constant 6 : index
    %c0_59 = arith.constant 0 : index
    %244 = vector.load %arg14[%c6_58, %c0_59] : memref<16x32xf32, #tpu.memory_space<vmem>>, vector<2x32xf32>
    tpu.vector_store %arg14[%c6_58, %c0_59], %168 {strides = array<i32>} : memref<16x32xf32, #tpu.memory_space<vmem>>, vector<2x32xf32>,
    %c8 = arith.constant 8 : index
    %c0_60 = arith.constant 0 : index
    %245 = vector.load %arg14[%c8, %c0_60] : memref<16x32xf32, #tpu.memory_space<vmem>>, vector<2x32xf32>
    tpu.vector_store %arg14[%c8, %c0_60], %186 {strides = array<i32>} : memref<16x32xf32, #tpu.memory_space<vmem>>, vector<2x32xf32>,
    %c10 = arith.constant 10 : index
    %c0_61 = arith.constant 0 : index
    %246 = vector.load %arg14[%c10, %c0_61] : memref<16x32xf32, #tpu.memory_space<vmem>>, vector<2x32xf32>
    tpu.vector_store %arg14[%c10, %c0_61], %204 {strides = array<i32>} : memref<16x32xf32, #tpu.memory_space<vmem>>, vector<2x32xf32>,
    %c12 = arith.constant 12 : index
    %c0_62 = arith.constant 0 : index
    %247 = vector.load %arg14[%c12, %c0_62] : memref<16x32xf32, #tpu.memory_space<vmem>>, vector<2x32xf32>
    tpu.vector_store %arg14[%c12, %c0_62], %222 {strides = array<i32>} : memref<16x32xf32, #tpu.memory_space<vmem>>, vector<2x32xf32>,
    %c14 = arith.constant 14 : index
    %c0_63 = arith.constant 0 : index
    %248 = vector.load %arg14[%c14, %c0_63] : memref<16x32xf32, #tpu.memory_space<vmem>>, vector<2x32xf32>
    tpu.vector_store %arg14[%c14, %c0_63], %240 {strides = array<i32>} : memref<16x32xf32, #tpu.memory_space<vmem>>, vector<2x32xf32>,
    %c0_64 = arith.constant 0 : index
    %c0_65 = arith.constant 0 : index
    %249 = vector.load %arg14[%c0_64, %c0_65] : memref<16x32xf32, #tpu.memory_space<vmem>>, vector<16x32xf32>
    %c0_66 = arith.constant 0 : index
    %c0_67 = arith.constant 0 : index
    %250 = vector.load %arg5[%c0_66, %c0_67] : memref<32x128xf32, #tpu.memory_space<vmem>>, vector<32x128xf32>
    %cst_68 = arith.constant dense<0.000000e+00> : vector<16x128xf32>
    %251 = tpu.matmul %249, %250, %cst_68 {dimension_numbers = #tpu.dot_dimension_numbers<[1], [0], [0], [1], [0, 0, 1, 1], [], []>} : vector<16x32xf32>, vector<32x128xf32>, vector<16x128xf32> -> vector<16x128xf32>
    %c0_69 = arith.constant 0 : index
    %c0_70 = arith.constant 0 : index
    %252 = vector.load %arg7[%c0_69, %c0_70] : memref<1x128xf32, #tpu.memory_space<vmem>>, vector<1x128xf32>
    %253 = vector.broadcast %252 : vector<1x128xf32> to vector<16x128xf32>
    %254 = arith.addf %251, %253 : vector<16x128xf32>
    %c0_71 = arith.constant 0 : index
    %c0_72 = arith.constant 0 : index
    %255 = vector.load %arg6[%c0_71, %c0_72] : memref<32x128xf32, #tpu.memory_space<vmem>>, vector<32x128xf32>
    %cst_73 = arith.constant 0.000000e+00 : f32
    %256 = vector.broadcast %cst_73 : f32 to vector<2x32xf32>
    %cst_74 = arith.constant 0.000000e+00 : f32
    %257 = vector.broadcast %cst_74 : f32 to vector<2x32xf32>
    %258 = vector.extract_strided_slice %254 {offsets = [0, 0], sizes = [2, 128], strides = [1, 1]} : vector<16x128xf32> to vector<2x128xf32>
    %cst_75 = arith.constant dense<0.000000e+00> : vector<2x128xf32>
    %259 = tpu.matmul %256, %255, %cst_75 {dimension_numbers = #tpu.dot_dimension_numbers<[1], [0], [0], [1], [0, 0, 1, 1], [], []>} : vector<2x32xf32>, vector<32x128xf32>, vector<2x128xf32> -> vector<2x128xf32>
    %260 = arith.addf %258, %259 : vector<2x128xf32>
    %261 = arith.negf %260 : vector<2x128xf32>
    %262 = math.exp %261 : vector<2x128xf32>
    %cst_76 = arith.constant 1.000000e+00 : f32
    %263 = vector.broadcast %cst_76 : f32 to vector<2x128xf32>
    %264 = arith.addf %263, %262 : vector<2x128xf32>
    %265 = arith.divf %263, %264 : vector<2x128xf32>
    %266 = math.tanh %260 : vector<2x128xf32>
    %267 = vector.extract_strided_slice %265 {offsets = [0, 0], sizes = [2, 32], strides = [1, 1]} : vector<2x128xf32> to vector<2x32xf32>
    %268 = vector.extract_strided_slice %265 {offsets = [0, 32], sizes = [2, 32], strides = [1, 1]} : vector<2x128xf32> to vector<2x32xf32>
    %269 = vector.extract_strided_slice %266 {offsets = [0, 64], sizes = [2, 32], strides = [1, 1]} : vector<2x128xf32> to vector<2x32xf32>
    %270 = vector.extract_strided_slice %265 {offsets = [0, 96], sizes = [2, 32], strides = [1, 1]} : vector<2x128xf32> to vector<2x32xf32>
    %271 = arith.mulf %268, %257 : vector<2x32xf32>
    %272 = arith.mulf %267, %269 : vector<2x32xf32>
    %273 = arith.addf %271, %272 : vector<2x32xf32>
    %274 = math.tanh %273 : vector<2x32xf32>
    %275 = arith.mulf %270, %274 : vector<2x32xf32>
    %276 = vector.extract_strided_slice %254 {offsets = [2, 0], sizes = [2, 128], strides = [1, 1]} : vector<16x128xf32> to vector<2x128xf32>
    %cst_77 = arith.constant dense<0.000000e+00> : vector<2x128xf32>
    %277 = tpu.matmul %275, %255, %cst_77 {dimension_numbers = #tpu.dot_dimension_numbers<[1], [0], [0], [1], [0, 0, 1, 1], [], []>} : vector<2x32xf32>, vector<32x128xf32>, vector<2x128xf32> -> vector<2x128xf32>
    %278 = arith.addf %276, %277 : vector<2x128xf32>
    %279 = arith.negf %278 : vector<2x128xf32>
    %280 = math.exp %279 : vector<2x128xf32>
    %cst_78 = arith.constant 1.000000e+00 : f32
    %281 = vector.broadcast %cst_78 : f32 to vector<2x128xf32>
    %282 = arith.addf %281, %280 : vector<2x128xf32>
    %283 = arith.divf %281, %282 : vector<2x128xf32>
    %284 = math.tanh %278 : vector<2x128xf32>
    %285 = vector.extract_strided_slice %283 {offsets = [0, 0], sizes = [2, 32], strides = [1, 1]} : vector<2x128xf32> to vector<2x32xf32>
    %286 = vector.extract_strided_slice %283 {offsets = [0, 32], sizes = [2, 32], strides = [1, 1]} : vector<2x128xf32> to vector<2x32xf32>
    %287 = vector.extract_strided_slice %284 {offsets = [0, 64], sizes = [2, 32], strides = [1, 1]} : vector<2x128xf32> to vector<2x32xf32>
    %288 = vector.extract_strided_slice %283 {offsets = [0, 96], sizes = [2, 32], strides = [1, 1]} : vector<2x128xf32> to vector<2x32xf32>
    %289 = arith.mulf %286, %273 : vector<2x32xf32>
    %290 = arith.mulf %285, %287 : vector<2x32xf32>
    %291 = arith.addf %289, %290 : vector<2x32xf32>
    %292 = math.tanh %291 : vector<2x32xf32>
    %293 = arith.mulf %288, %292 : vector<2x32xf32>
    %294 = vector.extract_strided_slice %254 {offsets = [4, 0], sizes = [2, 128], strides = [1, 1]} : vector<16x128xf32> to vector<2x128xf32>
    %cst_79 = arith.constant dense<0.000000e+00> : vector<2x128xf32>
    %295 = tpu.matmul %293, %255, %cst_79 {dimension_numbers = #tpu.dot_dimension_numbers<[1], [0], [0], [1], [0, 0, 1, 1], [], []>} : vector<2x32xf32>, vector<32x128xf32>, vector<2x128xf32> -> vector<2x128xf32>
    %296 = arith.addf %294, %295 : vector<2x128xf32>
    %297 = arith.negf %296 : vector<2x128xf32>
    %298 = math.exp %297 : vector<2x128xf32>
    %cst_80 = arith.constant 1.000000e+00 : f32
    %299 = vector.broadcast %cst_80 : f32 to vector<2x128xf32>
    %300 = arith.addf %299, %298 : vector<2x128xf32>
    %301 = arith.divf %299, %300 : vector<2x128xf32>
    %302 = math.tanh %296 : vector<2x128xf32>
    %303 = vector.extract_strided_slice %301 {offsets = [0, 0], sizes = [2, 32], strides = [1, 1]} : vector<2x128xf32> to vector<2x32xf32>
    %304 = vector.extract_strided_slice %301 {offsets = [0, 32], sizes = [2, 32], strides = [1, 1]} : vector<2x128xf32> to vector<2x32xf32>
    %305 = vector.extract_strided_slice %302 {offsets = [0, 64], sizes = [2, 32], strides = [1, 1]} : vector<2x128xf32> to vector<2x32xf32>
    %306 = vector.extract_strided_slice %301 {offsets = [0, 96], sizes = [2, 32], strides = [1, 1]} : vector<2x128xf32> to vector<2x32xf32>
    %307 = arith.mulf %304, %291 : vector<2x32xf32>
    %308 = arith.mulf %303, %305 : vector<2x32xf32>
    %309 = arith.addf %307, %308 : vector<2x32xf32>
    %310 = math.tanh %309 : vector<2x32xf32>
    %311 = arith.mulf %306, %310 : vector<2x32xf32>
    %312 = vector.extract_strided_slice %254 {offsets = [6, 0], sizes = [2, 128], strides = [1, 1]} : vector<16x128xf32> to vector<2x128xf32>
    %cst_81 = arith.constant dense<0.000000e+00> : vector<2x128xf32>
    %313 = tpu.matmul %311, %255, %cst_81 {dimension_numbers = #tpu.dot_dimension_numbers<[1], [0], [0], [1], [0, 0, 1, 1], [], []>} : vector<2x32xf32>, vector<32x128xf32>, vector<2x128xf32> -> vector<2x128xf32>
    %314 = arith.addf %312, %313 : vector<2x128xf32>
    %315 = arith.negf %314 : vector<2x128xf32>
    %316 = math.exp %315 : vector<2x128xf32>
    %cst_82 = arith.constant 1.000000e+00 : f32
    %317 = vector.broadcast %cst_82 : f32 to vector<2x128xf32>
    %318 = arith.addf %317, %316 : vector<2x128xf32>
    %319 = arith.divf %317, %318 : vector<2x128xf32>
    %320 = math.tanh %314 : vector<2x128xf32>
    %321 = vector.extract_strided_slice %319 {offsets = [0, 0], sizes = [2, 32], strides = [1, 1]} : vector<2x128xf32> to vector<2x32xf32>
    %322 = vector.extract_strided_slice %319 {offsets = [0, 32], sizes = [2, 32], strides = [1, 1]} : vector<2x128xf32> to vector<2x32xf32>
    %323 = vector.extract_strided_slice %320 {offsets = [0, 64], sizes = [2, 32], strides = [1, 1]} : vector<2x128xf32> to vector<2x32xf32>
    %324 = vector.extract_strided_slice %319 {offsets = [0, 96], sizes = [2, 32], strides = [1, 1]} : vector<2x128xf32> to vector<2x32xf32>
    %325 = arith.mulf %322, %309 : vector<2x32xf32>
    %326 = arith.mulf %321, %323 : vector<2x32xf32>
    %327 = arith.addf %325, %326 : vector<2x32xf32>
    %328 = math.tanh %327 : vector<2x32xf32>
    %329 = arith.mulf %324, %328 : vector<2x32xf32>
    %330 = vector.extract_strided_slice %254 {offsets = [8, 0], sizes = [2, 128], strides = [1, 1]} : vector<16x128xf32> to vector<2x128xf32>
    %cst_83 = arith.constant dense<0.000000e+00> : vector<2x128xf32>
    %331 = tpu.matmul %329, %255, %cst_83 {dimension_numbers = #tpu.dot_dimension_numbers<[1], [0], [0], [1], [0, 0, 1, 1], [], []>} : vector<2x32xf32>, vector<32x128xf32>, vector<2x128xf32> -> vector<2x128xf32>
    %332 = arith.addf %330, %331 : vector<2x128xf32>
    %333 = arith.negf %332 : vector<2x128xf32>
    %334 = math.exp %333 : vector<2x128xf32>
    %cst_84 = arith.constant 1.000000e+00 : f32
    %335 = vector.broadcast %cst_84 : f32 to vector<2x128xf32>
    %336 = arith.addf %335, %334 : vector<2x128xf32>
    %337 = arith.divf %335, %336 : vector<2x128xf32>
    %338 = math.tanh %332 : vector<2x128xf32>
    %339 = vector.extract_strided_slice %337 {offsets = [0, 0], sizes = [2, 32], strides = [1, 1]} : vector<2x128xf32> to vector<2x32xf32>
    %340 = vector.extract_strided_slice %337 {offsets = [0, 32], sizes = [2, 32], strides = [1, 1]} : vector<2x128xf32> to vector<2x32xf32>
    %341 = vector.extract_strided_slice %338 {offsets = [0, 64], sizes = [2, 32], strides = [1, 1]} : vector<2x128xf32> to vector<2x32xf32>
    %342 = vector.extract_strided_slice %337 {offsets = [0, 96], sizes = [2, 32], strides = [1, 1]} : vector<2x128xf32> to vector<2x32xf32>
    %343 = arith.mulf %340, %327 : vector<2x32xf32>
    %344 = arith.mulf %339, %341 : vector<2x32xf32>
    %345 = arith.addf %343, %344 : vector<2x32xf32>
    %346 = math.tanh %345 : vector<2x32xf32>
    %347 = arith.mulf %342, %346 : vector<2x32xf32>
    %348 = vector.extract_strided_slice %254 {offsets = [10, 0], sizes = [2, 128], strides = [1, 1]} : vector<16x128xf32> to vector<2x128xf32>
    %cst_85 = arith.constant dense<0.000000e+00> : vector<2x128xf32>
    %349 = tpu.matmul %347, %255, %cst_85 {dimension_numbers = #tpu.dot_dimension_numbers<[1], [0], [0], [1], [0, 0, 1, 1], [], []>} : vector<2x32xf32>, vector<32x128xf32>, vector<2x128xf32> -> vector<2x128xf32>
    %350 = arith.addf %348, %349 : vector<2x128xf32>
    %351 = arith.negf %350 : vector<2x128xf32>
    %352 = math.exp %351 : vector<2x128xf32>
    %cst_86 = arith.constant 1.000000e+00 : f32
    %353 = vector.broadcast %cst_86 : f32 to vector<2x128xf32>
    %354 = arith.addf %353, %352 : vector<2x128xf32>
    %355 = arith.divf %353, %354 : vector<2x128xf32>
    %356 = math.tanh %350 : vector<2x128xf32>
    %357 = vector.extract_strided_slice %355 {offsets = [0, 0], sizes = [2, 32], strides = [1, 1]} : vector<2x128xf32> to vector<2x32xf32>
    %358 = vector.extract_strided_slice %355 {offsets = [0, 32], sizes = [2, 32], strides = [1, 1]} : vector<2x128xf32> to vector<2x32xf32>
    %359 = vector.extract_strided_slice %356 {offsets = [0, 64], sizes = [2, 32], strides = [1, 1]} : vector<2x128xf32> to vector<2x32xf32>
    %360 = vector.extract_strided_slice %355 {offsets = [0, 96], sizes = [2, 32], strides = [1, 1]} : vector<2x128xf32> to vector<2x32xf32>
    %361 = arith.mulf %358, %345 : vector<2x32xf32>
    %362 = arith.mulf %357, %359 : vector<2x32xf32>
    %363 = arith.addf %361, %362 : vector<2x32xf32>
    %364 = math.tanh %363 : vector<2x32xf32>
    %365 = arith.mulf %360, %364 : vector<2x32xf32>
    %366 = vector.extract_strided_slice %254 {offsets = [12, 0], sizes = [2, 128], strides = [1, 1]} : vector<16x128xf32> to vector<2x128xf32>
    %cst_87 = arith.constant dense<0.000000e+00> : vector<2x128xf32>
    %367 = tpu.matmul %365, %255, %cst_87 {dimension_numbers = #tpu.dot_dimension_numbers<[1], [0], [0], [1], [0, 0, 1, 1], [], []>} : vector<2x32xf32>, vector<32x128xf32>, vector<2x128xf32> -> vector<2x128xf32>
    %368 = arith.addf %366, %367 : vector<2x128xf32>
    %369 = arith.negf %368 : vector<2x128xf32>
    %370 = math.exp %369 : vector<2x128xf32>
    %cst_88 = arith.constant 1.000000e+00 : f32
    %371 = vector.broadcast %cst_88 : f32 to vector<2x128xf32>
    %372 = arith.addf %371, %370 : vector<2x128xf32>
    %373 = arith.divf %371, %372 : vector<2x128xf32>
    %374 = math.tanh %368 : vector<2x128xf32>
    %375 = vector.extract_strided_slice %373 {offsets = [0, 0], sizes = [2, 32], strides = [1, 1]} : vector<2x128xf32> to vector<2x32xf32>
    %376 = vector.extract_strided_slice %373 {offsets = [0, 32], sizes = [2, 32], strides = [1, 1]} : vector<2x128xf32> to vector<2x32xf32>
    %377 = vector.extract_strided_slice %374 {offsets = [0, 64], sizes = [2, 32], strides = [1, 1]} : vector<2x128xf32> to vector<2x32xf32>
    %378 = vector.extract_strided_slice %373 {offsets = [0, 96], sizes = [2, 32], strides = [1, 1]} : vector<2x128xf32> to vector<2x32xf32>
    %379 = arith.mulf %376, %363 : vector<2x32xf32>
    %380 = arith.mulf %375, %377 : vector<2x32xf32>
    %381 = arith.addf %379, %380 : vector<2x32xf32>
    %382 = math.tanh %381 : vector<2x32xf32>
    %383 = arith.mulf %378, %382 : vector<2x32xf32>
    %384 = vector.extract_strided_slice %254 {offsets = [14, 0], sizes = [2, 128], strides = [1, 1]} : vector<16x128xf32> to vector<2x128xf32>
    %cst_89 = arith.constant dense<0.000000e+00> : vector<2x128xf32>
    %385 = tpu.matmul %383, %255, %cst_89 {dimension_numbers = #tpu.dot_dimension_numbers<[1], [0], [0], [1], [0, 0, 1, 1], [], []>} : vector<2x32xf32>, vector<32x128xf32>, vector<2x128xf32> -> vector<2x128xf32>
    %386 = arith.addf %384, %385 : vector<2x128xf32>
    %387 = arith.negf %386 : vector<2x128xf32>
    %388 = math.exp %387 : vector<2x128xf32>
    %cst_90 = arith.constant 1.000000e+00 : f32
    %389 = vector.broadcast %cst_90 : f32 to vector<2x128xf32>
    %390 = arith.addf %389, %388 : vector<2x128xf32>
    %391 = arith.divf %389, %390 : vector<2x128xf32>
    %392 = math.tanh %386 : vector<2x128xf32>
    %393 = vector.extract_strided_slice %391 {offsets = [0, 0], sizes = [2, 32], strides = [1, 1]} : vector<2x128xf32> to vector<2x32xf32>
    %394 = vector.extract_strided_slice %391 {offsets = [0, 32], sizes = [2, 32], strides = [1, 1]} : vector<2x128xf32> to vector<2x32xf32>
    %395 = vector.extract_strided_slice %392 {offsets = [0, 64], sizes = [2, 32], strides = [1, 1]} : vector<2x128xf32> to vector<2x32xf32>
    %396 = vector.extract_strided_slice %391 {offsets = [0, 96], sizes = [2, 32], strides = [1, 1]} : vector<2x128xf32> to vector<2x32xf32>
    %397 = arith.mulf %394, %381 : vector<2x32xf32>
    %398 = arith.mulf %393, %395 : vector<2x32xf32>
    %399 = arith.addf %397, %398 : vector<2x32xf32>
    %400 = math.tanh %399 : vector<2x32xf32>
    %401 = arith.mulf %396, %400 : vector<2x32xf32>
    %c0_91 = arith.constant 0 : index
    %c0_92 = arith.constant 0 : index
    %402 = vector.load %arg8[%c0_91, %c0_92] : memref<2x4xf32, #tpu.memory_space<vmem>>, vector<2x4xf32>
    %c0_93 = arith.constant 0 : index
    %c0_94 = arith.constant 0 : index
    %403 = vector.load %arg9[%c0_93, %c0_94] : memref<4x32xf32, #tpu.memory_space<vmem>>, vector<4x32xf32>
    %cst_95 = arith.constant dense<0.000000e+00> : vector<2x32xf32>
    %404 = tpu.matmul %402, %403, %cst_95 {dimension_numbers = #tpu.dot_dimension_numbers<[1], [0], [0], [1], [0, 0, 1, 1], [], []>} : vector<2x4xf32>, vector<4x32xf32>, vector<2x32xf32> -> vector<2x32xf32>
    %c0_96 = arith.constant 0 : index
    %c0_97 = arith.constant 0 : index
    %405 = vector.load %arg10[%c0_96, %c0_97] : memref<1x32xf32, #tpu.memory_space<vmem>>, vector<1x32xf32>
    %406 = vector.broadcast %405 : vector<1x32xf32> to vector<2x32xf32>
    %407 = arith.addf %404, %406 : vector<2x32xf32>
    %408 = arith.mulf %407, %275 : vector<2x32xf32>
    %cst_98 = arith.constant dense<0.000000e+00> : vector<2xf32>
    %409 = vector.multi_reduction <add>, %408, %cst_98 [1] : vector<2x32xf32> to vector<2xf32>
    %410 = vector.shape_cast %409 : vector<2xf32> to vector<2x1xf32>
    %cst_99 = arith.constant 0.176776692 : f32
    %411 = vector.broadcast %cst_99 : f32 to vector<2x1xf32>
    %412 = arith.mulf %410, %411 : vector<2x1xf32>
    %413 = arith.mulf %407, %293 : vector<2x32xf32>
    %cst_100 = arith.constant dense<0.000000e+00> : vector<2xf32>
    %414 = vector.multi_reduction <add>, %413, %cst_100 [1] : vector<2x32xf32> to vector<2xf32>
    %415 = vector.shape_cast %414 : vector<2xf32> to vector<2x1xf32>
    %cst_101 = arith.constant 0.176776692 : f32
    %416 = vector.broadcast %cst_101 : f32 to vector<2x1xf32>
    %417 = arith.mulf %415, %416 : vector<2x1xf32>
    %418 = arith.mulf %407, %311 : vector<2x32xf32>
    %cst_102 = arith.constant dense<0.000000e+00> : vector<2xf32>
    %419 = vector.multi_reduction <add>, %418, %cst_102 [1] : vector<2x32xf32> to vector<2xf32>
    %420 = vector.shape_cast %419 : vector<2xf32> to vector<2x1xf32>
    %cst_103 = arith.constant 0.176776692 : f32
    %421 = vector.broadcast %cst_103 : f32 to vector<2x1xf32>
    %422 = arith.mulf %420, %421 : vector<2x1xf32>
    %423 = arith.mulf %407, %329 : vector<2x32xf32>
    %cst_104 = arith.constant dense<0.000000e+00> : vector<2xf32>
    %424 = vector.multi_reduction <add>, %423, %cst_104 [1] : vector<2x32xf32> to vector<2xf32>
    %425 = vector.shape_cast %424 : vector<2xf32> to vector<2x1xf32>
    %cst_105 = arith.constant 0.176776692 : f32
    %426 = vector.broadcast %cst_105 : f32 to vector<2x1xf32>
    %427 = arith.mulf %425, %426 : vector<2x1xf32>
    %428 = arith.mulf %407, %347 : vector<2x32xf32>
    %cst_106 = arith.constant dense<0.000000e+00> : vector<2xf32>
    %429 = vector.multi_reduction <add>, %428, %cst_106 [1] : vector<2x32xf32> to vector<2xf32>
    %430 = vector.shape_cast %429 : vector<2xf32> to vector<2x1xf32>
    %cst_107 = arith.constant 0.176776692 : f32
    %431 = vector.broadcast %cst_107 : f32 to vector<2x1xf32>
    %432 = arith.mulf %430, %431 : vector<2x1xf32>
    %433 = arith.mulf %407, %365 : vector<2x32xf32>
    %cst_108 = arith.constant dense<0.000000e+00> : vector<2xf32>
    %434 = vector.multi_reduction <add>, %433, %cst_108 [1] : vector<2x32xf32> to vector<2xf32>
    %435 = vector.shape_cast %434 : vector<2xf32> to vector<2x1xf32>
    %cst_109 = arith.constant 0.176776692 : f32
    %436 = vector.broadcast %cst_109 : f32 to vector<2x1xf32>
    %437 = arith.mulf %435, %436 : vector<2x1xf32>
    %438 = arith.mulf %407, %383 : vector<2x32xf32>
    %cst_110 = arith.constant dense<0.000000e+00> : vector<2xf32>
    %439 = vector.multi_reduction <add>, %438, %cst_110 [1] : vector<2x32xf32> to vector<2xf32>
    %440 = vector.shape_cast %439 : vector<2xf32> to vector<2x1xf32>
    %cst_111 = arith.constant 0.176776692 : f32
    %441 = vector.broadcast %cst_111 : f32 to vector<2x1xf32>
    %442 = arith.mulf %440, %441 : vector<2x1xf32>
    %443 = arith.mulf %407, %401 : vector<2x32xf32>
    %cst_112 = arith.constant dense<0.000000e+00> : vector<2xf32>
    %444 = vector.multi_reduction <add>, %443, %cst_112 [1] : vector<2x32xf32> to vector<2xf32>
    %445 = vector.shape_cast %444 : vector<2xf32> to vector<2x1xf32>
    %cst_113 = arith.constant 0.176776692 : f32
    %446 = vector.broadcast %cst_113 : f32 to vector<2x1xf32>
    %447 = arith.mulf %445, %446 : vector<2x1xf32>
    %448 = arith.maximumf %412, %417 : vector<2x1xf32>
    %449 = arith.maximumf %448, %422 : vector<2x1xf32>
    %450 = arith.maximumf %449, %427 : vector<2x1xf32>
    %451 = arith.maximumf %450, %432 : vector<2x1xf32>
    %452 = arith.maximumf %451, %437 : vector<2x1xf32>
    %453 = arith.maximumf %452, %442 : vector<2x1xf32>
    %454 = arith.maximumf %453, %447 : vector<2x1xf32>
    %455 = arith.subf %412, %454 : vector<2x1xf32>
    %456 = math.exp %455 : vector<2x1xf32>
    %457 = arith.subf %417, %454 : vector<2x1xf32>
    %458 = math.exp %457 : vector<2x1xf32>
    %459 = arith.subf %422, %454 : vector<2x1xf32>
    %460 = math.exp %459 : vector<2x1xf32>
    %461 = arith.subf %427, %454 : vector<2x1xf32>
    %462 = math.exp %461 : vector<2x1xf32>
    %463 = arith.subf %432, %454 : vector<2x1xf32>
    %464 = math.exp %463 : vector<2x1xf32>
    %465 = arith.subf %437, %454 : vector<2x1xf32>
    %466 = math.exp %465 : vector<2x1xf32>
    %467 = arith.subf %442, %454 : vector<2x1xf32>
    %468 = math.exp %467 : vector<2x1xf32>
    %469 = arith.subf %447, %454 : vector<2x1xf32>
    %470 = math.exp %469 : vector<2x1xf32>
    %471 = arith.addf %456, %458 : vector<2x1xf32>
    %472 = arith.addf %471, %460 : vector<2x1xf32>
    %473 = arith.addf %472, %462 : vector<2x1xf32>
    %474 = arith.addf %473, %464 : vector<2x1xf32>
    %475 = arith.addf %474, %466 : vector<2x1xf32>
    %476 = arith.addf %475, %468 : vector<2x1xf32>
    %477 = arith.addf %476, %470 : vector<2x1xf32>
    %cst_114 = arith.constant 1.000000e+00 : f32
    %478 = vector.broadcast %cst_114 : f32 to vector<2x1xf32>
    %479 = arith.divf %478, %477 : vector<2x1xf32>
    %cst_115 = arith.constant 0.000000e+00 : f32
    %480 = vector.broadcast %cst_115 : f32 to vector<2x32xf32>
    %481 = arith.mulf %456, %479 : vector<2x1xf32>
    %482 = vector.broadcast %481 : vector<2x1xf32> to vector<2x32xf32>
    %483 = arith.mulf %482, %275 : vector<2x32xf32>
    %484 = arith.addf %480, %483 : vector<2x32xf32>
    %485 = arith.mulf %458, %479 : vector<2x1xf32>
    %486 = vector.broadcast %485 : vector<2x1xf32> to vector<2x32xf32>
    %487 = arith.mulf %486, %293 : vector<2x32xf32>
    %488 = arith.addf %484, %487 : vector<2x32xf32>
    %489 = arith.mulf %460, %479 : vector<2x1xf32>
    %490 = vector.broadcast %489 : vector<2x1xf32> to vector<2x32xf32>
    %491 = arith.mulf %490, %311 : vector<2x32xf32>
    %492 = arith.addf %488, %491 : vector<2x32xf32>
    %493 = arith.mulf %462, %479 : vector<2x1xf32>
    %494 = vector.broadcast %493 : vector<2x1xf32> to vector<2x32xf32>
    %495 = arith.mulf %494, %329 : vector<2x32xf32>
    %496 = arith.addf %492, %495 : vector<2x32xf32>
    %497 = arith.mulf %464, %479 : vector<2x1xf32>
    %498 = vector.broadcast %497 : vector<2x1xf32> to vector<2x32xf32>
    %499 = arith.mulf %498, %347 : vector<2x32xf32>
    %500 = arith.addf %496, %499 : vector<2x32xf32>
    %501 = arith.mulf %466, %479 : vector<2x1xf32>
    %502 = vector.broadcast %501 : vector<2x1xf32> to vector<2x32xf32>
    %503 = arith.mulf %502, %365 : vector<2x32xf32>
    %504 = arith.addf %500, %503 : vector<2x32xf32>
    %505 = arith.mulf %468, %479 : vector<2x1xf32>
    %506 = vector.broadcast %505 : vector<2x1xf32> to vector<2x32xf32>
    %507 = arith.mulf %506, %383 : vector<2x32xf32>
    %508 = arith.addf %504, %507 : vector<2x32xf32>
    %509 = arith.mulf %470, %479 : vector<2x1xf32>
    %510 = vector.broadcast %509 : vector<2x1xf32> to vector<2x32xf32>
    %511 = arith.mulf %510, %401 : vector<2x32xf32>
    %512 = arith.addf %508, %511 : vector<2x32xf32>
    %513 = tpu.concatenate %401, %512 in 1 : vector<2x32xf32>, vector<2x32xf32> -> vector<2x64xf32>
    %c0_116 = arith.constant 0 : index
    %c0_117 = arith.constant 0 : index
    %514 = vector.load %arg11[%c0_116, %c0_117] : memref<64x64xf32, #tpu.memory_space<vmem>>, vector<64x64xf32>
    %cst_118 = arith.constant dense<0.000000e+00> : vector<2x64xf32>
    %515 = tpu.matmul %513, %514, %cst_118 {dimension_numbers = #tpu.dot_dimension_numbers<[1], [0], [0], [1], [0, 0, 1, 1], [], []>} : vector<2x64xf32>, vector<64x64xf32>, vector<2x64xf32> -> vector<2x64xf32>
    %c0_119 = arith.constant 0 : index
    %c0_120 = arith.constant 0 : index
    %516 = vector.load %arg12[%c0_119, %c0_120] : memref<1x64xf32, #tpu.memory_space<vmem>>, vector<1x64xf32>
    %517 = vector.broadcast %516 : vector<1x64xf32> to vector<2x64xf32>
    %518 = arith.addf %515, %517 : vector<2x64xf32>
    %c0_121 = arith.constant 0 : index
    %c0_122 = arith.constant 0 : index
    %519 = vector.load %arg13[%c0_121, %c0_122] : memref<2x64xf32, #tpu.memory_space<vmem>>, vector<2x64xf32>
    tpu.vector_store %arg13[%c0_121, %c0_122], %518 {strides = array<i32>} : memref<2x64xf32, #tpu.memory_space<vmem>>, vector<2x64xf32>,
    return
  }
}

</mosaic_0001>

<llo_original>
// kernel: forward.1
$region0: #{forward.1}
  #allocation0 [shape = 'u32[]', space=smem, size = 0x4, offset = 0x4, fixed_abs, tag = 'smem constant byte address 0x4 - core index']
  #allocation1 [shape = 'u32[144,128]{1,0:T(1,128)}', space=vmem, size = 0x12000, scoped, tag = 'internal scratch']
  #allocation2 [shape = 'f32[16,32]{1,0:T(8,128)}', space=vmem, size = 0x2000, scoped, tag = 'scratch operand']
  #allocation3 [shape = 's32[1]{0}', space=sflag, size = 0x4, scoped, tag = 'scoped memory for forward.1']
  #allocation4 [shape = 'u8[1024]{0}', space=smem, size = 0x400, scoped, tag = 'prefetched SMEM operand 0']
  %s0 = inlined_call_operand.vmem [shape: s32[2,8], index: 0, kind: input, shape index: {}]
  %s1 = inlined_call_operand.vmem [shape: f32[64,16], index: 1, kind: input, shape index: {}]
  %s2 = inlined_call_operand.vmem [shape: f32[16,128], index: 2, kind: input, shape index: {}]
  %s3 = inlined_call_operand.vmem [shape: f32[32,128], index: 3, kind: input, shape index: {}]
  %s4 = inlined_call_operand.hbm [shape: f32[1,128], index: 4, kind: input, shape index: {}]
  %s5 = inlined_call_operand.hbm [shape: f32[32,128], index: 5, kind: input, shape index: {}]
  %s6 = inlined_call_operand.hbm [shape: f32[32,128], index: 6, kind: input, shape index: {}]
  %s7 = inlined_call_operand.hbm [shape: f32[1,128], index: 7, kind: input, shape index: {}]
  %s8 = inlined_call_operand.hbm [shape: f32[2,4], index: 8, kind: input, shape index: {}]
  %s9 = inlined_call_operand.hbm [shape: f32[4,32], index: 9, kind: input, shape index: {}]
  %s10 = inlined_call_operand.hbm [shape: f32[1,32], index: 10, kind: input, shape index: {}]
  %s11 = inlined_call_operand.vmem [shape: f32[64,64], index: 11, kind: input, shape index: {}]
  %s12 = inlined_call_operand.hbm [shape: f32[1,64], index: 12, kind: input, shape index: {}]
  %s13 = inlined_call_operand.hbm [shape: f32[2,64], index: 13, kind: output, shape index: {}]
  %s14 = sld [smem:[#allocation0]]
  $region90: #{forward.1} parent=0
    _
  %s16 = ssub.s32 1, %s14
  %s17 = scalar_select 0, %s16, %s14
  %s18 = sshll.u32 %s0, 4
  %s19 = int_to_ptr.vmem [resolvable:$true] %s18
  %21 = dma.vmem_to_smem %s19, 32, [#allocation4], [#allocation3]
  %22 = dma.done [#allocation3], 32
  %23 = sfence
  $region1: #{forward.1} parent=0
    #allocation5 [shape = 'u8[512]{0}', space=vmem, size = 0x400, scoped, tag = 'input window, operand 4, single buffered']
    #allocation6 [shape = 's32[1]{0}', space=sflag, size = 0x4, scoped, tag = 'scoped memory for forward.1']
    #allocation7 [shape = 's32[1]{0}', space=sflag, size = 0x4, scoped, tag = 'scoped memory for forward.1']
    #allocation8 [shape = 'u8[16384]{0}', space=vmem, size = 0x4000, scoped, tag = 'input window, operand 5, single buffered']
    #allocation9 [shape = 's32[1]{0}', space=sflag, size = 0x4, scoped, tag = 'scoped memory for forward.1']
    #allocation10 [shape = 'u8[16384]{0}', space=vmem, size = 0x4000, scoped, tag = 'input window, operand 6, single buffered']
    #allocation11 [shape = 'u8[512]{0}', space=vmem, size = 0x400, scoped, tag = 'input window, operand 7, single buffered']
    #allocation12 [shape = 's32[1]{0}', space=sflag, size = 0x4, scoped, tag = 'scoped memory for forward.1']
    #allocation13 [shape = 'u8[1024]{0}', space=vmem, size = 0x400, scoped, tag = 'input window, operand 8, single buffered']
    #allocation14 [shape = 'u8[2048]{0}', space=vmem, size = 0x800, scoped, tag = 'input window, operand 9, single buffered']
    #allocation15 [shape = 's32[1]{0}', space=sflag, size = 0x4, scoped, tag = 'scoped memory for forward.1']
    #allocation16 [shape = 'u8[512]{0}', space=vmem, size = 0x400, scoped, tag = 'input window, operand 10, single buffered']
    #allocation17 [shape = 'u8[512]{0}', space=vmem, size = 0x400, scoped, tag = 'input window, operand 12, single buffered']
    #allocation18 [shape = 's32[1]{0}', space=sflag, size = 0x4, scoped, tag = 'scoped memory for forward.1']
    #allocation19 [shape = 'u8[1024]{0}', space=vmem, size = 0x400, scoped, tag = 'output window, operand 0, single buffered']
    %24 = vsyncpa [#allocation6], 0
    %25 = vsyncpa [#allocation9], 0
    %26 = vsyncpa [#allocation12], 0
    %27 = vsyncpa [#allocation15], 0
    %28 = vsyncpa [#allocation18], 0
    %29 = vsyncpa [#allocation7], 0
    // Predicated region
    $region2: #{forward.1} parent=1 // pred_check
      _
    $region3: #{forward.1} parent=1 // pred_check_branch
      %31 = sbr.rel (0) target = $region5
    $region4: #{forward.1} parent=1 // pred_region
      _
    $region5: #{forward.1} parent=1 // pred_fallthru
      _
    // Predicated region
    $region6: #{forward.1} parent=1 // pred_check
      _
    $region7: #{forward.1} parent=1 // pred_check_branch
      %33 = sbr.rel (0) target = $region9
    $region8: #{forward.1} parent=1 // pred_region
      _
    $region9: #{forward.1} parent=1 // pred_fallthru
      _
    // Predicated region
    $region10: #{forward.1} parent=1 // pred_check
      _
    $region11: #{forward.1} parent=1 // pred_check_branch
      %35 = sbr.rel (0) target = $region13
    $region12: #{forward.1} parent=1 // pred_region
      _
    $region13: #{forward.1} parent=1 // pred_fallthru
      _
    // Predicated region
    $region14: #{forward.1} parent=1 // pred_check
      _
    $region15: #{forward.1} parent=1 // pred_check_branch
      %37 = sbr.rel (0) target = $region17
    $region16: #{forward.1} parent=1 // pred_region
      %s39 = ssub.s32 16, 16
      %40 = vsyncadd [#allocation6], %s39
      %s42 = sshll.u32 [#allocation5], 4
      %s43 = int_to_ptr.vmem [resolvable:$true] %s42
      %45 = dma.hbm_to_vmem [thread:$0]  %s4, 16, %s43, [#allocation6]
    $region17: #{forward.1} parent=1 // pred_fallthru
      _
    // Predicated region
    $region18: #{forward.1} parent=1 // pred_check
      _
    $region19: #{forward.1} parent=1 // pred_check_branch
      %47 = sbr.rel (0) target = $region21
    $region20: #{forward.1} parent=1 // pred_region
      %s49 = ssub.s32 512, 512
      %50 = vsyncadd [#allocation9], %s49
      %s51 = sshll.u32 [#allocation8], 4
      %s52 = int_to_ptr.vmem [resolvable:$true] %s51
      %57 = dma.hbm_to_vmem [thread:$0]  %s5, 512, %s52, [#allocation9], 128, 128, 8
    $region21: #{forward.1} parent=1 // pred_fallthru
      _
    // Predicated region
    $region22: #{forward.1} parent=1 // pred_check
      _
    $region23: #{forward.1} parent=1 // pred_check_branch
      %59 = sbr.rel (0) target = $region25
    $region24: #{forward.1} parent=1 // pred_region
      %s61 = ssub.s32 512, 512
      %62 = vsyncadd [#allocation9], %s61
      %s63 = sshll.u32 [#allocation10], 4
      %s64 = int_to_ptr.vmem [resolvable:$true] %s63
      %69 = dma.hbm_to_vmem [thread:$0]  %s6, 512, %s64, [#allocation9], 128, 128, 8
    $region25: #{forward.1} parent=1 // pred_fallthru
      _
    // Predicated region
    $region26: #{forward.1} parent=1 // pred_check
      _
    $region27: #{forward.1} parent=1 // pred_check_branch
      %71 = sbr.rel (0) target = $region29
    $region28: #{forward.1} parent=1 // pred_region
      %s73 = ssub.s32 16, 16
      %74 = vsyncadd [#allocation12], %s73
      %s76 = sshll.u32 [#allocation11], 4
      %s77 = int_to_ptr.vmem [resolvable:$true] %s76
      %79 = dma.hbm_to_vmem [thread:$0]  %s7, 16, %s77, [#allocation12]
    $region29: #{forward.1} parent=1 // pred_fallthru
      _
    // Predicated region
    $region30: #{forward.1} parent=1 // pred_check
      _
    $region31: #{forward.1} parent=1 // pred_check_branch
      %81 = sbr.rel (0) target = $region33
    $region32: #{forward.1} parent=1 // pred_region
      %s83 = ssub.s32 32, 32
      %84 = vsyncadd [#allocation12], %s83
      %s86 = sshll.u32 [#allocation13], 4
      %s87 = int_to_ptr.vmem [resolvable:$true] %s86
      %89 = dma.hbm_to_vmem [thread:$0]  %s8, 32, %s87, [#allocation12]
    $region33: #{forward.1} parent=1 // pred_fallthru
      _
    // Predicated region
    $region34: #{forward.1} parent=1 // pred_check
      _
    $region35: #{forward.1} parent=1 // pred_check_branch
      %91 = sbr.rel (0) target = $region37
    $region36: #{forward.1} parent=1 // pred_region
      %s93 = ssub.s32 64, 64
      %94 = vsyncadd [#allocation15], %s93
      %s96 = sshll.u32 [#allocation14], 4
      %s97 = int_to_ptr.vmem [resolvable:$true] %s96
      %99 = dma.hbm_to_vmem [thread:$0]  %s9, 64, %s97, [#allocation15]
    $region37: #{forward.1} parent=1 // pred_fallthru
      _
    // Predicated region
    $region38: #{forward.1} parent=1 // pred_check
      _
    $region39: #{forward.1} parent=1 // pred_check_branch
      %101 = sbr.rel (0) target = $region41
    $region40: #{forward.1} parent=1 // pred_region
      %s103 = ssub.s32 16, 16
      %104 = vsyncadd [#allocation15], %s103
      %s106 = sshll.u32 [#allocation16], 4
      %s107 = int_to_ptr.vmem [resolvable:$true] %s106
      %109 = dma.hbm_to_vmem [thread:$0]  %s10, 16, %s107, [#allocation15]
    $region41: #{forward.1} parent=1 // pred_fallthru
      _
    // Predicated region
    $region42: #{forward.1} parent=1 // pred_check
      _
    $region43: #{forward.1} parent=1 // pred_check_branch
      %111 = sbr.rel (0) target = $region45
    $region44: #{forward.1} parent=1 // pred_region
      _
    $region45: #{forward.1} parent=1 // pred_fallthru
      _
    // Predicated region
    $region46: #{forward.1} parent=1 // pred_check
      _
    $region47: #{forward.1} parent=1 // pred_check_branch
      %113 = sbr.rel (0) target = $region49
    $region48: #{forward.1} parent=1 // pred_region
      %s115 = ssub.s32 16, 16
      %116 = vsyncadd [#allocation18], %s115
      %s118 = sshll.u32 [#allocation17], 4
      %s119 = int_to_ptr.vmem [resolvable:$true] %s118
      %121 = dma.hbm_to_vmem [thread:$0]  %s12, 16, %s119, [#allocation18]
    $region49: #{forward.1} parent=1 // pred_fallthru
      _
    // Predicated region
    $region50: #{forward.1} parent=1 // pred_check
      _
    $region51: #{forward.1} parent=1 // pred_check_branch
      %123 = sbr.rel (0) target = $region53
    $region52: #{forward.1} parent=1 // pred_region
      %124 = dma.done [#allocation6], 16
    $region53: #{forward.1} parent=1 // pred_fallthru
      _
    // Predicated region
    $region54: #{forward.1} parent=1 // pred_check
      _
    $region55: #{forward.1} parent=1 // pred_check_branch
      %126 = sbr.rel (0) target = $region57
    $region56: #{forward.1} parent=1 // pred_region
      %127 = dma.done [#allocation9], 512
    $region57: #{forward.1} parent=1 // pred_fallthru
      _
    // Predicated region
    $region58: #{forward.1} parent=1 // pred_check
      _
    $region59: #{forward.1} parent=1 // pred_check_branch
      %129 = sbr.rel (0) target = $region61
    $region60: #{forward.1} parent=1 // pred_region
      %130 = dma.done [#allocation9], 512
    $region61: #{forward.1} parent=1 // pred_fallthru
      _
    // Predicated region
    $region62: #{forward.1} parent=1 // pred_check
      _
    $region63: #{forward.1} parent=1 // pred_check_branch
      %132 = sbr.rel (0) target = $region65
    $region64: #{forward.1} parent=1 // pred_region
      %133 = dma.done [#allocation12], 16
    $region65: #{forward.1} parent=1 // pred_fallthru
      _
    // Predicated region
    $region66: #{forward.1} parent=1 // pred_check
      _
    $region67: #{forward.1} parent=1 // pred_check_branch
      %135 = sbr.rel (0) target = $region69
    $region68: #{forward.1} parent=1 // pred_region
      %136 = dma.done [#allocation12], 32
    $region69: #{forward.1} parent=1 // pred_fallthru
      _
    // Predicated region
    $region70: #{forward.1} parent=1 // pred_check
      _
    $region71: #{forward.1} parent=1 // pred_check_branch
      %138 = sbr.rel (0) target = $region73
    $region72: #{forward.1} parent=1 // pred_region
      %139 = dma.done [#allocation15], 64
    $region73: #{forward.1} parent=1 // pred_fallthru
      _
    // Predicated region
    $region74: #{forward.1} parent=1 // pred_check
      _
    $region75: #{forward.1} parent=1 // pred_check_branch
      %141 = sbr.rel (0) target = $region77
    $region76: #{forward.1} parent=1 // pred_region
      %142 = dma.done [#allocation15], 16
    $region77: #{forward.1} parent=1 // pred_fallthru
      _
    // Predicated region
    $region78: #{forward.1} parent=1 // pred_check
      _
    $region79: #{forward.1} parent=1 // pred_check_branch
      %144 = sbr.rel (0) target = $region81
    $region80: #{forward.1} parent=1 // pred_region
      %145 = dma.done [#allocation18], 16
    $region81: #{forward.1} parent=1 // pred_fallthru
      _
    %v146 = vlaneseq
    %v147 = vshrl.u32 %v146, 7
    %v148 = vadd.s32 %v147, 8
    %vm149 = vcmp.eq.s32.totalorder %v147, 0
    %vm150 = vcmp.eq.s32.totalorder %v148, 0
    %s151 = sld [smem:[#allocation4]]
    %v152 = vstv %s151
    %v153 = vsel %vm149, %v152, 0
    %v154 = vsel %vm150, %v152, 0
    %vm155 = vcmp.eq.s32.totalorder %v147, 1
    %vm156 = vcmp.eq.s32.totalorder %v148, 1
    %s157 = sld [smem:[#allocation4 + $0x80]]
    %v158 = vstv %s157
    %v159 = vsel %vm155, %v158, %v153
    %v160 = vsel %vm156, %v158, %v154
    %vm161 = vcmp.eq.s32.totalorder %v147, 2
    %vm162 = vcmp.eq.s32.totalorder %v148, 2
    %s163 = sld [smem:[#allocation4 + $0x1]]
    %v164 = vstv %s163
    %v165 = vsel %vm161, %v164, %v159
    %v166 = vsel %vm162, %v164, %v160
    %vm167 = vcmp.eq.s32.totalorder %v147, 3
    %vm168 = vcmp.eq.s32.totalorder %v148, 3
    %s169 = sld [smem:[#allocation4 + $0x81]]
    %v170 = vstv %s169
    %v171 = vsel %vm167, %v170, %v165
    %v172 = vsel %vm168, %v170, %v166
    %vm173 = vcmp.eq.s32.totalorder %v147, 4
    %vm174 = vcmp.eq.s32.totalorder %v148, 4
    %s175 = sld [smem:[#allocation4 + $0x2]]
    %v176 = vstv %s175
    %v177 = vsel %vm173, %v176, %v171
    %v178 = vsel %vm174, %v176, %v172
    %vm179 = vcmp.eq.s32.totalorder %v147, 5
    %vm180 = vcmp.eq.s32.totalorder %v148, 5
    %s181 = sld [smem:[#allocation4 + $0x82]]
    %v182 = vstv %s181
    %v183 = vsel %vm179, %v182, %v177
    %v184 = vsel %vm180, %v182, %v178
    %vm185 = vcmp.eq.s32.totalorder %v147, 6
    %vm186 = vcmp.eq.s32.totalorder %v148, 6
    %s187 = sld [smem:[#allocation4 + $0x3]]
    %v188 = vstv %s187
    %v189 = vsel %vm185, %v188, %v183
    %v190 = vsel %vm186, %v188, %v184
    %vm191 = vcmp.eq.s32.totalorder %v147, 7
    %vm192 = vcmp.eq.s32.totalorder %v148, 7
    %s193 = sld [smem:[#allocation4 + $0x83]]
    %v194 = vstv %s193
    %v195 = vsel %vm191, %v194, %v189
    %v196 = vsel %vm192, %v194, %v190
    %vm197 = vcmp.eq.s32.totalorder %v147, 8
    %vm198 = vcmp.eq.s32.totalorder %v148, 8
    %s199 = sld [smem:[#allocation4 + $0x4]]
    %v200 = vstv %s199
    %v201 = vsel %vm197, %v200, %v195
    %v202 = vsel %vm198, %v200, %v196
    %vm203 = vcmp.eq.s32.totalorder %v147, 9
    %vm204 = vcmp.eq.s32.totalorder %v148, 9
    %s205 = sld [smem:[#allocation4 + $0x84]]
    %v206 = vstv %s205
    %v207 = vsel %vm203, %v206, %v201
    %v208 = vsel %vm204, %v206, %v202
    %vm209 = vcmp.eq.s32.totalorder %v147, 10
    %vm210 = vcmp.eq.s32.totalorder %v148, 10
    %s211 = sld [smem:[#allocation4 + $0x5]]
    %v212 = vstv %s211
    %v213 = vsel %vm209, %v212, %v207
    %v214 = vsel %vm210, %v212, %v208
    %vm215 = vcmp.eq.s32.totalorder %v147, 11
    %vm216 = vcmp.eq.s32.totalorder %v148, 11
    %s217 = sld [smem:[#allocation4 + $0x85]]
    %v218 = vstv %s217
    %v219 = vsel %vm215, %v218, %v213
    %v220 = vsel %vm216, %v218, %v214
    %vm221 = vcmp.eq.s32.totalorder %v147, 12
    %vm222 = vcmp.eq.s32.totalorder %v148, 12
    %s223 = sld [smem:[#allocation4 + $0x6]]
    %v224 = vstv %s223
    %v225 = vsel %vm221, %v224, %v219
    %v226 = vsel %vm222, %v224, %v220
    %vm227 = vcmp.eq.s32.totalorder %v147, 13
    %vm228 = vcmp.eq.s32.totalorder %v148, 13
    %s229 = sld [smem:[#allocation4 + $0x86]]
    %v230 = vstv %s229
    %v231 = vsel %vm227, %v230, %v225
    %v232 = vsel %vm228, %v230, %v226
    %vm233 = vcmp.eq.s32.totalorder %v147, 14
    %vm234 = vcmp.eq.s32.totalorder %v148, 14
    %s235 = sld [smem:[#allocation4 + $0x7]]
    %v236 = vstv %s235
    %v237 = vsel %vm233, %v236, %v231
    %v238 = vsel %vm234, %v236, %v232
    %vm239 = vcmp.eq.s32.totalorder %v147, 15
    %vm240 = vcmp.eq.s32.totalorder %v148, 15
    %s241 = sld [smem:[#allocation4 + $0x87]]
    %v242 = vstv %s241
    %v243 = vsel %vm239, %v242, %v237
    %v244 = vsel %vm240, %v242, %v238
    %v245 = vlaneseq
    %v246 = vand.u32 %v245, 127
    %vm247 = vcmp.eq.s32.totalorder %v243, %v246
    %vm248 = vcmp.eq.s32.totalorder %v244, %v246
    %v249 = vsel %vm247, 1, 0
    %v250 = vsel %vm248, 1, 0
    %v251 = vcvt.s32.f32 %v249
    %v252 = vcvt.s32.f32 %v250
    %v253 = vld [vmem:[%s1] sm:$0xff]
    %v254 = vld [vmem:[%s1 + $0x8] sm:$0xff]
    %v255 = vld [vmem:[%s1 + $0x10] sm:$0xff]
    %v256 = vld [vmem:[%s1 + $0x18] sm:$0xff]
    %v257 = vld [vmem:[%s1 + $0x20] sm:$0xff]
    %v258 = vld [vmem:[%s1 + $0x28] sm:$0xff]
    %v259 = vld [vmem:[%s1 + $0x30] sm:$0xff]
    %v260 = vld [vmem:[%s1 + $0x38] sm:$0xff]
    %vm261 = vcmask 523264
    %v263 = vsel %vm261, %v251, 0
    %v266 = vsel %vm261, %v252, 0
    %268 = vmatprep.subr.mxu0 0.0
    %269 = vmatpush1.msra.mxu0 %v253
    %270 = vmatprep.subr.mxu0 0.0
    %271 = vmatpush1.msra.mxu0 %v254
    %272 = vmatprep.subr.mxu0 0.0
    %273 = vmatpush1.msra.mxu0 %v255
    %274 = vmatprep.subr.mxu0 0.0
    %275 = vmatpush1.msra.mxu0 %v256
    %276 = vmatprep.subr.mxu0 0.0
    %277 = vmatpush1.msra.mxu0 %v257
    %278 = vmatprep.subr.mxu0 0.0
    %279 = vmatpush1.msra.mxu0 %v258
    %280 = vmatprep.subr.mxu0 0.0
    %281 = vmatpush1.msra.mxu0 %v259
    %282 = vmatprep.subr.mxu0 0.0
    %283 = vmatpush1.msra.mxu0 %v260
    %284 = vmatprep.subr.mxu0 0.0
    %285 = vmatpush1.msra.mxu0 0.0
    %286 = vmatprep.subr.mxu0 0.0
    %287 = vmatpush1.msra.mxu0 0.0
    %288 = vmatprep.subr.mxu0 0.0
    %289 = vmatpush1.msra.mxu0 0.0
    %290 = vmatprep.subr.mxu0 0.0
    %291 = vmatpush1.msra.mxu0 0.0
    %292 = vmatprep.subr.mxu0 0.0
    %293 = vmatpush1.msra.mxu0 0.0
    %294 = vmatprep.subr.mxu0 0.0
    %295 = vmatpush1.msra.mxu0 0.0
    %296 = vmatprep.subr.mxu0 0.0
    %297 = vmatpush1.msra.mxu0 0.0
    %298 = vmatprep.subr.mxu0 0.0
    %299 = vmatpush1.msra.mxu0 0.0
    %300 = vmatprep.subr.mxu0 0.0
    %301 = vmatpush1.msra.mxu0 0.0
    %302 = vmatprep.subr.mxu0 0.0
    %303 = vmatpush1.msra.mxu0 0.0
    %304 = vmatprep.subr.mxu0 0.0
    %305 = vmatpush1.msra.mxu0 0.0
    %306 = vmatprep.subr.mxu0 0.0
    %307 = vmatpush1.msra.mxu0 0.0
    %308 = vmatprep.subr.mxu0 0.0
    %309 = vmatpush1.msra.mxu0 0.0
    %310 = vmatprep.subr.mxu0 0.0
    %311 = vmatpush1.msra.mxu0 0.0
    %312 = vmatprep.subr.mxu0 0.0
    %313 = vmatpush1.msra.mxu0 0.0
    %314 = vmatprep.subr.mxu0 0.0
    %315 = vmatpush1.msra.mxu0 0.0
    %316 = vmatprep.subr.mxu0 0.0
    %317 = vmatpush1.msra.mxu0 0.0
    %318 = vmatprep.subr.mxu0 0.0
    %319 = vmatpush1.msra.mxu0 0.0
    %320 = vmatprep.subr.mxu0 0.0
    %321 = vmatpush1.msra.mxu0 0.0
    %322 = vmatprep.subr.mxu0 0.0
    %323 = vmatpush1.msra.mxu0 0.0
    %324 = vmatprep.subr.mxu0 0.0
    %325 = vmatpush1.msra.mxu0 0.0
    %326 = vmatprep.subr.mxu0 0.0
    %327 = vmatpush1.msra.mxu0 0.0
    %328 = vmatprep.subr.mxu0 0.0
    %329 = vmatpush1.msra.mxu0 0.0
    %330 = vmatprep.subr.mxu0 0.0
    %331 = vmatpush1.msra.mxu0 0.0
    %332 = vmatprep.mubr.f32.mxu0 0.0
    %333 = vmatmul.mubr.f32.gmra.mrb[0].mxu0 %v263
    %v334 = vpop.f32.mrb[0].mxu0
    %v335 = vadd.f32 0.0, %v334
    %v336 = vpop.f32.mrb[0].mxu0
    %337 = vmatprep.mubr.f32.mxu0 0.0
    %338 = vmatmul.mubr.f32.gmra.mrb[0].mxu0 %v266
    %v339 = vpop.f32.mrb[0].mxu0
    %v340 = vadd.f32 0.0, %v339
    %v341 = vpop.f32.mrb[0].mxu0
    %342 = vdwg.mxu0
    %v343 = vld [vmem:[%s2] sm:$0xff]
    %v344 = vld [vmem:[%s2 + $0x8] sm:$0xff]
    %v345 = vld [vmem:[#allocation5] sm:$0x1]
    %v347 = vlaneseq
    %v348 = vshrl.u32 %v347, 7
    %v349 = vsub.s32 0, %v348
    %v350 = vrot.slane %v345, %v349
    %vm352 = vcmask 130048
    %v354 = vsel %vm352, %v335, 0
    %v357 = vsel %vm352, %v340, 0
    %359 = vmatprep.subr.mxu0 0.0
    %360 = vmatpush1.msra.mxu0 %v343
    %361 = vmatprep.subr.mxu0 0.0
    %362 = vmatpush1.msra.mxu0 %v344
    %363 = vmatprep.subr.mxu0 0.0
    %364 = vmatpush1.msra.mxu0 0.0
    %365 = vmatprep.subr.mxu0 0.0
    %366 = vmatpush1.msra.mxu0 0.0
    %367 = vmatprep.subr.mxu0 0.0
    %368 = vmatpush1.msra.mxu0 0.0
    %369 = vmatprep.subr.mxu0 0.0
    %370 = vmatpush1.msra.mxu0 0.0
    %371 = vmatprep.subr.mxu0 0.0
    %372 = vmatpush1.msra.mxu0 0.0
    %373 = vmatprep.subr.mxu0 0.0
    %374 = vmatpush1.msra.mxu0 0.0
    %375 = vmatprep.subr.mxu0 0.0
    %376 = vmatpush1.msra.mxu0 0.0
    %377 = vmatprep.subr.mxu0 0.0
    %378 = vmatpush1.msra.mxu0 0.0
    %379 = vmatprep.subr.mxu0 0.0
    %380 = vmatpush1.msra.mxu0 0.0
    %381 = vmatprep.subr.mxu0 0.0
    %382 = vmatpush1.msra.mxu0 0.0
    %383 = vmatprep.subr.mxu0 0.0
    %384 = vmatpush1.msra.mxu0 0.0
    %385 = vmatprep.subr.mxu0 0.0
    %386 = vmatpush1.msra.mxu0 0.0
    %387 = vmatprep.subr.mxu0 0.0
    %388 = vmatpush1.msra.mxu0 0.0
    %389 = vmatprep.subr.mxu0 0.0
    %390 = vmatpush1.msra.mxu0 0.0
    %391 = vmatprep.subr.mxu0 0.0
    %392 = vmatpush1.msra.mxu0 0.0
    %393 = vmatprep.subr.mxu0 0.0
    %394 = vmatpush1.msra.mxu0 0.0
    %395 = vmatprep.subr.mxu0 0.0
    %396 = vmatpush1.msra.mxu0 0.0
    %397 = vmatprep.subr.mxu0 0.0
    %398 = vmatpush1.msra.mxu0 0.0
    %399 = vmatprep.subr.mxu0 0.0
    %400 = vmatpush1.msra.mxu0 0.0
    %401 = vmatprep.subr.mxu0 0.0
    %402 = vmatpush1.msra.mxu0 0.0
    %403 = vmatprep.subr.mxu0 0.0
    %404 = vmatpush1.msra.mxu0 0.0
    %405 = vmatprep.subr.mxu0 0.0
    %406 = vmatpush1.msra.mxu0 0.0
    %407 = vmatprep.subr.mxu0 0.0
    %408 = vmatpush1.msra.mxu0 0.0
    %409 = vmatprep.subr.mxu0 0.0
    %410 = vmatpush1.msra.mxu0 0.0
    %411 = vmatprep.subr.mxu0 0.0
    %412 = vmatpush1.msra.mxu0 0.0
    %413 = vmatprep.subr.mxu0 0.0
    %414 = vmatpush1.msra.mxu0 0.0
    %415 = vmatprep.subr.mxu0 0.0
    %416 = vmatpush1.msra.mxu0 0.0
    %417 = vmatprep.subr.mxu0 0.0
    %418 = vmatpush1.msra.mxu0 0.0
    %419 = vmatprep.subr.mxu0 0.0
    %420 = vmatpush1.msra.mxu0 0.0
    %421 = vmatprep.subr.mxu0 0.0
    %422 = vmatpush1.msra.mxu0 0.0
    %423 = vmatprep.mubr.f32.mxu0 0.0
    %424 = vmatmul.mubr.f32.gmra.mrb[0].mxu0 %v354
    %v425 = vpop.f32.mrb[0].mxu0
    %v426 = vadd.f32 %v350, %v425
    %v427 = vpop.f32.mrb[0].mxu0
    %428 = vmatprep.mubr.f32.mxu0 0.0
    %429 = vmatmul.mubr.f32.gmra.mrb[0].mxu0 %v357
    %v430 = vpop.f32.mrb[0].mxu0
    %v431 = vadd.f32 %v350, %v430
    %v432 = vpop.f32.mrb[0].mxu0
    %433 = vdwg.mxu0
    %v434 = vld [vmem:[%s3] sm:$0xff]
    %v435 = vld [vmem:[%s3 + $0x8] sm:$0xff]
    %v436 = vld [vmem:[%s3 + $0x10] sm:$0xff]
    %v437 = vld [vmem:[%s3 + $0x18] sm:$0xff]
    %vm438 = vcmask 261120
    %v440 = vsel %vm438, 0.0, 0
    %442 = vmatprep.subr.mxu0 0.0
    %443 = vmatpush1.msra.mxu0 %v434
    %444 = vmatprep.subr.mxu0 0.0
    %445 = vmatpush1.msra.mxu0 %v435
    %446 = vmatprep.subr.mxu0 0.0
    %447 = vmatpush1.msra.mxu0 %v436
    %448 = vmatprep.subr.mxu0 0.0
    %449 = vmatpush1.msra.mxu0 %v437
    %450 = vmatprep.subr.mxu0 0.0
    %451 = vmatpush1.msra.mxu0 0.0
    %452 = vmatprep.subr.mxu0 0.0
    %453 = vmatpush1.msra.mxu0 0.0
    %454 = vmatprep.subr.mxu0 0.0
    %455 = vmatpush1.msra.mxu0 0.0
    %456 = vmatprep.subr.mxu0 0.0
    %457 = vmatpush1.msra.mxu0 0.0
    %458 = vmatprep.subr.mxu0 0.0
    %459 = vmatpush1.msra.mxu0 0.0
    %460 = vmatprep.subr.mxu0 0.0
    %461 = vmatpush1.msra.mxu0 0.0
    %462 = vmatprep.subr.mxu0 0.0
    %463 = vmatpush1.msra.mxu0 0.0
    %464 = vmatprep.subr.mxu0 0.0
    %465 = vmatpush1.msra.mxu0 0.0
    %466 = vmatprep.subr.mxu0 0.0
    %467 = vmatpush1.msra.mxu0 0.0
    %468 = vmatprep.subr.mxu0 0.0
    %469 = vmatpush1.msra.mxu0 0.0
    %470 = vmatprep.subr.mxu0 0.0
    %471 = vmatpush1.msra.mxu0 0.0
    %472 = vmatprep.subr.mxu0 0.0
    %473 = vmatpush1.msra.mxu0 0.0
    %474 = vmatprep.subr.mxu0 0.0
    %475 = vmatpush1.msra.mxu0 0.0
    %476 = vmatprep.subr.mxu0 0.0
    %477 = vmatpush1.msra.mxu0 0.0
    %478 = vmatprep.subr.mxu0 0.0
    %479 = vmatpush1.msra.mxu0 0.0
    %480 = vmatprep.subr.mxu0 0.0
    %481 = vmatpush1.msra.mxu0 0.0
    %482 = vmatprep.subr.mxu0 0.0
    %483 = vmatpush1.msra.mxu0 0.0
    %484 = vmatprep.subr.mxu0 0.0
    %485 = vmatpush1.msra.mxu0 0.0
    %486 = vmatprep.subr.mxu0 0.0
    %487 = vmatpush1.msra.mxu0 0.0
    %488 = vmatprep.subr.mxu0 0.0
    %489 = vmatpush1.msra.mxu0 0.0
    %490 = vmatprep.subr.mxu0 0.0
    %491 = vmatpush1.msra.mxu0 0.0
    %492 = vmatprep.subr.mxu0 0.0
    %493 = vmatpush1.msra.mxu0 0.0
    %494 = vmatprep.subr.mxu0 0.0
    %495 = vmatpush1.msra.mxu0 0.0
    %496 = vmatprep.subr.mxu0 0.0
    %497 = vmatpush1.msra.mxu0 0.0
    %498 = vmatprep.subr.mxu0 0.0
    %499 = vmatpush1.msra.mxu0 0.0
    %500 = vmatprep.subr.mxu0 0.0
    %501 = vmatpush1.msra.mxu0 0.0
    %502 = vmatprep.subr.mxu0 0.0
    %503 = vmatpush1.msra.mxu0 0.0
    %504 = vmatprep.subr.mxu0 0.0
    %505 = vmatpush1.msra.mxu0 0.0
    %506 = vmatprep.mubr.f32.mxu0 0.0
    %507 = vmatmul.mubr.f32.gmra.mrb[0].mxu0 %v440
    %v508 = vpop.f32.mrb[0].mxu0
    %v509 = vadd.f32 0.0, %v508
    %v510 = vpop.f32.mrb[0].mxu0
    %511 = vdwg.mxu0
    %v512 = vadd.f32 %v426, %v509
    %v513 = vxor.u32 %v512, 2147483648
    %v514 = vmul.f32 %v513, 1.442695
    %v515 = vpow.pop %v514
    %v516 = vadd.f32 %v515, 1.0
    %v517 = vrcp.pop %v516
    %v518 = vmul.f32 1.0, %v517
    %v519 = vtanh.pop %v512
    %v520 = vmul.f32 %v518, 0.0
    %522 = vrot.lane.b32.xlu0 %v519, 64
    %v523 = vpop.permute.xlu0 %522
    %v525 = vmul.f32 %v518, %v523
    %527 = vrot.lane.b32.xlu0 %v525, 32
    %v528 = vpop.permute.xlu0 %527
    %v530 = vadd.f32 %v520, %v528
    %v531 = vtanh.pop %v530
    %533 = vrot.lane.b32.xlu0 %v531, 64
    %v534 = vpop.permute.xlu0 %533
    %v536 = vmul.f32 %v518, %v534
    %538 = vrot.lane.b32.xlu0 %v536, 32
    %v539 = vpop.permute.xlu0 %538
    %v540 = vsel %vm438, %v539, 0
    %542 = vmatprep.subr.mxu0 0.0
    %543 = vmatpush1.msra.mxu0 %v434
    %544 = vmatprep.subr.mxu0 0.0
    %545 = vmatpush1.msra.mxu0 %v435
    %546 = vmatprep.subr.mxu0 0.0
    %547 = vmatpush1.msra.mxu0 %v436
    %548 = vmatprep.subr.mxu0 0.0
    %549 = vmatpush1.msra.mxu0 %v437
    %550 = vmatprep.subr.mxu0 0.0
    %551 = vmatpush1.msra.mxu0 0.0
    %552 = vmatprep.subr.mxu0 0.0
    %553 = vmatpush1.msra.mxu0 0.0
    %554 = vmatprep.subr.mxu0 0.0
    %555 = vmatpush1.msra.mxu0 0.0
    %556 = vmatprep.subr.mxu0 0.0
    %557 = vmatpush1.msra.mxu0 0.0
    %558 = vmatprep.subr.mxu0 0.0
    %559 = vmatpush1.msra.mxu0 0.0
    %560 = vmatprep.subr.mxu0 0.0
    %561 = vmatpush1.msra.mxu0 0.0
    %562 = vmatprep.subr.mxu0 0.0
    %563 = vmatpush1.msra.mxu0 0.0
    %564 = vmatprep.subr.mxu0 0.0
    %565 = vmatpush1.msra.mxu0 0.0
    %566 = vmatprep.subr.mxu0 0.0
    %567 = vmatpush1.msra.mxu0 0.0
    %568 = vmatprep.subr.mxu0 0.0
    %569 = vmatpush1.msra.mxu0 0.0
    %570 = vmatprep.subr.mxu0 0.0
    %571 = vmatpush1.msra.mxu0 0.0
    %572 = vmatprep.subr.mxu0 0.0
    %573 = vmatpush1.msra.mxu0 0.0
    %574 = vmatprep.subr.mxu0 0.0
    %575 = vmatpush1.msra.mxu0 0.0
    %576 = vmatprep.subr.mxu0 0.0
    %577 = vmatpush1.msra.mxu0 0.0
    %578 = vmatprep.subr.mxu0 0.0
    %579 = vmatpush1.msra.mxu0 0.0
    %580 = vmatprep.subr.mxu0 0.0
    %581 = vmatpush1.msra.mxu0 0.0
    %582 = vmatprep.subr.mxu0 0.0
    %583 = vmatpush1.msra.mxu0 0.0
    %584 = vmatprep.subr.mxu0 0.0
    %585 = vmatpush1.msra.mxu0 0.0
    %586 = vmatprep.subr.mxu0 0.0
    %587 = vmatpush1.msra.mxu0 0.0
    %588 = vmatprep.subr.mxu0 0.0
    %589 = vmatpush1.msra.mxu0 0.0
    %590 = vmatprep.subr.mxu0 0.0
    %591 = vmatpush1.msra.mxu0 0.0
    %592 = vmatprep.subr.mxu0 0.0
    %593 = vmatpush1.msra.mxu0 0.0
    %594 = vmatprep.subr.mxu0 0.0
    %595 = vmatpush1.msra.mxu0 0.0
    %596 = vmatprep.subr.mxu0 0.0
    %597 = vmatpush1.msra.mxu0 0.0
    %598 = vmatprep.subr.mxu0 0.0
    %599 = vmatpush1.msra.mxu0 0.0
    %600 = vmatprep.subr.mxu0 0.0
    %601 = vmatpush1.msra.mxu0 0.0
    %602 = vmatprep.subr.mxu0 0.0
    %603 = vmatpush1.msra.mxu0 0.0
    %604 = vmatprep.subr.mxu0 0.0
    %605 = vmatpush1.msra.mxu0 0.0
    %606 = vmatprep.mubr.f32.mxu0 0.0
    %607 = vmatmul.mubr.f32.gmra.mrb[0].mxu0 %v540
    %v608 = vpop.f32.mrb[0].mxu0
    %v609 = vadd.f32 0.0, %v608
    %v610 = vpop.f32.mrb[0].mxu0
    %611 = vdwg.mxu0
    %v613 = vrot.slane %v609, 6
    %v615 = vadd.f32 %v426, %v613
    %v616 = vxor.u32 %v615, 2147483648
    %v617 = vmul.f32 %v616, 1.442695
    %v618 = vpow.pop %v617
    %v619 = vadd.f32 %v618, 1.0
    %v620 = vrcp.pop %v619
    %v621 = vmul.f32 1.0, %v620
    %v622 = vtanh.pop %v615
    %v624 = vrot.slane %v530, 6
    %v626 = vmul.f32 %v621, %v624
    %628 = vrot.lane.b32.xlu0 %v622, 64
    %v629 = vpop.permute.xlu0 %628
    %v631 = vmul.f32 %v621, %v629
    %633 = vrot.lane.b32.xlu0 %v631, 32
    %v634 = vpop.permute.xlu0 %633
    %v636 = vadd.f32 %v626, %v634
    %v637 = vtanh.pop %v636
    %639 = vrot.lane.b32.xlu0 %v637, 64
    %v640 = vpop.permute.xlu0 %639
    %v642 = vmul.f32 %v621, %v640
    %v644 = vrot.slane %v642, 2
    %645 = vrot.lane.b32.xlu0 %v644, 32
    %v646 = vpop.permute.xlu0 %645
    %v647 = vsel %vm438, %v646, 0
    %649 = vmatprep.subr.mxu0 0.0
    %650 = vmatpush1.msra.mxu0 %v434
    %651 = vmatprep.subr.mxu0 0.0
    %652 = vmatpush1.msra.mxu0 %v435
    %653 = vmatprep.subr.mxu0 0.0
    %654 = vmatpush1.msra.mxu0 %v436
    %655 = vmatprep.subr.mxu0 0.0
    %656 = vmatpush1.msra.mxu0 %v437
    %657 = vmatprep.subr.mxu0 0.0
    %658 = vmatpush1.msra.mxu0 0.0
    %659 = vmatprep.subr.mxu0 0.0
    %660 = vmatpush1.msra.mxu0 0.0
    %661 = vmatprep.subr.mxu0 0.0
    %662 = vmatpush1.msra.mxu0 0.0
    %663 = vmatprep.subr.mxu0 0.0
    %664 = vmatpush1.msra.mxu0 0.0
    %665 = vmatprep.subr.mxu0 0.0
    %666 = vmatpush1.msra.mxu0 0.0
    %667 = vmatprep.subr.mxu0 0.0
    %668 = vmatpush1.msra.mxu0 0.0
    %669 = vmatprep.subr.mxu0 0.0
    %670 = vmatpush1.msra.mxu0 0.0
    %671 = vmatprep.subr.mxu0 0.0
    %672 = vmatpush1.msra.mxu0 0.0
    %673 = vmatprep.subr.mxu0 0.0
    %674 = vmatpush1.msra.mxu0 0.0
    %675 = vmatprep.subr.mxu0 0.0
    %676 = vmatpush1.msra.mxu0 0.0
    %677 = vmatprep.subr.mxu0 0.0
    %678 = vmatpush1.msra.mxu0 0.0
    %679 = vmatprep.subr.mxu0 0.0
    %680 = vmatpush1.msra.mxu0 0.0
    %681 = vmatprep.subr.mxu0 0.0
    %682 = vmatpush1.msra.mxu0 0.0
    %683 = vmatprep.subr.mxu0 0.0
    %684 = vmatpush1.msra.mxu0 0.0
    %685 = vmatprep.subr.mxu0 0.0
    %686 = vmatpush1.msra.mxu0 0.0
    %687 = vmatprep.subr.mxu0 0.0
    %688 = vmatpush1.msra.mxu0 0.0
    %689 = vmatprep.subr.mxu0 0.0
    %690 = vmatpush1.msra.mxu0 0.0
    %691 = vmatprep.subr.mxu0 0.0
    %692 = vmatpush1.msra.mxu0 0.0
    %693 = vmatprep.subr.mxu0 0.0
    %694 = vmatpush1.msra.mxu0 0.0
    %695 = vmatprep.subr.mxu0 0.0
    %696 = vmatpush1.msra.mxu0 0.0
    %697 = vmatprep.subr.mxu0 0.0
    %698 = vmatpush1.msra.mxu0 0.0
    %699 = vmatprep.subr.mxu0 0.0
    %700 = vmatpush1.msra.mxu0 0.0
    %701 = vmatprep.subr.mxu0 0.0
    %702 = vmatpush1.msra.mxu0 0.0
    %703 = vmatprep.subr.mxu0 0.0
    %704 = vmatpush1.msra.mxu0 0.0
    %705 = vmatprep.subr.mxu0 0.0
    %706 = vmatpush1.msra.mxu0 0.0
    %707 = vmatprep.subr.mxu0 0.0
    %708 = vmatpush1.msra.mxu0 0.0
    %709 = vmatprep.subr.mxu0 0.0
    %710 = vmatpush1.msra.mxu0 0.0
    %711 = vmatprep.subr.mxu0 0.0
    %712 = vmatpush1.msra.mxu0 0.0
    %713 = vmatprep.mubr.f32.mxu0 0.0
    %714 = vmatmul.mubr.f32.gmra.mrb[0].mxu0 %v647
    %v715 = vpop.f32.mrb[0].mxu0
    %v716 = vadd.f32 0.0, %v715
    %v717 = vpop.f32.mrb[0].mxu0
    %718 = vdwg.mxu0
    %v720 = vrot.slane %v716, 4
    %v722 = vadd.f32 %v426, %v720
    %v723 = vxor.u32 %v722, 2147483648
    %v724 = vmul.f32 %v723, 1.442695
    %v725 = vpow.pop %v724
    %v726 = vadd.f32 %v725, 1.0
    %v727 = vrcp.pop %v726
    %v728 = vmul.f32 1.0, %v727
    %v729 = vtanh.pop %v722
    %v731 = vrot.slane %v636, 6
    %v733 = vmul.f32 %v728, %v731
    %735 = vrot.lane.b32.xlu0 %v729, 64
    %v736 = vpop.permute.xlu0 %735
    %v738 = vmul.f32 %v728, %v736
    %740 = vrot.lane.b32.xlu0 %v738, 32
    %v741 = vpop.permute.xlu0 %740
    %v743 = vadd.f32 %v733, %v741
    %v744 = vtanh.pop %v743
    %746 = vrot.lane.b32.xlu0 %v744, 64
    %v747 = vpop.permute.xlu0 %746
    %v749 = vmul.f32 %v728, %v747
    %v751 = vrot.slane %v749, 4
    %752 = vrot.lane.b32.xlu0 %v751, 32
    %v753 = vpop.permute.xlu0 %752
    %v754 = vsel %vm438, %v753, 0
    %756 = vmatprep.subr.mxu0 0.0
    %757 = vmatpush1.msra.mxu0 %v434
    %758 = vmatprep.subr.mxu0 0.0
    %759 = vmatpush1.msra.mxu0 %v435
    %760 = vmatprep.subr.mxu0 0.0
    %761 = vmatpush1.msra.mxu0 %v436
    %762 = vmatprep.subr.mxu0 0.0
    %763 = vmatpush1.msra.mxu0 %v437
    %764 = vmatprep.subr.mxu0 0.0
    %765 = vmatpush1.msra.mxu0 0.0
    %766 = vmatprep.subr.mxu0 0.0
    %767 = vmatpush1.msra.mxu0 0.0
    %768 = vmatprep.subr.mxu0 0.0
    %769 = vmatpush1.msra.mxu0 0.0
    %770 = vmatprep.subr.mxu0 0.0
    %771 = vmatpush1.msra.mxu0 0.0
    %772 = vmatprep.subr.mxu0 0.0
    %773 = vmatpush1.msra.mxu0 0.0
    %774 = vmatprep.subr.mxu0 0.0
    %775 = vmatpush1.msra.mxu0 0.0
    %776 = vmatprep.subr.mxu0 0.0
    %777 = vmatpush1.msra.mxu0 0.0
    %778 = vmatprep.subr.mxu0 0.0
    %779 = vmatpush1.msra.mxu0 0.0
    %780 = vmatprep.subr.mxu0 0.0
    %781 = vmatpush1.msra.mxu0 0.0
    %782 = vmatprep.subr.mxu0 0.0
    %783 = vmatpush1.msra.mxu0 0.0
    %784 = vmatprep.subr.mxu0 0.0
    %785 = vmatpush1.msra.mxu0 0.0
    %786 = vmatprep.subr.mxu0 0.0
    %787 = vmatpush1.msra.mxu0 0.0
    %788 = vmatprep.subr.mxu0 0.0
    %789 = vmatpush1.msra.mxu0 0.0
    %790 = vmatprep.subr.mxu0 0.0
    %791 = vmatpush1.msra.mxu0 0.0
    %792 = vmatprep.subr.mxu0 0.0
    %793 = vmatpush1.msra.mxu0 0.0
    %794 = vmatprep.subr.mxu0 0.0
    %795 = vmatpush1.msra.mxu0 0.0
    %796 = vmatprep.subr.mxu0 0.0
    %797 = vmatpush1.msra.mxu0 0.0
    %798 = vmatprep.subr.mxu0 0.0
    %799 = vmatpush1.msra.mxu0 0.0
    %800 = vmatprep.subr.mxu0 0.0
    %801 = vmatpush1.msra.mxu0 0.0
    %802 = vmatprep.subr.mxu0 0.0
    %803 = vmatpush1.msra.mxu0 0.0
    %804 = vmatprep.subr.mxu0 0.0
    %805 = vmatpush1.msra.mxu0 0.0
    %806 = vmatprep.subr.mxu0 0.0
    %807 = vmatpush1.msra.mxu0 0.0
    %808 = vmatprep.subr.mxu0 0.0
    %809 = vmatpush1.msra.mxu0 0.0
    %810 = vmatprep.subr.mxu0 0.0
    %811 = vmatpush1.msra.mxu0 0.0
    %812 = vmatprep.subr.mxu0 0.0
    %813 = vmatpush1.msra.mxu0 0.0
    %814 = vmatprep.subr.mxu0 0.0
    %815 = vmatpush1.msra.mxu0 0.0
    %816 = vmatprep.subr.mxu0 0.0
    %817 = vmatpush1.msra.mxu0 0.0
    %818 = vmatprep.subr.mxu0 0.0
    %819 = vmatpush1.msra.mxu0 0.0
    %820 = vmatprep.mubr.f32.mxu0 0.0
    %821 = vmatmul.mubr.f32.gmra.mrb[0].mxu0 %v754
    %v822 = vpop.f32.mrb[0].mxu0
    %v823 = vadd.f32 0.0, %v822
    %v824 = vpop.f32.mrb[0].mxu0
    %825 = vdwg.mxu0
    %v827 = vrot.slane %v823, 2
    %v829 = vadd.f32 %v426, %v827
    %v830 = vxor.u32 %v829, 2147483648
    %v831 = vmul.f32 %v830, 1.442695
    %v832 = vpow.pop %v831
    %v833 = vadd.f32 %v832, 1.0
    %v834 = vrcp.pop %v833
    %v835 = vmul.f32 1.0, %v834
    %v836 = vtanh.pop %v829
    %v838 = vrot.slane %v743, 6
    %v840 = vmul.f32 %v835, %v838
    %842 = vrot.lane.b32.xlu0 %v836, 64
    %v843 = vpop.permute.xlu0 %842
    %v845 = vmul.f32 %v835, %v843
    %847 = vrot.lane.b32.xlu0 %v845, 32
    %v848 = vpop.permute.xlu0 %847
    %v850 = vadd.f32 %v840, %v848
    %v851 = vtanh.pop %v850
    %853 = vrot.lane.b32.xlu0 %v851, 64
    %v854 = vpop.permute.xlu0 %853
    %v856 = vmul.f32 %v835, %v854
    %v858 = vrot.slane %v856, 6
    %859 = vrot.lane.b32.xlu0 %v858, 32
    %v860 = vpop.permute.xlu0 %859
    %v861 = vsel %vm438, %v860, 0
    %863 = vmatprep.subr.mxu0 0.0
    %864 = vmatpush1.msra.mxu0 %v434
    %865 = vmatprep.subr.mxu0 0.0
    %866 = vmatpush1.msra.mxu0 %v435
    %867 = vmatprep.subr.mxu0 0.0
    %868 = vmatpush1.msra.mxu0 %v436
    %869 = vmatprep.subr.mxu0 0.0
    %870 = vmatpush1.msra.mxu0 %v437
    %871 = vmatprep.subr.mxu0 0.0
    %872 = vmatpush1.msra.mxu0 0.0
    %873 = vmatprep.subr.mxu0 0.0
    %874 = vmatpush1.msra.mxu0 0.0
    %875 = vmatprep.subr.mxu0 0.0
    %876 = vmatpush1.msra.mxu0 0.0
    %877 = vmatprep.subr.mxu0 0.0
    %878 = vmatpush1.msra.mxu0 0.0
    %879 = vmatprep.subr.mxu0 0.0
    %880 = vmatpush1.msra.mxu0 0.0
    %881 = vmatprep.subr.mxu0 0.0
    %882 = vmatpush1.msra.mxu0 0.0
    %883 = vmatprep.subr.mxu0 0.0
    %884 = vmatpush1.msra.mxu0 0.0
    %885 = vmatprep.subr.mxu0 0.0
    %886 = vmatpush1.msra.mxu0 0.0
    %887 = vmatprep.subr.mxu0 0.0
    %888 = vmatpush1.msra.mxu0 0.0
    %889 = vmatprep.subr.mxu0 0.0
    %890 = vmatpush1.msra.mxu0 0.0
    %891 = vmatprep.subr.mxu0 0.0
    %892 = vmatpush1.msra.mxu0 0.0
    %893 = vmatprep.subr.mxu0 0.0
    %894 = vmatpush1.msra.mxu0 0.0
    %895 = vmatprep.subr.mxu0 0.0
    %896 = vmatpush1.msra.mxu0 0.0
    %897 = vmatprep.subr.mxu0 0.0
    %898 = vmatpush1.msra.mxu0 0.0
    %899 = vmatprep.subr.mxu0 0.0
    %900 = vmatpush1.msra.mxu0 0.0
    %901 = vmatprep.subr.mxu0 0.0
    %902 = vmatpush1.msra.mxu0 0.0
    %903 = vmatprep.subr.mxu0 0.0
    %904 = vmatpush1.msra.mxu0 0.0
    %905 = vmatprep.subr.mxu0 0.0
    %906 = vmatpush1.msra.mxu0 0.0
    %907 = vmatprep.subr.mxu0 0.0
    %908 = vmatpush1.msra.mxu0 0.0
    %909 = vmatprep.subr.mxu0 0.0
    %910 = vmatpush1.msra.mxu0 0.0
    %911 = vmatprep.subr.mxu0 0.0
    %912 = vmatpush1.msra.mxu0 0.0
    %913 = vmatprep.subr.mxu0 0.0
    %914 = vmatpush1.msra.mxu0 0.0
    %915 = vmatprep.subr.mxu0 0.0
    %916 = vmatpush1.msra.mxu0 0.0
    %917 = vmatprep.subr.mxu0 0.0
    %918 = vmatpush1.msra.mxu0 0.0
    %919 = vmatprep.subr.mxu0 0.0
    %920 = vmatpush1.msra.mxu0 0.0
    %921 = vmatprep.subr.mxu0 0.0
    %922 = vmatpush1.msra.mxu0 0.0
    %923 = vmatprep.subr.mxu0 0.0
    %924 = vmatpush1.msra.mxu0 0.0
    %925 = vmatprep.subr.mxu0 0.0
    %926 = vmatpush1.msra.mxu0 0.0
    %927 = vmatprep.mubr.f32.mxu0 0.0
    %928 = vmatmul.mubr.f32.gmra.mrb[0].mxu0 %v861
    %v929 = vpop.f32.mrb[0].mxu0
    %v930 = vadd.f32 0.0, %v929
    %v931 = vpop.f32.mrb[0].mxu0
    %932 = vdwg.mxu0
    %v933 = vadd.f32 %v431, %v930
    %v934 = vxor.u32 %v933, 2147483648
    %v935 = vmul.f32 %v934, 1.442695
    %v936 = vpow.pop %v935
    %v937 = vadd.f32 %v936, 1.0
    %v938 = vrcp.pop %v937
    %v939 = vmul.f32 1.0, %v938
    %v940 = vtanh.pop %v933
    %v942 = vrot.slane %v850, 6
    %v944 = vmul.f32 %v939, %v942
    %946 = vrot.lane.b32.xlu0 %v940, 64
    %v947 = vpop.permute.xlu0 %946
    %v949 = vmul.f32 %v939, %v947
    %951 = vrot.lane.b32.xlu0 %v949, 32
    %v952 = vpop.permute.xlu0 %951
    %v954 = vadd.f32 %v944, %v952
    %v955 = vtanh.pop %v954
    %957 = vrot.lane.b32.xlu0 %v955, 64
    %v958 = vpop.permute.xlu0 %957
    %v960 = vmul.f32 %v939, %v958
    %962 = vrot.lane.b32.xlu0 %v960, 32
    %v963 = vpop.permute.xlu0 %962
    %v964 = vsel %vm438, %v963, 0
    %966 = vmatprep.subr.mxu0 0.0
    %967 = vmatpush1.msra.mxu0 %v434
    %968 = vmatprep.subr.mxu0 0.0
    %969 = vmatpush1.msra.mxu0 %v435
    %970 = vmatprep.subr.mxu0 0.0
    %971 = vmatpush1.msra.mxu0 %v436
    %972 = vmatprep.subr.mxu0 0.0
    %973 = vmatpush1.msra.mxu0 %v437
    %974 = vmatprep.subr.mxu0 0.0
    %975 = vmatpush1.msra.mxu0 0.0
    %976 = vmatprep.subr.mxu0 0.0
    %977 = vmatpush1.msra.mxu0 0.0
    %978 = vmatprep.subr.mxu0 0.0
    %979 = vmatpush1.msra.mxu0 0.0
    %980 = vmatprep.subr.mxu0 0.0
    %981 = vmatpush1.msra.mxu0 0.0
    %982 = vmatprep.subr.mxu0 0.0
    %983 = vmatpush1.msra.mxu0 0.0
    %984 = vmatprep.subr.mxu0 0.0
    %985 = vmatpush1.msra.mxu0 0.0
    %986 = vmatprep.subr.mxu0 0.0
    %987 = vmatpush1.msra.mxu0 0.0
    %988 = vmatprep.subr.mxu0 0.0
    %989 = vmatpush1.msra.mxu0 0.0
    %990 = vmatprep.subr.mxu0 0.0
    %991 = vmatpush1.msra.mxu0 0.0
    %992 = vmatprep.subr.mxu0 0.0
    %993 = vmatpush1.msra.mxu0 0.0
    %994 = vmatprep.subr.mxu0 0.0
    %995 = vmatpush1.msra.mxu0 0.0
    %996 = vmatprep.subr.mxu0 0.0
    %997 = vmatpush1.msra.mxu0 0.0
    %998 = vmatprep.subr.mxu0 0.0
    %999 = vmatpush1.msra.mxu0 0.0
    %1000 = vmatprep.subr.mxu0 0.0
    %1001 = vmatpush1.msra.mxu0 0.0
    %1002 = vmatprep.subr.mxu0 0.0
    %1003 = vmatpush1.msra.mxu0 0.0
    %1004 = vmatprep.subr.mxu0 0.0
    %1005 = vmatpush1.msra.mxu0 0.0
    %1006 = vmatprep.subr.mxu0 0.0
    %1007 = vmatpush1.msra.mxu0 0.0
    %1008 = vmatprep.subr.mxu0 0.0
    %1009 = vmatpush1.msra.mxu0 0.0
    %1010 = vmatprep.subr.mxu0 0.0
    %1011 = vmatpush1.msra.mxu0 0.0
    %1012 = vmatprep.subr.mxu0 0.0
    %1013 = vmatpush1.msra.mxu0 0.0
    %1014 = vmatprep.subr.mxu0 0.0
    %1015 = vmatpush1.msra.mxu0 0.0
    %1016 = vmatprep.subr.mxu0 0.0
    %1017 = vmatpush1.msra.mxu0 0.0
    %1018 = vmatprep.subr.mxu0 0.0
    %1019 = vmatpush1.msra.mxu0 0.0
    %1020 = vmatprep.subr.mxu0 0.0
    %1021 = vmatpush1.msra.mxu0 0.0
    %1022 = vmatprep.subr.mxu0 0.0
    %1023 = vmatpush1.msra.mxu0 0.0
    %1024 = vmatprep.subr.mxu0 0.0
    %1025 = vmatpush1.msra.mxu0 0.0
    %1026 = vmatprep.subr.mxu0 0.0
    %1027 = vmatpush1.msra.mxu0 0.0
    %1028 = vmatprep.subr.mxu0 0.0
    %1029 = vmatpush1.msra.mxu0 0.0
    %1030 = vmatprep.mubr.f32.mxu0 0.0
    %1031 = vmatmul.mubr.f32.gmra.mrb[0].mxu0 %v964
    %v1032 = vpop.f32.mrb[0].mxu0
    %v1033 = vadd.f32 0.0, %v1032
    %v1034 = vpop.f32.mrb[0].mxu0
    %1035 = vdwg.mxu0
    %v1037 = vrot.slane %v1033, 6
    %v1039 = vadd.f32 %v431, %v1037
    %v1040 = vxor.u32 %v1039, 2147483648
    %v1041 = vmul.f32 %v1040, 1.442695
    %v1042 = vpow.pop %v1041
    %v1043 = vadd.f32 %v1042, 1.0
    %v1044 = vrcp.pop %v1043
    %v1045 = vmul.f32 1.0, %v1044
    %v1046 = vtanh.pop %v1039
    %v1048 = vrot.slane %v954, 6
    %v1050 = vmul.f32 %v1045, %v1048
    %1052 = vrot.lane.b32.xlu0 %v1046, 64
    %v1053 = vpop.permute.xlu0 %1052
    %v1055 = vmul.f32 %v1045, %v1053
    %1057 = vrot.lane.b32.xlu0 %v1055, 32
    %v1058 = vpop.permute.xlu0 %1057
    %v1060 = vadd.f32 %v1050, %v1058
    %v1061 = vtanh.pop %v1060
    %1063 = vrot.lane.b32.xlu0 %v1061, 64
    %v1064 = vpop.permute.xlu0 %1063
    %v1066 = vmul.f32 %v1045, %v1064
    %v1068 = vrot.slane %v1066, 2
    %1069 = vrot.lane.b32.xlu0 %v1068, 32
    %v1070 = vpop.permute.xlu0 %1069
    %v1071 = vsel %vm438, %v1070, 0
    %1073 = vmatprep.subr.mxu0 0.0
    %1074 = vmatpush1.msra.mxu0 %v434
    %1075 = vmatprep.subr.mxu0 0.0
    %1076 = vmatpush1.msra.mxu0 %v435
    %1077 = vmatprep.subr.mxu0 0.0
    %1078 = vmatpush1.msra.mxu0 %v436
    %1079 = vmatprep.subr.mxu0 0.0
    %1080 = vmatpush1.msra.mxu0 %v437
    %1081 = vmatprep.subr.mxu0 0.0
    %1082 = vmatpush1.msra.mxu0 0.0
    %1083 = vmatprep.subr.mxu0 0.0
    %1084 = vmatpush1.msra.mxu0 0.0
    %1085 = vmatprep.subr.mxu0 0.0
    %1086 = vmatpush1.msra.mxu0 0.0
    %1087 = vmatprep.subr.mxu0 0.0
    %1088 = vmatpush1.msra.mxu0 0.0
    %1089 = vmatprep.subr.mxu0 0.0
    %1090 = vmatpush1.msra.mxu0 0.0
    %1091 = vmatprep.subr.mxu0 0.0
    %1092 = vmatpush1.msra.mxu0 0.0
    %1093 = vmatprep.subr.mxu0 0.0
    %1094 = vmatpush1.msra.mxu0 0.0
    %1095 = vmatprep.subr.mxu0 0.0
    %1096 = vmatpush1.msra.mxu0 0.0
    %1097 = vmatprep.subr.mxu0 0.0
    %1098 = vmatpush1.msra.mxu0 0.0
    %1099 = vmatprep.subr.mxu0 0.0
    %1100 = vmatpush1.msra.mxu0 0.0
    %1101 = vmatprep.subr.mxu0 0.0
    %1102 = vmatpush1.msra.mxu0 0.0
    %1103 = vmatprep.subr.mxu0 0.0
    %1104 = vmatpush1.msra.mxu0 0.0
    %1105 = vmatprep.subr.mxu0 0.0
    %1106 = vmatpush1.msra.mxu0 0.0
    %1107 = vmatprep.subr.mxu0 0.0
    %1108 = vmatpush1.msra.mxu0 0.0
    %1109 = vmatprep.subr.mxu0 0.0
    %1110 = vmatpush1.msra.mxu0 0.0
    %1111 = vmatprep.subr.mxu0 0.0
    %1112 = vmatpush1.msra.mxu0 0.0
    %1113 = vmatprep.subr.mxu0 0.0
    %1114 = vmatpush1.msra.mxu0 0.0
    %1115 = vmatprep.subr.mxu0 0.0
    %1116 = vmatpush1.msra.mxu0 0.0
    %1117 = vmatprep.subr.mxu0 0.0
    %1118 = vmatpush1.msra.mxu0 0.0
    %1119 = vmatprep.subr.mxu0 0.0
    %1120 = vmatpush1.msra.mxu0 0.0
    %1121 = vmatprep.subr.mxu0 0.0
    %1122 = vmatpush1.msra.mxu0 0.0
    %1123 = vmatprep.subr.mxu0 0.0
    %1124 = vmatpush1.msra.mxu0 0.0
    %1125 = vmatprep.subr.mxu0 0.0
    %1126 = vmatpush1.msra.mxu0 0.0
    %1127 = vmatprep.subr.mxu0 0.0
    %1128 = vmatpush1.msra.mxu0 0.0
    %1129 = vmatprep.subr.mxu0 0.0
    %1130 = vmatpush1.msra.mxu0 0.0
    %1131 = vmatprep.subr.mxu0 0.0
    %1132 = vmatpush1.msra.mxu0 0.0
    %1133 = vmatprep.subr.mxu0 0.0
    %1134 = vmatpush1.msra.mxu0 0.0
    %1135 = vmatprep.subr.mxu0 0.0
    %1136 = vmatpush1.msra.mxu0 0.0
    %1137 = vmatprep.mubr.f32.mxu0 0.0
    %1138 = vmatmul.mubr.f32.gmra.mrb[0].mxu0 %v1071
    %v1139 = vpop.f32.mrb[0].mxu0
    %v1140 = vadd.f32 0.0, %v1139
    %v1141 = vpop.f32.mrb[0].mxu0
    %1142 = vdwg.mxu0
    %v1144 = vrot.slane %v1140, 4
    %v1146 = vadd.f32 %v431, %v1144
    %v1147 = vxor.u32 %v1146, 2147483648
    %v1148 = vmul.f32 %v1147, 1.442695
    %v1149 = vpow.pop %v1148
    %v1150 = vadd.f32 %v1149, 1.0
    %v1151 = vrcp.pop %v1150
    %v1152 = vmul.f32 1.0, %v1151
    %v1153 = vtanh.pop %v1146
    %v1155 = vrot.slane %v1060, 6
    %v1157 = vmul.f32 %v1152, %v1155
    %1159 = vrot.lane.b32.xlu0 %v1153, 64
    %v1160 = vpop.permute.xlu0 %1159
    %v1162 = vmul.f32 %v1152, %v1160
    %1164 = vrot.lane.b32.xlu0 %v1162, 32
    %v1165 = vpop.permute.xlu0 %1164
    %v1167 = vadd.f32 %v1157, %v1165
    %v1168 = vtanh.pop %v1167
    %1170 = vrot.lane.b32.xlu0 %v1168, 64
    %v1171 = vpop.permute.xlu0 %1170
    %v1173 = vmul.f32 %v1152, %v1171
    %v1175 = vrot.slane %v1173, 4
    %1176 = vrot.lane.b32.xlu0 %v1175, 32
    %v1177 = vpop.permute.xlu0 %1176
    %v1178 = vsel %vm438, %v1177, 0
    %1180 = vmatprep.subr.mxu0 0.0
    %1181 = vmatpush1.msra.mxu0 %v434
    %1182 = vmatprep.subr.mxu0 0.0
    %1183 = vmatpush1.msra.mxu0 %v435
    %1184 = vmatprep.subr.mxu0 0.0
    %1185 = vmatpush1.msra.mxu0 %v436
    %1186 = vmatprep.subr.mxu0 0.0
    %1187 = vmatpush1.msra.mxu0 %v437
    %1188 = vmatprep.subr.mxu0 0.0
    %1189 = vmatpush1.msra.mxu0 0.0
    %1190 = vmatprep.subr.mxu0 0.0
    %1191 = vmatpush1.msra.mxu0 0.0
    %1192 = vmatprep.subr.mxu0 0.0
    %1193 = vmatpush1.msra.mxu0 0.0
    %1194 = vmatprep.subr.mxu0 0.0
    %1195 = vmatpush1.msra.mxu0 0.0
    %1196 = vmatprep.subr.mxu0 0.0
    %1197 = vmatpush1.msra.mxu0 0.0
    %1198 = vmatprep.subr.mxu0 0.0
    %1199 = vmatpush1.msra.mxu0 0.0
    %1200 = vmatprep.subr.mxu0 0.0
    %1201 = vmatpush1.msra.mxu0 0.0
    %1202 = vmatprep.subr.mxu0 0.0
    %1203 = vmatpush1.msra.mxu0 0.0
    %1204 = vmatprep.subr.mxu0 0.0
    %1205 = vmatpush1.msra.mxu0 0.0
    %1206 = vmatprep.subr.mxu0 0.0
    %1207 = vmatpush1.msra.mxu0 0.0
    %1208 = vmatprep.subr.mxu0 0.0
    %1209 = vmatpush1.msra.mxu0 0.0
    %1210 = vmatprep.subr.mxu0 0.0
    %1211 = vmatpush1.msra.mxu0 0.0
    %1212 = vmatprep.subr.mxu0 0.0
    %1213 = vmatpush1.msra.mxu0 0.0
    %1214 = vmatprep.subr.mxu0 0.0
    %1215 = vmatpush1.msra.mxu0 0.0
    %1216 = vmatprep.subr.mxu0 0.0
    %1217 = vmatpush1.msra.mxu0 0.0
    %1218 = vmatprep.subr.mxu0 0.0
    %1219 = vmatpush1.msra.mxu0 0.0
    %1220 = vmatprep.subr.mxu0 0.0
    %1221 = vmatpush1.msra.mxu0 0.0
    %1222 = vmatprep.subr.mxu0 0.0
    %1223 = vmatpush1.msra.mxu0 0.0
    %1224 = vmatprep.subr.mxu0 0.0
    %1225 = vmatpush1.msra.mxu0 0.0
    %1226 = vmatprep.subr.mxu0 0.0
    %1227 = vmatpush1.msra.mxu0 0.0
    %1228 = vmatprep.subr.mxu0 0.0
    %1229 = vmatpush1.msra.mxu0 0.0
    %1230 = vmatprep.subr.mxu0 0.0
    %1231 = vmatpush1.msra.mxu0 0.0
    %1232 = vmatprep.subr.mxu0 0.0
    %1233 = vmatpush1.msra.mxu0 0.0
    %1234 = vmatprep.subr.mxu0 0.0
    %1235 = vmatpush1.msra.mxu0 0.0
    %1236 = vmatprep.subr.mxu0 0.0
    %1237 = vmatpush1.msra.mxu0 0.0
    %1238 = vmatprep.subr.mxu0 0.0
    %1239 = vmatpush1.msra.mxu0 0.0
    %1240 = vmatprep.subr.mxu0 0.0
    %1241 = vmatpush1.msra.mxu0 0.0
    %1242 = vmatprep.subr.mxu0 0.0
    %1243 = vmatpush1.msra.mxu0 0.0
    %1244 = vmatprep.mubr.f32.mxu0 0.0
    %1245 = vmatmul.mubr.f32.gmra.mrb[0].mxu0 %v1178
    %v1246 = vpop.f32.mrb[0].mxu0
    %v1247 = vadd.f32 0.0, %v1246
    %v1248 = vpop.f32.mrb[0].mxu0
    %1249 = vdwg.mxu0
    %v1251 = vrot.slane %v1247, 2
    %v1253 = vadd.f32 %v431, %v1251
    %v1254 = vxor.u32 %v1253, 2147483648
    %v1255 = vmul.f32 %v1254, 1.442695
    %v1256 = vpow.pop %v1255
    %v1257 = vadd.f32 %v1256, 1.0
    %v1258 = vrcp.pop %v1257
    %v1259 = vmul.f32 1.0, %v1258
    %v1260 = vtanh.pop %v1253
    %v1262 = vrot.slane %v1167, 6
    %v1264 = vmul.f32 %v1259, %v1262
    %1266 = vrot.lane.b32.xlu0 %v1260, 64
    %v1267 = vpop.permute.xlu0 %1266
    %v1269 = vmul.f32 %v1259, %v1267
    %1271 = vrot.lane.b32.xlu0 %v1269, 32
    %v1272 = vpop.permute.xlu0 %1271
    %v1274 = vadd.f32 %v1264, %v1272
    %v1275 = vtanh.pop %v1274
    %1277 = vrot.lane.b32.xlu0 %v1275, 64
    %v1278 = vpop.permute.xlu0 %1277
    %v1280 = vmul.f32 %v1259, %v1278
    %vm1282 = vcmask 254976
    %1283 = vst.msk [vmem:[#allocation2] sm:$0x3] %vm1282, %v539
    %1284 = vrot.lane.b32.xlu0 %v642, 32
    %v1285 = vpop.permute.xlu0 %1284
    %vm1287 = vcmask 257026
    %1288 = vst.msk [vmem:[#allocation2] sm:$0xc] %vm1287, %v1285
    %1289 = vrot.lane.b32.xlu0 %v749, 32
    %v1290 = vpop.permute.xlu0 %1289
    %vm1292 = vcmask 259076
    %1293 = vst.msk [vmem:[#allocation2] sm:$0x30] %vm1292, %v1290
    %1294 = vrot.lane.b32.xlu0 %v856, 32
    %v1295 = vpop.permute.xlu0 %1294
    %vm1297 = vcmask 261126
    %1298 = vst.msk [vmem:[#allocation2] sm:$0xc0] %vm1297, %v1295
    %1300 = vst.msk [vmem:[#allocation2 + $0x8] sm:$0x3] %vm1282, %v963
    %1301 = vrot.lane.b32.xlu0 %v1066, 32
    %v1302 = vpop.permute.xlu0 %1301
    %1304 = vst.msk [vmem:[#allocation2 + $0x8] sm:$0xc] %vm1287, %v1302
    %1305 = vrot.lane.b32.xlu0 %v1173, 32
    %v1306 = vpop.permute.xlu0 %1305
    %1308 = vst.msk [vmem:[#allocation2 + $0x8] sm:$0x30] %vm1292, %v1306
    %1310 = vrot.lane.b32.xlu0 %v1280, 32
    %v1311 = vpop.permute.xlu0 %1310
    %1313 = vst.msk [vmem:[#allocation2 + $0x8] sm:$0xc0] %vm1297, %v1311
    %v1314 = vld [vmem:[#allocation2] sm:$0xff]
    %v1315 = vld [vmem:[#allocation2 + $0x8] sm:$0xff]
    %v1316 = vld [vmem:[#allocation8] sm:$0xff]
    %v1317 = vld [vmem:[#allocation8 + $0x8] sm:$0xff]
    %v1318 = vld [vmem:[#allocation8 + $0x10] sm:$0xff]
    %v1319 = vld [vmem:[#allocation8 + $0x18] sm:$0xff]
    %v1320 = vld [vmem:[#allocation11] sm:$0x1]
    %v1322 = vlaneseq
    %v1323 = vshrl.u32 %v1322, 7
    %v1324 = vsub.s32 0, %v1323
    %v1325 = vrot.slane %v1320, %v1324
    %v1328 = vsel %vm438, %v1314, 0
    %v1331 = vsel %vm438, %v1315, 0
    %1333 = vmatprep.subr.mxu0 0.0
    %1334 = vmatpush1.msra.mxu0 %v1316
    %1335 = vmatprep.subr.mxu0 0.0
    %1336 = vmatpush1.msra.mxu0 %v1317
    %1337 = vmatprep.subr.mxu0 0.0
    %1338 = vmatpush1.msra.mxu0 %v1318
    %1339 = vmatprep.subr.mxu0 0.0
    %1340 = vmatpush1.msra.mxu0 %v1319
    %1341 = vmatprep.subr.mxu0 0.0
    %1342 = vmatpush1.msra.mxu0 0.0
    %1343 = vmatprep.subr.mxu0 0.0
    %1344 = vmatpush1.msra.mxu0 0.0
    %1345 = vmatprep.subr.mxu0 0.0
    %1346 = vmatpush1.msra.mxu0 0.0
    %1347 = vmatprep.subr.mxu0 0.0
    %1348 = vmatpush1.msra.mxu0 0.0
    %1349 = vmatprep.subr.mxu0 0.0
    %1350 = vmatpush1.msra.mxu0 0.0
    %1351 = vmatprep.subr.mxu0 0.0
    %1352 = vmatpush1.msra.mxu0 0.0
    %1353 = vmatprep.subr.mxu0 0.0
    %1354 = vmatpush1.msra.mxu0 0.0
    %1355 = vmatprep.subr.mxu0 0.0
    %1356 = vmatpush1.msra.mxu0 0.0
    %1357 = vmatprep.subr.mxu0 0.0
    %1358 = vmatpush1.msra.mxu0 0.0
    %1359 = vmatprep.subr.mxu0 0.0
    %1360 = vmatpush1.msra.mxu0 0.0
    %1361 = vmatprep.subr.mxu0 0.0
    %1362 = vmatpush1.msra.mxu0 0.0
    %1363 = vmatprep.subr.mxu0 0.0
    %1364 = vmatpush1.msra.mxu0 0.0
    %1365 = vmatprep.subr.mxu0 0.0
    %1366 = vmatpush1.msra.mxu0 0.0
    %1367 = vmatprep.subr.mxu0 0.0
    %1368 = vmatpush1.msra.mxu0 0.0
    %1369 = vmatprep.subr.mxu0 0.0
    %1370 = vmatpush1.msra.mxu0 0.0
    %1371 = vmatprep.subr.mxu0 0.0
    %1372 = vmatpush1.msra.mxu0 0.0
    %1373 = vmatprep.subr.mxu0 0.0
    %1374 = vmatpush1.msra.mxu0 0.0
    %1375 = vmatprep.subr.mxu0 0.0
    %1376 = vmatpush1.msra.mxu0 0.0
    %1377 = vmatprep.subr.mxu0 0.0
    %1378 = vmatpush1.msra.mxu0 0.0
    %1379 = vmatprep.subr.mxu0 0.0
    %1380 = vmatpush1.msra.mxu0 0.0
    %1381 = vmatprep.subr.mxu0 0.0
    %1382 = vmatpush1.msra.mxu0 0.0
    %1383 = vmatprep.subr.mxu0 0.0
    %1384 = vmatpush1.msra.mxu0 0.0
    %1385 = vmatprep.subr.mxu0 0.0
    %1386 = vmatpush1.msra.mxu0 0.0
    %1387 = vmatprep.subr.mxu0 0.0
    %1388 = vmatpush1.msra.mxu0 0.0
    %1389 = vmatprep.subr.mxu0 0.0
    %1390 = vmatpush1.msra.mxu0 0.0
    %1391 = vmatprep.subr.mxu0 0.0
    %1392 = vmatpush1.msra.mxu0 0.0
    %1393 = vmatprep.subr.mxu0 0.0
    %1394 = vmatpush1.msra.mxu0 0.0
    %1395 = vmatprep.subr.mxu0 0.0
    %1396 = vmatpush1.msra.mxu0 0.0
    %1397 = vmatprep.mubr.f32.mxu0 0.0
    %1398 = vmatmul.mubr.f32.gmra.mrb[0].mxu0 %v1328
    %v1399 = vpop.f32.mrb[0].mxu0
    %v1400 = vadd.f32 %v1325, %v1399
    %v1401 = vpop.f32.mrb[0].mxu0
    %1402 = vmatprep.mubr.f32.mxu0 0.0
    %1403 = vmatmul.mubr.f32.gmra.mrb[0].mxu0 %v1331
    %v1404 = vpop.f32.mrb[0].mxu0
    %v1405 = vadd.f32 %v1325, %v1404
    %v1406 = vpop.f32.mrb[0].mxu0
    %1407 = vdwg.mxu0
    %v1408 = vld [vmem:[#allocation10] sm:$0xff]
    %v1409 = vld [vmem:[#allocation10 + $0x8] sm:$0xff]
    %v1410 = vld [vmem:[#allocation10 + $0x10] sm:$0xff]
    %v1411 = vld [vmem:[#allocation10 + $0x18] sm:$0xff]
    %1412 = vmatprep.subr.mxu0 0.0
    %1413 = vmatpush1.msra.mxu0 %v1408
    %1414 = vmatprep.subr.mxu0 0.0
    %1415 = vmatpush1.msra.mxu0 %v1409
    %1416 = vmatprep.subr.mxu0 0.0
    %1417 = vmatpush1.msra.mxu0 %v1410
    %1418 = vmatprep.subr.mxu0 0.0
    %1419 = vmatpush1.msra.mxu0 %v1411
    %1420 = vmatprep.subr.mxu0 0.0
    %1421 = vmatpush1.msra.mxu0 0.0
    %1422 = vmatprep.subr.mxu0 0.0
    %1423 = vmatpush1.msra.mxu0 0.0
    %1424 = vmatprep.subr.mxu0 0.0
    %1425 = vmatpush1.msra.mxu0 0.0
    %1426 = vmatprep.subr.mxu0 0.0
    %1427 = vmatpush1.msra.mxu0 0.0
    %1428 = vmatprep.subr.mxu0 0.0
    %1429 = vmatpush1.msra.mxu0 0.0
    %1430 = vmatprep.subr.mxu0 0.0
    %1431 = vmatpush1.msra.mxu0 0.0
    %1432 = vmatprep.subr.mxu0 0.0
    %1433 = vmatpush1.msra.mxu0 0.0
    %1434 = vmatprep.subr.mxu0 0.0
    %1435 = vmatpush1.msra.mxu0 0.0
    %1436 = vmatprep.subr.mxu0 0.0
    %1437 = vmatpush1.msra.mxu0 0.0
    %1438 = vmatprep.subr.mxu0 0.0
    %1439 = vmatpush1.msra.mxu0 0.0
    %1440 = vmatprep.subr.mxu0 0.0
    %1441 = vmatpush1.msra.mxu0 0.0
    %1442 = vmatprep.subr.mxu0 0.0
    %1443 = vmatpush1.msra.mxu0 0.0
    %1444 = vmatprep.subr.mxu0 0.0
    %1445 = vmatpush1.msra.mxu0 0.0
    %1446 = vmatprep.subr.mxu0 0.0
    %1447 = vmatpush1.msra.mxu0 0.0
    %1448 = vmatprep.subr.mxu0 0.0
    %1449 = vmatpush1.msra.mxu0 0.0
    %1450 = vmatprep.subr.mxu0 0.0
    %1451 = vmatpush1.msra.mxu0 0.0
    %1452 = vmatprep.subr.mxu0 0.0
    %1453 = vmatpush1.msra.mxu0 0.0
    %1454 = vmatprep.subr.mxu0 0.0
    %1455 = vmatpush1.msra.mxu0 0.0
    %1456 = vmatprep.subr.mxu0 0.0
    %1457 = vmatpush1.msra.mxu0 0.0
    %1458 = vmatprep.subr.mxu0 0.0
    %1459 = vmatpush1.msra.mxu0 0.0
    %1460 = vmatprep.subr.mxu0 0.0
    %1461 = vmatpush1.msra.mxu0 0.0
    %1462 = vmatprep.subr.mxu0 0.0
    %1463 = vmatpush1.msra.mxu0 0.0
    %1464 = vmatprep.subr.mxu0 0.0
    %1465 = vmatpush1.msra.mxu0 0.0
    %1466 = vmatprep.subr.mxu0 0.0
    %1467 = vmatpush1.msra.mxu0 0.0
    %1468 = vmatprep.subr.mxu0 0.0
    %1469 = vmatpush1.msra.mxu0 0.0
    %1470 = vmatprep.subr.mxu0 0.0
    %1471 = vmatpush1.msra.mxu0 0.0
    %1472 = vmatprep.subr.mxu0 0.0
    %1473 = vmatpush1.msra.mxu0 0.0
    %1474 = vmatprep.subr.mxu0 0.0
    %1475 = vmatpush1.msra.mxu0 0.0
    %1476 = vmatprep.mubr.f32.mxu0 0.0
    %1477 = vmatmul.mubr.f32.gmra.mrb[0].mxu0 %v440
    %v1478 = vpop.f32.mrb[0].mxu0
    %v1479 = vadd.f32 0.0, %v1478
    %v1480 = vpop.f32.mrb[0].mxu0
    %1481 = vdwg.mxu0
    %v1482 = vadd.f32 %v1400, %v1479
    %v1483 = vxor.u32 %v1482, 2147483648
    %v1484 = vmul.f32 %v1483, 1.442695
    %v1485 = vpow.pop %v1484
    %v1486 = vadd.f32 %v1485, 1.0
    %v1487 = vrcp.pop %v1486
    %v1488 = vmul.f32 1.0, %v1487
    %v1489 = vtanh.pop %v1482
    %v1490 = vmul.f32 %v1488, 0.0
    %1492 = vrot.lane.b32.xlu0 %v1489, 64
    %v1493 = vpop.permute.xlu0 %1492
    %v1495 = vmul.f32 %v1488, %v1493
    %1497 = vrot.lane.b32.xlu0 %v1495, 32
    %v1498 = vpop.permute.xlu0 %1497
    %v1500 = vadd.f32 %v1490, %v1498
    %v1501 = vtanh.pop %v1500
    %1503 = vrot.lane.b32.xlu0 %v1501, 64
    %v1504 = vpop.permute.xlu0 %1503
    %v1506 = vmul.f32 %v1488, %v1504
    %1508 = vrot.lane.b32.xlu0 %v1506, 32
    %v1509 = vpop.permute.xlu0 %1508
    %v1510 = vsel %vm438, %v1509, 0
    %1512 = vmatprep.subr.mxu0 0.0
    %1513 = vmatpush1.msra.mxu0 %v1408
    %1514 = vmatprep.subr.mxu0 0.0
    %1515 = vmatpush1.msra.mxu0 %v1409
    %1516 = vmatprep.subr.mxu0 0.0
    %1517 = vmatpush1.msra.mxu0 %v1410
    %1518 = vmatprep.subr.mxu0 0.0
    %1519 = vmatpush1.msra.mxu0 %v1411
    %1520 = vmatprep.subr.mxu0 0.0
    %1521 = vmatpush1.msra.mxu0 0.0
    %1522 = vmatprep.subr.mxu0 0.0
    %1523 = vmatpush1.msra.mxu0 0.0
    %1524 = vmatprep.subr.mxu0 0.0
    %1525 = vmatpush1.msra.mxu0 0.0
    %1526 = vmatprep.subr.mxu0 0.0
    %1527 = vmatpush1.msra.mxu0 0.0
    %1528 = vmatprep.subr.mxu0 0.0
    %1529 = vmatpush1.msra.mxu0 0.0
    %1530 = vmatprep.subr.mxu0 0.0
    %1531 = vmatpush1.msra.mxu0 0.0
    %1532 = vmatprep.subr.mxu0 0.0
    %1533 = vmatpush1.msra.mxu0 0.0
    %1534 = vmatprep.subr.mxu0 0.0
    %1535 = vmatpush1.msra.mxu0 0.0
    %1536 = vmatprep.subr.mxu0 0.0
    %1537 = vmatpush1.msra.mxu0 0.0
    %1538 = vmatprep.subr.mxu0 0.0
    %1539 = vmatpush1.msra.mxu0 0.0
    %1540 = vmatprep.subr.mxu0 0.0
    %1541 = vmatpush1.msra.mxu0 0.0
    %1542 = vmatprep.subr.mxu0 0.0
    %1543 = vmatpush1.msra.mxu0 0.0
    %1544 = vmatprep.subr.mxu0 0.0
    %1545 = vmatpush1.msra.mxu0 0.0
    %1546 = vmatprep.subr.mxu0 0.0
    %1547 = vmatpush1.msra.mxu0 0.0
    %1548 = vmatprep.subr.mxu0 0.0
    %1549 = vmatpush1.msra.mxu0 0.0
    %1550 = vmatprep.subr.mxu0 0.0
    %1551 = vmatpush1.msra.mxu0 0.0
    %1552 = vmatprep.subr.mxu0 0.0
    %1553 = vmatpush1.msra.mxu0 0.0
    %1554 = vmatprep.subr.mxu0 0.0
    %1555 = vmatpush1.msra.mxu0 0.0
    %1556 = vmatprep.subr.mxu0 0.0
    %1557 = vmatpush1.msra.mxu0 0.0
    %1558 = vmatprep.subr.mxu0 0.0
    %1559 = vmatpush1.msra.mxu0 0.0
    %1560 = vmatprep.subr.mxu0 0.0
    %1561 = vmatpush1.msra.mxu0 0.0
    %1562 = vmatprep.subr.mxu0 0.0
    %1563 = vmatpush1.msra.mxu0 0.0
    %1564 = vmatprep.subr.mxu0 0.0
    %1565 = vmatpush1.msra.mxu0 0.0
    %1566 = vmatprep.subr.mxu0 0.0
    %1567 = vmatpush1.msra.mxu0 0.0
    %1568 = vmatprep.subr.mxu0 0.0
    %1569 = vmatpush1.msra.mxu0 0.0
    %1570 = vmatprep.subr.mxu0 0.0
    %1571 = vmatpush1.msra.mxu0 0.0
    %1572 = vmatprep.subr.mxu0 0.0
    %1573 = vmatpush1.msra.mxu0 0.0
    %1574 = vmatprep.subr.mxu0 0.0
    %1575 = vmatpush1.msra.mxu0 0.0
    %1576 = vmatprep.mubr.f32.mxu0 0.0
    %1577 = vmatmul.mubr.f32.gmra.mrb[0].mxu0 %v1510
    %v1578 = vpop.f32.mrb[0].mxu0
    %v1579 = vadd.f32 0.0, %v1578
    %v1580 = vpop.f32.mrb[0].mxu0
    %1581 = vdwg.mxu0
    %v1583 = vrot.slane %v1579, 6
    %v1585 = vadd.f32 %v1400, %v1583
    %v1586 = vxor.u32 %v1585, 2147483648
    %v1587 = vmul.f32 %v1586, 1.442695
    %v1588 = vpow.pop %v1587
    %v1589 = vadd.f32 %v1588, 1.0
    %v1590 = vrcp.pop %v1589
    %v1591 = vmul.f32 1.0, %v1590
    %v1592 = vtanh.pop %v1585
    %v1594 = vrot.slane %v1500, 6
    %v1596 = vmul.f32 %v1591, %v1594
    %1598 = vrot.lane.b32.xlu0 %v1592, 64
    %v1599 = vpop.permute.xlu0 %1598
    %v1601 = vmul.f32 %v1591, %v1599
    %1603 = vrot.lane.b32.xlu0 %v1601, 32
    %v1604 = vpop.permute.xlu0 %1603
    %v1606 = vadd.f32 %v1596, %v1604
    %v1607 = vtanh.pop %v1606
    %1609 = vrot.lane.b32.xlu0 %v1607, 64
    %v1610 = vpop.permute.xlu0 %1609
    %v1612 = vmul.f32 %v1591, %v1610
    %v1614 = vrot.slane %v1612, 2
    %1615 = vrot.lane.b32.xlu0 %v1614, 32
    %v1616 = vpop.permute.xlu0 %1615
    %v1617 = vsel %vm438, %v1616, 0
    %1619 = vmatprep.subr.mxu0 0.0
    %1620 = vmatpush1.msra.mxu0 %v1408
    %1621 = vmatprep.subr.mxu0 0.0
    %1622 = vmatpush1.msra.mxu0 %v1409
    %1623 = vmatprep.subr.mxu0 0.0
    %1624 = vmatpush1.msra.mxu0 %v1410
    %1625 = vmatprep.subr.mxu0 0.0
    %1626 = vmatpush1.msra.mxu0 %v1411
    %1627 = vmatprep.subr.mxu0 0.0
    %1628 = vmatpush1.msra.mxu0 0.0
    %1629 = vmatprep.subr.mxu0 0.0
    %1630 = vmatpush1.msra.mxu0 0.0
    %1631 = vmatprep.subr.mxu0 0.0
    %1632 = vmatpush1.msra.mxu0 0.0
    %1633 = vmatprep.subr.mxu0 0.0
    %1634 = vmatpush1.msra.mxu0 0.0
    %1635 = vmatprep.subr.mxu0 0.0
    %1636 = vmatpush1.msra.mxu0 0.0
    %1637 = vmatprep.subr.mxu0 0.0
    %1638 = vmatpush1.msra.mxu0 0.0
    %1639 = vmatprep.subr.mxu0 0.0
    %1640 = vmatpush1.msra.mxu0 0.0
    %1641 = vmatprep.subr.mxu0 0.0
    %1642 = vmatpush1.msra.mxu0 0.0
    %1643 = vmatprep.subr.mxu0 0.0
    %1644 = vmatpush1.msra.mxu0 0.0
    %1645 = vmatprep.subr.mxu0 0.0
    %1646 = vmatpush1.msra.mxu0 0.0
    %1647 = vmatprep.subr.mxu0 0.0
    %1648 = vmatpush1.msra.mxu0 0.0
    %1649 = vmatprep.subr.mxu0 0.0
    %1650 = vmatpush1.msra.mxu0 0.0
    %1651 = vmatprep.subr.mxu0 0.0
    %1652 = vmatpush1.msra.mxu0 0.0
    %1653 = vmatprep.subr.mxu0 0.0
    %1654 = vmatpush1.msra.mxu0 0.0
    %1655 = vmatprep.subr.mxu0 0.0
    %1656 = vmatpush1.msra.mxu0 0.0
    %1657 = vmatprep.subr.mxu0 0.0
    %1658 = vmatpush1.msra.mxu0 0.0
    %1659 = vmatprep.subr.mxu0 0.0
    %1660 = vmatpush1.msra.mxu0 0.0
    %1661 = vmatprep.subr.mxu0 0.0
    %1662 = vmatpush1.msra.mxu0 0.0
    %1663 = vmatprep.subr.mxu0 0.0
    %1664 = vmatpush1.msra.mxu0 0.0
    %1665 = vmatprep.subr.mxu0 0.0
    %1666 = vmatpush1.msra.mxu0 0.0
    %1667 = vmatprep.subr.mxu0 0.0
    %1668 = vmatpush1.msra.mxu0 0.0
    %1669 = vmatprep.subr.mxu0 0.0
    %1670 = vmatpush1.msra.mxu0 0.0
    %1671 = vmatprep.subr.mxu0 0.0
    %1672 = vmatpush1.msra.mxu0 0.0
    %1673 = vmatprep.subr.mxu0 0.0
    %1674 = vmatpush1.msra.mxu0 0.0
    %1675 = vmatprep.subr.mxu0 0.0
    %1676 = vmatpush1.msra.mxu0 0.0
    %1677 = vmatprep.subr.mxu0 0.0
    %1678 = vmatpush1.msra.mxu0 0.0
    %1679 = vmatprep.subr.mxu0 0.0
    %1680 = vmatpush1.msra.mxu0 0.0
    %1681 = vmatprep.subr.mxu0 0.0
    %1682 = vmatpush1.msra.mxu0 0.0
    %1683 = vmatprep.mubr.f32.mxu0 0.0
    %1684 = vmatmul.mubr.f32.gmra.mrb[0].mxu0 %v1617
    %v1685 = vpop.f32.mrb[0].mxu0
    %v1686 = vadd.f32 0.0, %v1685
    %v1687 = vpop.f32.mrb[0].mxu0
    %1688 = vdwg.mxu0
    %v1690 = vrot.slane %v1686, 4
    %v1692 = vadd.f32 %v1400, %v1690
    %v1693 = vxor.u32 %v1692, 2147483648
    %v1694 = vmul.f32 %v1693, 1.442695
    %v1695 = vpow.pop %v1694
    %v1696 = vadd.f32 %v1695, 1.0
    %v1697 = vrcp.pop %v1696
    %v1698 = vmul.f32 1.0, %v1697
    %v1699 = vtanh.pop %v1692
    %v1701 = vrot.slane %v1606, 6
    %v1703 = vmul.f32 %v1698, %v1701
    %1705 = vrot.lane.b32.xlu0 %v1699, 64
    %v1706 = vpop.permute.xlu0 %1705
    %v1708 = vmul.f32 %v1698, %v1706
    %1710 = vrot.lane.b32.xlu0 %v1708, 32
    %v1711 = vpop.permute.xlu0 %1710
    %v1713 = vadd.f32 %v1703, %v1711
    %v1714 = vtanh.pop %v1713
    %1716 = vrot.lane.b32.xlu0 %v1714, 64
    %v1717 = vpop.permute.xlu0 %1716
    %v1719 = vmul.f32 %v1698, %v1717
    %v1721 = vrot.slane %v1719, 4
    %1722 = vrot.lane.b32.xlu0 %v1721, 32
    %v1723 = vpop.permute.xlu0 %1722
    %v1724 = vsel %vm438, %v1723, 0
    %1726 = vmatprep.subr.mxu0 0.0
    %1727 = vmatpush1.msra.mxu0 %v1408
    %1728 = vmatprep.subr.mxu0 0.0
    %1729 = vmatpush1.msra.mxu0 %v1409
    %1730 = vmatprep.subr.mxu0 0.0
    %1731 = vmatpush1.msra.mxu0 %v1410
    %1732 = vmatprep.subr.mxu0 0.0
    %1733 = vmatpush1.msra.mxu0 %v1411
    %1734 = vmatprep.subr.mxu0 0.0
    %1735 = vmatpush1.msra.mxu0 0.0
    %1736 = vmatprep.subr.mxu0 0.0
    %1737 = vmatpush1.msra.mxu0 0.0
    %1738 = vmatprep.subr.mxu0 0.0
    %1739 = vmatpush1.msra.mxu0 0.0
    %1740 = vmatprep.subr.mxu0 0.0
    %1741 = vmatpush1.msra.mxu0 0.0
    %1742 = vmatprep.subr.mxu0 0.0
    %1743 = vmatpush1.msra.mxu0 0.0
    %1744 = vmatprep.subr.mxu0 0.0
    %1745 = vmatpush1.msra.mxu0 0.0
    %1746 = vmatprep.subr.mxu0 0.0
    %1747 = vmatpush1.msra.mxu0 0.0
    %1748 = vmatprep.subr.mxu0 0.0
    %1749 = vmatpush1.msra.mxu0 0.0
    %1750 = vmatprep.subr.mxu0 0.0
    %1751 = vmatpush1.msra.mxu0 0.0
    %1752 = vmatprep.subr.mxu0 0.0
    %1753 = vmatpush1.msra.mxu0 0.0
    %1754 = vmatprep.subr.mxu0 0.0
    %1755 = vmatpush1.msra.mxu0 0.0
    %1756 = vmatprep.subr.mxu0 0.0
    %1757 = vmatpush1.msra.mxu0 0.0
    %1758 = vmatprep.subr.mxu0 0.0
    %1759 = vmatpush1.msra.mxu0 0.0
    %1760 = vmatprep.subr.mxu0 0.0
    %1761 = vmatpush1.msra.mxu0 0.0
    %1762 = vmatprep.subr.mxu0 0.0
    %1763 = vmatpush1.msra.mxu0 0.0
    %1764 = vmatprep.subr.mxu0 0.0
    %1765 = vmatpush1.msra.mxu0 0.0
    %1766 = vmatprep.subr.mxu0 0.0
    %1767 = vmatpush1.msra.mxu0 0.0
    %1768 = vmatprep.subr.mxu0 0.0
    %1769 = vmatpush1.msra.mxu0 0.0
    %1770 = vmatprep.subr.mxu0 0.0
    %1771 = vmatpush1.msra.mxu0 0.0
    %1772 = vmatprep.subr.mxu0 0.0
    %1773 = vmatpush1.msra.mxu0 0.0
    %1774 = vmatprep.subr.mxu0 0.0
    %1775 = vmatpush1.msra.mxu0 0.0
    %1776 = vmatprep.subr.mxu0 0.0
    %1777 = vmatpush1.msra.mxu0 0.0
    %1778 = vmatprep.subr.mxu0 0.0
    %1779 = vmatpush1.msra.mxu0 0.0
    %1780 = vmatprep.subr.mxu0 0.0
    %1781 = vmatpush1.msra.mxu0 0.0
    %1782 = vmatprep.subr.mxu0 0.0
    %1783 = vmatpush1.msra.mxu0 0.0
    %1784 = vmatprep.subr.mxu0 0.0
    %1785 = vmatpush1.msra.mxu0 0.0
    %1786 = vmatprep.subr.mxu0 0.0
    %1787 = vmatpush1.msra.mxu0 0.0
    %1788 = vmatprep.subr.mxu0 0.0
    %1789 = vmatpush1.msra.mxu0 0.0
    %1790 = vmatprep.mubr.f32.mxu0 0.0
    %1791 = vmatmul.mubr.f32.gmra.mrb[0].mxu0 %v1724
    %v1792 = vpop.f32.mrb[0].mxu0
    %v1793 = vadd.f32 0.0, %v1792
    %v1794 = vpop.f32.mrb[0].mxu0
    %1795 = vdwg.mxu0
    %v1797 = vrot.slane %v1793, 2
    %v1799 = vadd.f32 %v1400, %v1797
    %v1800 = vxor.u32 %v1799, 2147483648
    %v1801 = vmul.f32 %v1800, 1.442695
    %v1802 = vpow.pop %v1801
    %v1803 = vadd.f32 %v1802, 1.0
    %v1804 = vrcp.pop %v1803
    %v1805 = vmul.f32 1.0, %v1804
    %v1806 = vtanh.pop %v1799
    %v1808 = vrot.slane %v1713, 6
    %v1810 = vmul.f32 %v1805, %v1808
    %1812 = vrot.lane.b32.xlu0 %v1806, 64
    %v1813 = vpop.permute.xlu0 %1812
    %v1815 = vmul.f32 %v1805, %v1813
    %1817 = vrot.lane.b32.xlu0 %v1815, 32
    %v1818 = vpop.permute.xlu0 %1817
    %v1820 = vadd.f32 %v1810, %v1818
    %v1821 = vtanh.pop %v1820
    %1823 = vrot.lane.b32.xlu0 %v1821, 64
    %v1824 = vpop.permute.xlu0 %1823
    %v1826 = vmul.f32 %v1805, %v1824
    %v1828 = vrot.slane %v1826, 6
    %1829 = vrot.lane.b32.xlu0 %v1828, 32
    %v1830 = vpop.permute.xlu0 %1829
    %v1831 = vsel %vm438, %v1830, 0
    %1833 = vmatprep.subr.mxu0 0.0
    %1834 = vmatpush1.msra.mxu0 %v1408
    %1835 = vmatprep.subr.mxu0 0.0
    %1836 = vmatpush1.msra.mxu0 %v1409
    %1837 = vmatprep.subr.mxu0 0.0
    %1838 = vmatpush1.msra.mxu0 %v1410
    %1839 = vmatprep.subr.mxu0 0.0
    %1840 = vmatpush1.msra.mxu0 %v1411
    %1841 = vmatprep.subr.mxu0 0.0
    %1842 = vmatpush1.msra.mxu0 0.0
    %1843 = vmatprep.subr.mxu0 0.0
    %1844 = vmatpush1.msra.mxu0 0.0
    %1845 = vmatprep.subr.mxu0 0.0
    %1846 = vmatpush1.msra.mxu0 0.0
    %1847 = vmatprep.subr.mxu0 0.0
    %1848 = vmatpush1.msra.mxu0 0.0
    %1849 = vmatprep.subr.mxu0 0.0
    %1850 = vmatpush1.msra.mxu0 0.0
    %1851 = vmatprep.subr.mxu0 0.0
    %1852 = vmatpush1.msra.mxu0 0.0
    %1853 = vmatprep.subr.mxu0 0.0
    %1854 = vmatpush1.msra.mxu0 0.0
    %1855 = vmatprep.subr.mxu0 0.0
    %1856 = vmatpush1.msra.mxu0 0.0
    %1857 = vmatprep.subr.mxu0 0.0
    %1858 = vmatpush1.msra.mxu0 0.0
    %1859 = vmatprep.subr.mxu0 0.0
    %1860 = vmatpush1.msra.mxu0 0.0
    %1861 = vmatprep.subr.mxu0 0.0
    %1862 = vmatpush1.msra.mxu0 0.0
    %1863 = vmatprep.subr.mxu0 0.0
    %1864 = vmatpush1.msra.mxu0 0.0
    %1865 = vmatprep.subr.mxu0 0.0
    %1866 = vmatpush1.msra.mxu0 0.0
    %1867 = vmatprep.subr.mxu0 0.0
    %1868 = vmatpush1.msra.mxu0 0.0
    %1869 = vmatprep.subr.mxu0 0.0
    %1870 = vmatpush1.msra.mxu0 0.0
    %1871 = vmatprep.subr.mxu0 0.0
    %1872 = vmatpush1.msra.mxu0 0.0
    %1873 = vmatprep.subr.mxu0 0.0
    %1874 = vmatpush1.msra.mxu0 0.0
    %1875 = vmatprep.subr.mxu0 0.0
    %1876 = vmatpush1.msra.mxu0 0.0
    %1877 = vmatprep.subr.mxu0 0.0
    %1878 = vmatpush1.msra.mxu0 0.0
    %1879 = vmatprep.subr.mxu0 0.0
    %1880 = vmatpush1.msra.mxu0 0.0
    %1881 = vmatprep.subr.mxu0 0.0
    %1882 = vmatpush1.msra.mxu0 0.0
    %1883 = vmatprep.subr.mxu0 0.0
    %1884 = vmatpush1.msra.mxu0 0.0
    %1885 = vmatprep.subr.mxu0 0.0
    %1886 = vmatpush1.msra.mxu0 0.0
    %1887 = vmatprep.subr.mxu0 0.0
    %1888 = vmatpush1.msra.mxu0 0.0
    %1889 = vmatprep.subr.mxu0 0.0
    %1890 = vmatpush1.msra.mxu0 0.0
    %1891 = vmatprep.subr.mxu0 0.0
    %1892 = vmatpush1.msra.mxu0 0.0
    %1893 = vmatprep.subr.mxu0 0.0
    %1894 = vmatpush1.msra.mxu0 0.0
    %1895 = vmatprep.subr.mxu0 0.0
    %1896 = vmatpush1.msra.mxu0 0.0
    %1897 = vmatprep.mubr.f32.mxu0 0.0
    %1898 = vmatmul.mubr.f32.gmra.mrb[0].mxu0 %v1831
    %v1899 = vpop.f32.mrb[0].mxu0
    %v1900 = vadd.f32 0.0, %v1899
    %v1901 = vpop.f32.mrb[0].mxu0
    %1902 = vdwg.mxu0
    %v1903 = vadd.f32 %v1405, %v1900
    %v1904 = vxor.u32 %v1903, 2147483648
    %v1905 = vmul.f32 %v1904, 1.442695
    %v1906 = vpow.pop %v1905
    %v1907 = vadd.f32 %v1906, 1.0
    %v1908 = vrcp.pop %v1907
    %v1909 = vmul.f32 1.0, %v1908
    %v1910 = vtanh.pop %v1903
    %v1912 = vrot.slane %v1820, 6
    %v1914 = vmul.f32 %v1909, %v1912
    %1916 = vrot.lane.b32.xlu0 %v1910, 64
    %v1917 = vpop.permute.xlu0 %1916
    %v1919 = vmul.f32 %v1909, %v1917
    %1921 = vrot.lane.b32.xlu0 %v1919, 32
    %v1922 = vpop.permute.xlu0 %1921
    %v1924 = vadd.f32 %v1914, %v1922
    %v1925 = vtanh.pop %v1924
    %1927 = vrot.lane.b32.xlu0 %v1925, 64
    %v1928 = vpop.permute.xlu0 %1927
    %v1930 = vmul.f32 %v1909, %v1928
    %1932 = vrot.lane.b32.xlu0 %v1930, 32
    %v1933 = vpop.permute.xlu0 %1932
    %v1934 = vsel %vm438, %v1933, 0
    %1936 = vmatprep.subr.mxu0 0.0
    %1937 = vmatpush1.msra.mxu0 %v1408
    %1938 = vmatprep.subr.mxu0 0.0
    %1939 = vmatpush1.msra.mxu0 %v1409
    %1940 = vmatprep.subr.mxu0 0.0
    %1941 = vmatpush1.msra.mxu0 %v1410
    %1942 = vmatprep.subr.mxu0 0.0
    %1943 = vmatpush1.msra.mxu0 %v1411
    %1944 = vmatprep.subr.mxu0 0.0
    %1945 = vmatpush1.msra.mxu0 0.0
    %1946 = vmatprep.subr.mxu0 0.0
    %1947 = vmatpush1.msra.mxu0 0.0
    %1948 = vmatprep.subr.mxu0 0.0
    %1949 = vmatpush1.msra.mxu0 0.0
    %1950 = vmatprep.subr.mxu0 0.0
    %1951 = vmatpush1.msra.mxu0 0.0
    %1952 = vmatprep.subr.mxu0 0.0
    %1953 = vmatpush1.msra.mxu0 0.0
    %1954 = vmatprep.subr.mxu0 0.0
    %1955 = vmatpush1.msra.mxu0 0.0
    %1956 = vmatprep.subr.mxu0 0.0
    %1957 = vmatpush1.msra.mxu0 0.0
    %1958 = vmatprep.subr.mxu0 0.0
    %1959 = vmatpush1.msra.mxu0 0.0
    %1960 = vmatprep.subr.mxu0 0.0
    %1961 = vmatpush1.msra.mxu0 0.0
    %1962 = vmatprep.subr.mxu0 0.0
    %1963 = vmatpush1.msra.mxu0 0.0
    %1964 = vmatprep.subr.mxu0 0.0
    %1965 = vmatpush1.msra.mxu0 0.0
    %1966 = vmatprep.subr.mxu0 0.0
    %1967 = vmatpush1.msra.mxu0 0.0
    %1968 = vmatprep.subr.mxu0 0.0
    %1969 = vmatpush1.msra.mxu0 0.0
    %1970 = vmatprep.subr.mxu0 0.0
    %1971 = vmatpush1.msra.mxu0 0.0
    %1972 = vmatprep.subr.mxu0 0.0
    %1973 = vmatpush1.msra.mxu0 0.0
    %1974 = vmatprep.subr.mxu0 0.0
    %1975 = vmatpush1.msra.mxu0 0.0
    %1976 = vmatprep.subr.mxu0 0.0
    %1977 = vmatpush1.msra.mxu0 0.0
    %1978 = vmatprep.subr.mxu0 0.0
    %1979 = vmatpush1.msra.mxu0 0.0
    %1980 = vmatprep.subr.mxu0 0.0
    %1981 = vmatpush1.msra.mxu0 0.0
    %1982 = vmatprep.subr.mxu0 0.0
    %1983 = vmatpush1.msra.mxu0 0.0
    %1984 = vmatprep.subr.mxu0 0.0
    %1985 = vmatpush1.msra.mxu0 0.0
    %1986 = vmatprep.subr.mxu0 0.0
    %1987 = vmatpush1.msra.mxu0 0.0
    %1988 = vmatprep.subr.mxu0 0.0
    %1989 = vmatpush1.msra.mxu0 0.0
    %1990 = vmatprep.subr.mxu0 0.0
    %1991 = vmatpush1.msra.mxu0 0.0
    %1992 = vmatprep.subr.mxu0 0.0
    %1993 = vmatpush1.msra.mxu0 0.0
    %1994 = vmatprep.subr.mxu0 0.0
    %1995 = vmatpush1.msra.mxu0 0.0
    %1996 = vmatprep.subr.mxu0 0.0
    %1997 = vmatpush1.msra.mxu0 0.0
    %1998 = vmatprep.subr.mxu0 0.0
    %1999 = vmatpush1.msra.mxu0 0.0
    %2000 = vmatprep.mubr.f32.mxu0 0.0
    %2001 = vmatmul.mubr.f32.gmra.mrb[0].mxu0 %v1934
    %v2002 = vpop.f32.mrb[0].mxu0
    %v2003 = vadd.f32 0.0, %v2002
    %v2004 = vpop.f32.mrb[0].mxu0
    %2005 = vdwg.mxu0
    %v2007 = vrot.slane %v2003, 6
    %v2009 = vadd.f32 %v1405, %v2007
    %v2010 = vxor.u32 %v2009, 2147483648
    %v2011 = vmul.f32 %v2010, 1.442695
    %v2012 = vpow.pop %v2011
    %v2013 = vadd.f32 %v2012, 1.0
    %v2014 = vrcp.pop %v2013
    %v2015 = vmul.f32 1.0, %v2014
    %v2016 = vtanh.pop %v2009
    %v2018 = vrot.slane %v1924, 6
    %v2020 = vmul.f32 %v2015, %v2018
    %2022 = vrot.lane.b32.xlu0 %v2016, 64
    %v2023 = vpop.permute.xlu0 %2022
    %v2025 = vmul.f32 %v2015, %v2023
    %2027 = vrot.lane.b32.xlu0 %v2025, 32
    %v2028 = vpop.permute.xlu0 %2027
    %v2030 = vadd.f32 %v2020, %v2028
    %v2031 = vtanh.pop %v2030
    %2033 = vrot.lane.b32.xlu0 %v2031, 64
    %v2034 = vpop.permute.xlu0 %2033
    %v2036 = vmul.f32 %v2015, %v2034
    %v2038 = vrot.slane %v2036, 2
    %2039 = vrot.lane.b32.xlu0 %v2038, 32
    %v2040 = vpop.permute.xlu0 %2039
    %v2041 = vsel %vm438, %v2040, 0
    %2043 = vmatprep.subr.mxu0 0.0
    %2044 = vmatpush1.msra.mxu0 %v1408
    %2045 = vmatprep.subr.mxu0 0.0
    %2046 = vmatpush1.msra.mxu0 %v1409
    %2047 = vmatprep.subr.mxu0 0.0
    %2048 = vmatpush1.msra.mxu0 %v1410
    %2049 = vmatprep.subr.mxu0 0.0
    %2050 = vmatpush1.msra.mxu0 %v1411
    %2051 = vmatprep.subr.mxu0 0.0
    %2052 = vmatpush1.msra.mxu0 0.0
    %2053 = vmatprep.subr.mxu0 0.0
    %2054 = vmatpush1.msra.mxu0 0.0
    %2055 = vmatprep.subr.mxu0 0.0
    %2056 = vmatpush1.msra.mxu0 0.0
    %2057 = vmatprep.subr.mxu0 0.0
    %2058 = vmatpush1.msra.mxu0 0.0
    %2059 = vmatprep.subr.mxu0 0.0
    %2060 = vmatpush1.msra.mxu0 0.0
    %2061 = vmatprep.subr.mxu0 0.0
    %2062 = vmatpush1.msra.mxu0 0.0
    %2063 = vmatprep.subr.mxu0 0.0
    %2064 = vmatpush1.msra.mxu0 0.0
    %2065 = vmatprep.subr.mxu0 0.0
    %2066 = vmatpush1.msra.mxu0 0.0
    %2067 = vmatprep.subr.mxu0 0.0
    %2068 = vmatpush1.msra.mxu0 0.0
    %2069 = vmatprep.subr.mxu0 0.0
    %2070 = vmatpush1.msra.mxu0 0.0
    %2071 = vmatprep.subr.mxu0 0.0
    %2072 = vmatpush1.msra.mxu0 0.0
    %2073 = vmatprep.subr.mxu0 0.0
    %2074 = vmatpush1.msra.mxu0 0.0
    %2075 = vmatprep.subr.mxu0 0.0
    %2076 = vmatpush1.msra.mxu0 0.0
    %2077 = vmatprep.subr.mxu0 0.0
    %2078 = vmatpush1.msra.mxu0 0.0
    %2079 = vmatprep.subr.mxu0 0.0
    %2080 = vmatpush1.msra.mxu0 0.0
    %2081 = vmatprep.subr.mxu0 0.0
    %2082 = vmatpush1.msra.mxu0 0.0
    %2083 = vmatprep.subr.mxu0 0.0
    %2084 = vmatpush1.msra.mxu0 0.0
    %2085 = vmatprep.subr.mxu0 0.0
    %2086 = vmatpush1.msra.mxu0 0.0
    %2087 = vmatprep.subr.mxu0 0.0
    %2088 = vmatpush1.msra.mxu0 0.0
    %2089 = vmatprep.subr.mxu0 0.0
    %2090 = vmatpush1.msra.mxu0 0.0
    %2091 = vmatprep.subr.mxu0 0.0
    %2092 = vmatpush1.msra.mxu0 0.0
    %2093 = vmatprep.subr.mxu0 0.0
    %2094 = vmatpush1.msra.mxu0 0.0
    %2095 = vmatprep.subr.mxu0 0.0
    %2096 = vmatpush1.msra.mxu0 0.0
    %2097 = vmatprep.subr.mxu0 0.0
    %2098 = vmatpush1.msra.mxu0 0.0
    %2099 = vmatprep.subr.mxu0 0.0
    %2100 = vmatpush1.msra.mxu0 0.0
    %2101 = vmatprep.subr.mxu0 0.0
    %2102 = vmatpush1.msra.mxu0 0.0
    %2103 = vmatprep.subr.mxu0 0.0
    %2104 = vmatpush1.msra.mxu0 0.0
    %2105 = vmatprep.subr.mxu0 0.0
    %2106 = vmatpush1.msra.mxu0 0.0
    %2107 = vmatprep.mubr.f32.mxu0 0.0
    %2108 = vmatmul.mubr.f32.gmra.mrb[0].mxu0 %v2041
    %v2109 = vpop.f32.mrb[0].mxu0
    %v2110 = vadd.f32 0.0, %v2109
    %v2111 = vpop.f32.mrb[0].mxu0
    %2112 = vdwg.mxu0
    %v2114 = vrot.slane %v2110, 4
    %v2116 = vadd.f32 %v1405, %v2114
    %v2117 = vxor.u32 %v2116, 2147483648
    %v2118 = vmul.f32 %v2117, 1.442695
    %v2119 = vpow.pop %v2118
    %v2120 = vadd.f32 %v2119, 1.0
    %v2121 = vrcp.pop %v2120
    %v2122 = vmul.f32 1.0, %v2121
    %v2123 = vtanh.pop %v2116
    %v2125 = vrot.slane %v2030, 6
    %v2127 = vmul.f32 %v2122, %v2125
    %2129 = vrot.lane.b32.xlu0 %v2123, 64
    %v2130 = vpop.permute.xlu0 %2129
    %v2132 = vmul.f32 %v2122, %v2130
    %2134 = vrot.lane.b32.xlu0 %v2132, 32
    %v2135 = vpop.permute.xlu0 %2134
    %v2137 = vadd.f32 %v2127, %v2135
    %v2138 = vtanh.pop %v2137
    %2140 = vrot.lane.b32.xlu0 %v2138, 64
    %v2141 = vpop.permute.xlu0 %2140
    %v2143 = vmul.f32 %v2122, %v2141
    %v2145 = vrot.slane %v2143, 4
    %2146 = vrot.lane.b32.xlu0 %v2145, 32
    %v2147 = vpop.permute.xlu0 %2146
    %v2148 = vsel %vm438, %v2147, 0
    %2150 = vmatprep.subr.mxu0 0.0
    %2151 = vmatpush1.msra.mxu0 %v1408
    %2152 = vmatprep.subr.mxu0 0.0
    %2153 = vmatpush1.msra.mxu0 %v1409
    %2154 = vmatprep.subr.mxu0 0.0
    %2155 = vmatpush1.msra.mxu0 %v1410
    %2156 = vmatprep.subr.mxu0 0.0
    %2157 = vmatpush1.msra.mxu0 %v1411
    %2158 = vmatprep.subr.mxu0 0.0
    %2159 = vmatpush1.msra.mxu0 0.0
    %2160 = vmatprep.subr.mxu0 0.0
    %2161 = vmatpush1.msra.mxu0 0.0
    %2162 = vmatprep.subr.mxu0 0.0
    %2163 = vmatpush1.msra.mxu0 0.0
    %2164 = vmatprep.subr.mxu0 0.0
    %2165 = vmatpush1.msra.mxu0 0.0
    %2166 = vmatprep.subr.mxu0 0.0
    %2167 = vmatpush1.msra.mxu0 0.0
    %2168 = vmatprep.subr.mxu0 0.0
    %2169 = vmatpush1.msra.mxu0 0.0
    %2170 = vmatprep.subr.mxu0 0.0
    %2171 = vmatpush1.msra.mxu0 0.0
    %2172 = vmatprep.subr.mxu0 0.0
    %2173 = vmatpush1.msra.mxu0 0.0
    %2174 = vmatprep.subr.mxu0 0.0
    %2175 = vmatpush1.msra.mxu0 0.0
    %2176 = vmatprep.subr.mxu0 0.0
    %2177 = vmatpush1.msra.mxu0 0.0
    %2178 = vmatprep.subr.mxu0 0.0
    %2179 = vmatpush1.msra.mxu0 0.0
    %2180 = vmatprep.subr.mxu0 0.0
    %2181 = vmatpush1.msra.mxu0 0.0
    %2182 = vmatprep.subr.mxu0 0.0
    %2183 = vmatpush1.msra.mxu0 0.0
    %2184 = vmatprep.subr.mxu0 0.0
    %2185 = vmatpush1.msra.mxu0 0.0
    %2186 = vmatprep.subr.mxu0 0.0
    %2187 = vmatpush1.msra.mxu0 0.0
    %2188 = vmatprep.subr.mxu0 0.0
    %2189 = vmatpush1.msra.mxu0 0.0
    %2190 = vmatprep.subr.mxu0 0.0
    %2191 = vmatpush1.msra.mxu0 0.0
    %2192 = vmatprep.subr.mxu0 0.0
    %2193 = vmatpush1.msra.mxu0 0.0
    %2194 = vmatprep.subr.mxu0 0.0
    %2195 = vmatpush1.msra.mxu0 0.0
    %2196 = vmatprep.subr.mxu0 0.0
    %2197 = vmatpush1.msra.mxu0 0.0
    %2198 = vmatprep.subr.mxu0 0.0
    %2199 = vmatpush1.msra.mxu0 0.0
    %2200 = vmatprep.subr.mxu0 0.0
    %2201 = vmatpush1.msra.mxu0 0.0
    %2202 = vmatprep.subr.mxu0 0.0
    %2203 = vmatpush1.msra.mxu0 0.0
    %2204 = vmatprep.subr.mxu0 0.0
    %2205 = vmatpush1.msra.mxu0 0.0
    %2206 = vmatprep.subr.mxu0 0.0
    %2207 = vmatpush1.msra.mxu0 0.0
    %2208 = vmatprep.subr.mxu0 0.0
    %2209 = vmatpush1.msra.mxu0 0.0
    %2210 = vmatprep.subr.mxu0 0.0
    %2211 = vmatpush1.msra.mxu0 0.0
    %2212 = vmatprep.subr.mxu0 0.0
    %2213 = vmatpush1.msra.mxu0 0.0
    %2214 = vmatprep.mubr.f32.mxu0 0.0
    %2215 = vmatmul.mubr.f32.gmra.mrb[0].mxu0 %v2148
    %v2216 = vpop.f32.mrb[0].mxu0
    %v2217 = vadd.f32 0.0, %v2216
    %v2218 = vpop.f32.mrb[0].mxu0
    %2219 = vdwg.mxu0
    %v2221 = vrot.slane %v2217, 2
    %v2223 = vadd.f32 %v1405, %v2221
    %v2224 = vxor.u32 %v2223, 2147483648
    %v2225 = vmul.f32 %v2224, 1.442695
    %v2226 = vpow.pop %v2225
    %v2227 = vadd.f32 %v2226, 1.0
    %v2228 = vrcp.pop %v2227
    %v2229 = vmul.f32 1.0, %v2228
    %v2230 = vtanh.pop %v2223
    %v2232 = vrot.slane %v2137, 6
    %v2234 = vmul.f32 %v2229, %v2232
    %2236 = vrot.lane.b32.xlu0 %v2230, 64
    %v2237 = vpop.permute.xlu0 %2236
    %v2239 = vmul.f32 %v2229, %v2237
    %2241 = vrot.lane.b32.xlu0 %v2239, 32
    %v2242 = vpop.permute.xlu0 %2241
    %v2244 = vadd.f32 %v2234, %v2242
    %v2245 = vtanh.pop %v2244
    %2247 = vrot.lane.b32.xlu0 %v2245, 64
    %v2248 = vpop.permute.xlu0 %2247
    %v2250 = vmul.f32 %v2229, %v2248
    %v2251 = vld [vmem:[#allocation13] sm:$0x3]
    %v2252 = vld [vmem:[#allocation14] sm:$0xf]
    %v2253 = vld [vmem:[#allocation16] sm:$0x1]
    %v2255 = vlaneseq
    %v2256 = vshrl.u32 %v2255, 7
    %v2257 = vsub.s32 0, %v2256
    %v2258 = vrot.slane %v2253, %v2257
    %vm2260 = vcmask 31744
    %v2262 = vsel %vm2260, %v2251, 0
    %vm2264 = vcmask 1043456
    %v2266 = vsel %vm2264, %v2252, 0
    %2268 = vmatprep.subr.mxu0 0.0
    %2269 = vmatpush1.msra.mxu0 %v2266
    %2270 = vmatprep.subr.mxu0 0.0
    %2271 = vmatpush1.msra.mxu0 0.0
    %2272 = vmatprep.subr.mxu0 0.0
    %2273 = vmatpush1.msra.mxu0 0.0
    %2274 = vmatprep.subr.mxu0 0.0
    %2275 = vmatpush1.msra.mxu0 0.0
    %2276 = vmatprep.subr.mxu0 0.0
    %2277 = vmatpush1.msra.mxu0 0.0
    %2278 = vmatprep.subr.mxu0 0.0
    %2279 = vmatpush1.msra.mxu0 0.0
    %2280 = vmatprep.subr.mxu0 0.0
    %2281 = vmatpush1.msra.mxu0 0.0
    %2282 = vmatprep.subr.mxu0 0.0
    %2283 = vmatpush1.msra.mxu0 0.0
    %2284 = vmatprep.subr.mxu0 0.0
    %2285 = vmatpush1.msra.mxu0 0.0
    %2286 = vmatprep.subr.mxu0 0.0
    %2287 = vmatpush1.msra.mxu0 0.0
    %2288 = vmatprep.subr.mxu0 0.0
    %2289 = vmatpush1.msra.mxu0 0.0
    %2290 = vmatprep.subr.mxu0 0.0
    %2291 = vmatpush1.msra.mxu0 0.0
    %2292 = vmatprep.subr.mxu0 0.0
    %2293 = vmatpush1.msra.mxu0 0.0
    %2294 = vmatprep.subr.mxu0 0.0
    %2295 = vmatpush1.msra.mxu0 0.0
    %2296 = vmatprep.subr.mxu0 0.0
    %2297 = vmatpush1.msra.mxu0 0.0
    %2298 = vmatprep.subr.mxu0 0.0
    %2299 = vmatpush1.msra.mxu0 0.0
    %2300 = vmatprep.subr.mxu0 0.0
    %2301 = vmatpush1.msra.mxu0 0.0
    %2302 = vmatprep.subr.mxu0 0.0
    %2303 = vmatpush1.msra.mxu0 0.0
    %2304 = vmatprep.subr.mxu0 0.0
    %2305 = vmatpush1.msra.mxu0 0.0
    %2306 = vmatprep.subr.mxu0 0.0
    %2307 = vmatpush1.msra.mxu0 0.0
    %2308 = vmatprep.subr.mxu0 0.0
    %2309 = vmatpush1.msra.mxu0 0.0
    %2310 = vmatprep.subr.mxu0 0.0
    %2311 = vmatpush1.msra.mxu0 0.0
    %2312 = vmatprep.subr.mxu0 0.0
    %2313 = vmatpush1.msra.mxu0 0.0
    %2314 = vmatprep.subr.mxu0 0.0
    %2315 = vmatpush1.msra.mxu0 0.0
    %2316 = vmatprep.subr.mxu0 0.0
    %2317 = vmatpush1.msra.mxu0 0.0
    %2318 = vmatprep.subr.mxu0 0.0
    %2319 = vmatpush1.msra.mxu0 0.0
    %2320 = vmatprep.subr.mxu0 0.0
    %2321 = vmatpush1.msra.mxu0 0.0
    %2322 = vmatprep.subr.mxu0 0.0
    %2323 = vmatpush1.msra.mxu0 0.0
    %2324 = vmatprep.subr.mxu0 0.0
    %2325 = vmatpush1.msra.mxu0 0.0
    %2326 = vmatprep.subr.mxu0 0.0
    %2327 = vmatpush1.msra.mxu0 0.0
    %2328 = vmatprep.subr.mxu0 0.0
    %2329 = vmatpush1.msra.mxu0 0.0
    %2330 = vmatprep.subr.mxu0 0.0
    %2331 = vmatpush1.msra.mxu0 0.0
    %2332 = vmatprep.mubr.f32.mxu0 0.0
    %2333 = vmatmul.mubr.f32.gmra.mrb[0].mxu0 %v2262
    %v2334 = vpop.f32.mrb[0].mxu0
    %v2335 = vadd.f32 %v2258, %v2334
    %v2336 = vpop.f32.mrb[0].mxu0
    %2337 = vdwg.mxu0
    %v2339 = vmul.f32 %v2335, %v1509
    %v2340 = vsel %vm1282, %v2339, 0.0
    %2341 = vadd.xlane.f32.xlu0 %v2340
    %v2342 = vpop.xlane.xlu0 %2341
    %v2343 = vmul.f32 %v2342, 0.17677669
    %v2345 = vmul.f32 %v2335, %v1616
    %v2346 = vsel %vm1282, %v2345, 0.0
    %2347 = vadd.xlane.f32.xlu0 %v2346
    %v2348 = vpop.xlane.xlu0 %2347
    %v2349 = vmul.f32 %v2348, 0.17677669
    %v2351 = vmul.f32 %v2335, %v1723
    %v2352 = vsel %vm1282, %v2351, 0.0
    %2353 = vadd.xlane.f32.xlu0 %v2352
    %v2354 = vpop.xlane.xlu0 %2353
    %v2355 = vmul.f32 %v2354, 0.17677669
    %v2357 = vmul.f32 %v2335, %v1830
    %v2358 = vsel %vm1282, %v2357, 0.0
    %2359 = vadd.xlane.f32.xlu0 %v2358
    %v2360 = vpop.xlane.xlu0 %2359
    %v2361 = vmul.f32 %v2360, 0.17677669
    %v2363 = vmul.f32 %v2335, %v1933
    %v2364 = vsel %vm1282, %v2363, 0.0
    %2365 = vadd.xlane.f32.xlu0 %v2364
    %v2366 = vpop.xlane.xlu0 %2365
    %v2367 = vmul.f32 %v2366, 0.17677669
    %v2369 = vmul.f32 %v2335, %v2040
    %v2370 = vsel %vm1282, %v2369, 0.0
    %2371 = vadd.xlane.f32.xlu0 %v2370
    %v2372 = vpop.xlane.xlu0 %2371
    %v2373 = vmul.f32 %v2372, 0.17677669
    %v2375 = vmul.f32 %v2335, %v2147
    %v2376 = vsel %vm1282, %v2375, 0.0
    %2377 = vadd.xlane.f32.xlu0 %v2376
    %v2378 = vpop.xlane.xlu0 %2377
    %v2379 = vmul.f32 %v2378, 0.17677669
    %v2381 = vrot.slane %v2250, 6
    %2382 = vrot.lane.b32.xlu0 %v2381, 32
    %v2383 = vpop.permute.xlu0 %2382
    %v2385 = vmul.f32 %v2335, %v2383
    %v2386 = vsel %vm1282, %v2385, 0.0
    %2387 = vadd.xlane.f32.xlu0 %v2386
    %v2388 = vpop.xlane.xlu0 %2387
    %v2389 = vmul.f32 %v2388, 0.17677669
    %v2390 = vmax.f32 %v2343, %v2349
    %v2391 = vmax.f32 %v2390, %v2355
    %v2392 = vmax.f32 %v2391, %v2361
    %v2393 = vmax.f32 %v2392, %v2367
    %v2394 = vmax.f32 %v2393, %v2373
    %v2395 = vmax.f32 %v2394, %v2379
    %v2396 = vmax.f32 %v2395, %v2389
    %v2397 = vsub.f32 %v2343, %v2396
    %v2398 = vmul.f32 %v2397, 1.442695
    %v2399 = vpow.pop %v2398
    %v2400 = vsub.f32 %v2349, %v2396
    %v2401 = vmul.f32 %v2400, 1.442695
    %v2402 = vpow.pop %v2401
    %v2403 = vsub.f32 %v2355, %v2396
    %v2404 = vmul.f32 %v2403, 1.442695
    %v2405 = vpow.pop %v2404
    %v2406 = vsub.f32 %v2361, %v2396
    %v2407 = vmul.f32 %v2406, 1.442695
    %v2408 = vpow.pop %v2407
    %v2409 = vsub.f32 %v2367, %v2396
    %v2410 = vmul.f32 %v2409, 1.442695
    %v2411 = vpow.pop %v2410
    %v2412 = vsub.f32 %v2373, %v2396
    %v2413 = vmul.f32 %v2412, 1.442695
    %v2414 = vpow.pop %v2413
    %v2415 = vsub.f32 %v2379, %v2396
    %v2416 = vmul.f32 %v2415, 1.442695
    %v2417 = vpow.pop %v2416
    %v2418 = vsub.f32 %v2389, %v2396
    %v2419 = vmul.f32 %v2418, 1.442695
    %v2420 = vpow.pop %v2419
    %v2421 = vadd.f32 %v2399, %v2402
    %v2422 = vadd.f32 %v2421, %v2405
    %v2423 = vadd.f32 %v2422, %v2408
    %v2424 = vadd.f32 %v2423, %v2411
    %v2425 = vadd.f32 %v2424, %v2414
    %v2426 = vadd.f32 %v2425, %v2417
    %v2427 = vadd.f32 %v2426, %v2420
    %v2428 = vrcp.pop %v2427
    %v2429 = vmul.f32 1.0, %v2428
    %v2430 = vmul.f32 %v2399, %v2429
    %v2431 = vmul.f32 %v2430, %v1506
    %v2432 = vadd.f32 %v2431, 0.0
    %v2433 = vmul.f32 %v2402, %v2429
    %v2434 = vmul.f32 %v2433, %v1616
    %2436 = vrot.lane.b32.xlu0 %v2434, 96
    %v2437 = vpop.permute.xlu0 %2436
    %v2439 = vadd.f32 %v2432, %v2437
    %v2440 = vmul.f32 %v2405, %v2429
    %v2441 = vmul.f32 %v2440, %v1723
    %2443 = vrot.lane.b32.xlu0 %v2441, 96
    %v2444 = vpop.permute.xlu0 %2443
    %v2446 = vadd.f32 %v2439, %v2444
    %v2447 = vmul.f32 %v2408, %v2429
    %v2448 = vmul.f32 %v2447, %v1830
    %2450 = vrot.lane.b32.xlu0 %v2448, 96
    %v2451 = vpop.permute.xlu0 %2450
    %v2453 = vadd.f32 %v2446, %v2451
    %v2454 = vmul.f32 %v2411, %v2429
    %v2455 = vmul.f32 %v2454, %v1930
    %v2456 = vadd.f32 %v2453, %v2455
    %v2457 = vmul.f32 %v2414, %v2429
    %v2458 = vmul.f32 %v2457, %v2040
    %2460 = vrot.lane.b32.xlu0 %v2458, 96
    %v2461 = vpop.permute.xlu0 %2460
    %v2463 = vadd.f32 %v2456, %v2461
    %v2464 = vmul.f32 %v2417, %v2429
    %v2465 = vmul.f32 %v2464, %v2147
    %2467 = vrot.lane.b32.xlu0 %v2465, 96
    %v2468 = vpop.permute.xlu0 %2467
    %v2470 = vadd.f32 %v2463, %v2468
    %v2471 = vmul.f32 %v2420, %v2429
    %v2472 = vmul.f32 %v2471, %v2383
    %2474 = vrot.lane.b32.xlu0 %v2472, 96
    %v2475 = vpop.permute.xlu0 %2474
    %v2477 = vadd.f32 %v2470, %v2475
    %2478 = vrot.lane.b32.xlu0 %v2250, 32
    %v2479 = vpop.permute.xlu0 %2478
    %v2482 = vrot.slane %v2477, 2
    %2483 = vrot.lane.b32.xlu0 %v2482, 64
    %v2484 = vpop.permute.xlu0 %2483
    %v2486 = vsel %vm438, %v2479, %v2484
    %v2487 = vld [vmem:[%s11] sm:$0xff]
    %v2488 = vld [vmem:[%s11 + $0x8] sm:$0xff]
    %v2489 = vld [vmem:[%s11 + $0x10] sm:$0xff]
    %v2490 = vld [vmem:[%s11 + $0x18] sm:$0xff]
    %v2491 = vld [vmem:[%s11 + $0x20] sm:$0xff]
    %v2492 = vld [vmem:[%s11 + $0x28] sm:$0xff]
    %v2493 = vld [vmem:[%s11 + $0x30] sm:$0xff]
    %v2494 = vld [vmem:[%s11 + $0x38] sm:$0xff]
    %v2495 = vld [vmem:[#allocation17] sm:$0x1]
    %v2497 = vlaneseq
    %v2498 = vshrl.u32 %v2497, 7
    %v2499 = vsub.s32 0, %v2498
    %v2500 = vrot.slane %v2495, %v2499
    %v2503 = vrot.slane %v2486, 6
    %v2504 = vsel %vm261, %v2503, 0
    %2506 = vmatprep.subr.mxu0 0.0
    %2507 = vmatpush1.msra.mxu0 %v2487
    %2508 = vmatprep.subr.mxu0 0.0
    %2509 = vmatpush1.msra.mxu0 %v2488
    %2510 = vmatprep.subr.mxu0 0.0
    %2511 = vmatpush1.msra.mxu0 %v2489
    %2512 = vmatprep.subr.mxu0 0.0
    %2513 = vmatpush1.msra.mxu0 %v2490
    %2514 = vmatprep.subr.mxu0 0.0
    %2515 = vmatpush1.msra.mxu0 %v2491
    %2516 = vmatprep.subr.mxu0 0.0
    %2517 = vmatpush1.msra.mxu0 %v2492
    %2518 = vmatprep.subr.mxu0 0.0
    %2519 = vmatpush1.msra.mxu0 %v2493
    %2520 = vmatprep.subr.mxu0 0.0
    %2521 = vmatpush1.msra.mxu0 %v2494
    %2522 = vmatprep.subr.mxu0 0.0
    %2523 = vmatpush1.msra.mxu0 0.0
    %2524 = vmatprep.subr.mxu0 0.0
    %2525 = vmatpush1.msra.mxu0 0.0
    %2526 = vmatprep.subr.mxu0 0.0
    %2527 = vmatpush1.msra.mxu0 0.0
    %2528 = vmatprep.subr.mxu0 0.0
    %2529 = vmatpush1.msra.mxu0 0.0
    %2530 = vmatprep.subr.mxu0 0.0
    %2531 = vmatpush1.msra.mxu0 0.0
    %2532 = vmatprep.subr.mxu0 0.0
    %2533 = vmatpush1.msra.mxu0 0.0
    %2534 = vmatprep.subr.mxu0 0.0
    %2535 = vmatpush1.msra.mxu0 0.0
    %2536 = vmatprep.subr.mxu0 0.0
    %2537 = vmatpush1.msra.mxu0 0.0
    %2538 = vmatprep.subr.mxu0 0.0
    %2539 = vmatpush1.msra.mxu0 0.0
    %2540 = vmatprep.subr.mxu0 0.0
    %2541 = vmatpush1.msra.mxu0 0.0
    %2542 = vmatprep.subr.mxu0 0.0
    %2543 = vmatpush1.msra.mxu0 0.0
    %2544 = vmatprep.subr.mxu0 0.0
    %2545 = vmatpush1.msra.mxu0 0.0
    %2546 = vmatprep.subr.mxu0 0.0
    %2547 = vmatpush1.msra.mxu0 0.0
    %2548 = vmatprep.subr.mxu0 0.0
    %2549 = vmatpush1.msra.mxu0 0.0
    %2550 = vmatprep.subr.mxu0 0.0
    %2551 = vmatpush1.msra.mxu0 0.0
    %2552 = vmatprep.subr.mxu0 0.0
    %2553 = vmatpush1.msra.mxu0 0.0
    %2554 = vmatprep.subr.mxu0 0.0
    %2555 = vmatpush1.msra.mxu0 0.0
    %2556 = vmatprep.subr.mxu0 0.0
    %2557 = vmatpush1.msra.mxu0 0.0
    %2558 = vmatprep.subr.mxu0 0.0
    %2559 = vmatpush1.msra.mxu0 0.0
    %2560 = vmatprep.subr.mxu0 0.0
    %2561 = vmatpush1.msra.mxu0 0.0
    %2562 = vmatprep.subr.mxu0 0.0
    %2563 = vmatpush1.msra.mxu0 0.0
    %2564 = vmatprep.subr.mxu0 0.0
    %2565 = vmatpush1.msra.mxu0 0.0
    %2566 = vmatprep.subr.mxu0 0.0
    %2567 = vmatpush1.msra.mxu0 0.0
    %2568 = vmatprep.subr.mxu0 0.0
    %2569 = vmatpush1.msra.mxu0 0.0
    %2570 = vmatprep.mubr.f32.mxu0 0.0
    %2571 = vmatmul.mubr.f32.gmra.mrb[0].mxu0 %v2504
    %v2572 = vpop.f32.mrb[0].mxu0
    %v2573 = vadd.f32 %v2500, %v2572
    %v2574 = vpop.f32.mrb[0].mxu0
    %2575 = vdwg.mxu0
    %vm2576 = vcmask 517120
    %2577 = vst.msk [vmem:[#allocation19] sm:$0x3] %vm2576, %v2573
    // Predicated region
    $region82: #{forward.1} parent=1 // pred_check
      _
    $region83: #{forward.1} parent=1 // pred_check_branch
      %2579 = sbr.rel (0) target = $region85
    $region84: #{forward.1} parent=1 // pred_region
      %s2581 = ssub.s32 32, 32
      %2582 = vsyncadd [#allocation7], %s2581
      %s2584 = sshll.u32 [#allocation19], 4
      %s2585 = int_to_ptr.vmem [resolvable:$true] %s2584
      %2587 = dma.vmem_to_hbm [thread:$0]  %s2585, 32, %s13, [#allocation7]
    $region85: #{forward.1} parent=1 // pred_fallthru
      _
    // Predicated region
    $region86: #{forward.1} parent=1 // pred_check
      _
    $region87: #{forward.1} parent=1 // pred_check_branch
      %2589 = sbr.rel (0) target = $region89
    $region88: #{forward.1} parent=1 // pred_region
      %2590 = dma.done [#allocation7], 32
    $region89: #{forward.1} parent=1 // pred_fallthru
      _
    %2591 = vsyncpa [#allocation6], 1
    %2592 = vsyncpa [#allocation9], 1
    %2593 = vsyncpa [#allocation12], 1
    %2594 = vsyncpa [#allocation15], 1
    %2595 = vsyncpa [#allocation18], 1
    %2596 = vsyncpa [#allocation7], 1

</llo_original>
